<compile_context>
chip_gen: v7x
topology: tpu7x:2x2x1
jax: 0.10.0
libtpu: 0.0.40
codegen_flags: <defaults>
</compile_context>

<pallas_src>
import math
import jax
import jax.numpy as jnp
from jax import lax
from jax.experimental import pallas as pl
from jax.experimental.pallas import tpu as pltpu


# ----------------------------------------------------------------------------- #
# Pallas kernel: one tokenizer stage's conv stack for Bt batch elements
#   conv1 = [conv(C0->E) + in2d + relu,  conv(E->E)]
#   cat([maxpool_K(conv1(x)).expand(K), conv1(x)], channel)  -> 2E channels
#   conv2 = [conv(2E->2E) + in2d + relu, conv(2E->E) + in2d + relu]
#   out   = maxpool_K(conv2(...))                            -> (Bt, E, M) lane-dense
# ----------------------------------------------------------------------------- #
def _stage_kernel(x_ref, w1a_ref, b1a_ref, w1b_ref, b1b_ref,
                  w2ap_ref, w2ah_ref, b2a_ref, w2b_ref, b2b_ref, out_ref):
    Bt, C0p, MK = x_ref.shape
    E = w1b_ref.shape[1]
    M = out_ref.shape[2]
    K = MK // M
    R = Bt * MK
    eps = 1e-5

    def inorm_relu(h, C):
        # nn.InstanceNorm2d (affine=False): per-(batch elem, channel) stats over
        # the M*K spatial positions.  Centered (two-pass) variance matches the
        # PyTorch definition and avoids E[x^2]-mean^2 cancellation on post-ReLU
        # activations.  Stats stay f32; the normalized+ReLU result is returned
        # as bf16 (the next matmul consumes bf16) to halve peak activation VMEM.
        hb = h.reshape(Bt, MK, C)
        mu = jnp.mean(hb, axis=1, keepdims=True)
        d = hb - mu
        var = jnp.mean(d * d, axis=1, keepdims=True)
        y = jnp.maximum(d * lax.rsqrt(var + eps), 0.0)
        return y.reshape(R, C).astype(jnp.bfloat16)

    # Lane-dense input block (Bt, C0p, MK) -> (Bt*MK, C0p) matmul rows.
    # Transpose directly in bf16 (packed XLU transpose), no f32 round-trip.
    if Bt == 1:
        x = x_ref[0].T                                                   # (MK, C0p)
    else:
        x = jnp.concatenate([x_ref[b].T for b in range(Bt)], axis=0)     # (R, C0p)

    # conv1[0]: conv -> in2d -> relu.  (b1a is kept for fidelity even though a
    # per-channel constant is exactly cancelled by the following InstanceNorm.)
    h = jnp.dot(x, w1a_ref[...], preferred_element_type=jnp.float32) + b1a_ref[...]
    h = inorm_relu(h, E)
    # conv1[1]: conv only (last conv1 layer has no norm / act); keep f32 so the
    # max-pool / concat-split below is exact.
    h = jnp.dot(h, w1b_ref[...], preferred_element_type=jnp.float32) + b1b_ref[...]

    # conv2[0] conv with the channel concat eliminated:
    #   cat([pooled.expand(K), h], ch) @ w2a + b2a
    #     == broadcast_K(pooled @ w2a[:E] + b2a)  +  h @ w2a[E:]
    pooled = jnp.max(h.reshape(Bt * M, K, E), axis=1)                    # (Bt*M, E) f32
    g_pts = jnp.dot(h.astype(jnp.bfloat16), w2ah_ref[...],
                    preferred_element_type=jnp.float32)                  # (R, 2E) f32
    g_pool = jnp.dot(pooled.astype(jnp.bfloat16), w2ap_ref[...],
                     preferred_element_type=jnp.float32) + b2a_ref[...]  # (Bt*M, 2E), bias folded
    g = (g_pts.reshape(Bt * M, K, 2 * E) + g_pool[:, None, :]).reshape(R, 2 * E)
    # conv2[0] tail: in2d -> relu
    g = inorm_relu(g, 2 * E)
    # conv2[1]: conv -> in2d -> relu
    g = jnp.dot(g, w2b_ref[...], preferred_element_type=jnp.float32) + b2b_ref[...]
    g = inorm_relu(g, E)

    # final max-pool over the group dim K, stored lane-dense as (Bt, E, M) bf16.
    # (Unmasked vst only when M is a multiple of 128; masked at the toy M.)
    out = jnp.max(g.reshape(Bt * M, K, E), axis=1)                       # (Bt*M, E) bf16
    out_t = out.T                                                        # (E, Bt*M)
    for b in range(Bt):
        out_ref[b] = out_t[:, b * M:(b + 1) * M]


def _select_tiling(B, C0p, MK, M, E, weight_bytes):
    """Pick a batch tile Bt and a generation-aware VMEM limit."""
    try:
        cap = pltpu.get_tpu_info().vmem_capacity_bytes
    except Exception:
        cap = 64 * 1024 * 1024                 # conservative (v7x-sized) fallback
    budget = (cap * 3) // 4                    # leave headroom for compiler scratch

    # Per-batch-element footprint: double-buffered bf16 input / output blocks
    # plus the peak in-kernel activations (f32 (MK, 2E)-class buffers + the
    # bf16 activations live around them).  Rough but conservative.
    io_elem = 2 * (C0p * MK * 2 + E * M * 2)
    act_elem = MK * 2 * E * 4 * 2 + MK * (C0p + 6 * E) * 2
    per_elem = io_elem + act_elem

    bt = 1
    for cand in range(1, B + 1):
        if B % cand:
            continue
        if B >= 2 and B // cand < 2:           # keep >= 2 grid steps for megacore
            continue
        if 2 * weight_bytes + cand * per_elem > budget:
            continue
        bt = cand
    need = 2 * weight_bytes + bt * per_elem
    vmem_limit = int(min(budget, max(32 * 1024 * 1024, 2 * need)))
    return bt, vmem_limit


def stage_convs(x_nchw, w1a, b1a, w1b, b1b, w2a, b2a, w2b, b2b):
    """x_nchw: (B, C0, M, K) grouped features (NCHW) -> (B, E, M) bf16."""
    B, C0, M, K = x_nchw.shape
    E = w1b.shape[1]
    MK = M * K
    assert MK % 8 == 0, "M*K must be a multiple of 8 (sublane tile) for in-kernel reshapes"

    # Lane-dense input: (B, C0p, M*K); channels padded to a multiple of 16
    # (bf16 sublane tile), with matching zero rows padded onto w1a so the
    # result is unchanged.  M*K sits on lanes so the DMA'd block is dense.
    C0p = ((C0 + 15) // 16) * 16
    x = x_nchw.reshape(B, C0, MK)
    if C0p != C0:
        x = jnp.pad(x, ((0, 0), (0, C0p - C0), (0, 0)))
        w1a = jnp.pad(w1a, ((0, C0p - C0), (0, 0)))
    x = x.astype(jnp.bfloat16)

    # conv2[0]'s concat is never materialized: split w2a into its pooled /
    # per-point input halves (reference concat order is [pooled, per-point]).
    w2a_pool, w2a_pts = w2a[:E], w2a[E:]

    # bf16 weights for the MXU (f32 accumulation); biases stay f32.
    w1a = w1a.astype(jnp.bfloat16)
    w1b = w1b.astype(jnp.bfloat16)
    w2a_pool = w2a_pool.astype(jnp.bfloat16)
    w2a_pts = w2a_pts.astype(jnp.bfloat16)
    w2b = w2b.astype(jnp.bfloat16)

    consts = (w1a, b1a, w1b, b1b, w2a_pool, w2a_pts, b2a, w2b, b2b)
    weight_bytes = sum(int(a.size) * a.dtype.itemsize for a in consts)
    Bt, vmem_limit = _select_tiling(B, C0p, MK, M, E, weight_bytes)

    # Cost estimate so XLA can overlap the FPS / ball-query glue with the kernel.
    flops = 2 * B * (MK * (C0p * E + E * E + E * 2 * E + 2 * E * E) + M * E * 2 * E)
    bytes_accessed = int(x.size) * 2 + weight_bytes + B * E * M * 2
    cost = pl.CostEstimate(flops=flops, transcendentals=4 * B * E,
                           bytes_accessed=bytes_accessed)

    def full(a):
        nd = a.ndim
        return pl.BlockSpec(a.shape, lambda b, _nd=nd: (0,) * _nd)
    # TODO(synk): pipeline_mode=pl.Buffered(1) on these constant-index weight
    # specs would save one weight set of VMEM near the v7x ceiling; kept
    # double-buffered to stay on the conservative lowering path.

    return pl.pallas_call(
        _stage_kernel,
        out_shape=jax.ShapeDtypeStruct((B, E, M), jnp.bfloat16),
        grid_spec=pltpu.PrefetchScalarGridSpec(
            num_scalar_prefetch=0,
            grid=(B // Bt,),
            in_specs=[pl.BlockSpec((Bt, C0p, MK), lambda b: (b, 0, 0))]
                     + [full(a) for a in consts],
            out_specs=pl.BlockSpec((Bt, E, M), lambda b: (b, 0, 0)),
        ),
        compiler_params=pltpu.CompilerParams(
            dimension_semantics=("parallel",),   # batch tiles independent -> megacore
            vmem_limit_bytes=vmem_limit,
        ),
        cost_estimate=cost,
    )(x, *consts)


# ----------------------------------------------------------------------------- #
# Plain-JAX glue: FPS sampling, ball-query grouping, gathers.
# TODO(synk): FPS (sequential argmax loop) and ball-query (data-dependent gather)
# have no clean Pallas equivalent here; kept in plain JAX.
# ----------------------------------------------------------------------------- #
def furthest_point_sample(p, npoint):
    """p: (B, N, 3) -> (B, npoint) int32 (CUDA-style FPS, first index = 0)."""
    B, N, _ = p.shape

    def per_batch(pts):
        def body(i, state):
            idx, dists, last = state
            d = jnp.sum((pts - pts[last]) ** 2, axis=-1)
            dists = jnp.minimum(dists, d)
            nxt = jnp.argmax(dists).astype(jnp.int32)
            return idx.at[i].set(nxt), dists, nxt

        idx0 = jnp.zeros((npoint,), jnp.int32)
        dists0 = jnp.full((N,), jnp.inf, jnp.float32)
        idx, _, _ = lax.fori_loop(1, npoint, body, (idx0, dists0, jnp.int32(0)))
        return idx

    return jax.vmap(per_batch)(p)


def ball_query(radius, nsample, xyz, centers):
    """xyz: (B, N, 3), centers: (B, M, 3) -> (B, M, nsample) int32.
    First `nsample` points (in index order) within `radius`; remainder filled
    with the first found index (matching the CUDA ball_query semantics)."""
    N = xyz.shape[1]
    d2 = jnp.sum((centers[:, :, None, :] - xyz[:, None, :, :]) ** 2, axis=-1)  # (B,M,N)
    within = d2 < radius ** 2
    order = jnp.where(within, jnp.arange(N), N)
    sorted_idx = jnp.argsort(order, axis=-1)                                   # stable
    idx = sorted_idx[..., :nsample]
    cnt = jnp.sum(within, axis=-1)                                             # (B,M)
    first = jnp.where(cnt > 0, sorted_idx[..., 0], 0)
    fill = jnp.broadcast_to(first[..., None], idx.shape)
    mask = jnp.arange(nsample)[None, None, :] < cnt[..., None]
    return jnp.where(mask, idx, fill).astype(jnp.int32)


def group_gather(feat, idx):
    """feat: (B, C, N), idx: (B, M, K) -> (B, C, M, K)."""
    return jax.vmap(lambda ft, ix: jnp.take(ft, ix, axis=1))(feat, idx)


# ----------------------------------------------------------------------------- #
# Full forward (mirrors pc_tokenizer.forward)
# ----------------------------------------------------------------------------- #
def pc_tokenizer_forward(p, f, params, *, scale, group_size, radius):
    B, N, _ = p.shape
    out_p, out_f = [p], [f]
    for stage in params:
        cur_p, cur_f = out_p[-1], out_f[-1]
        M = N // scale
        idx = furthest_point_sample(cur_p, M)                                        # (B, M)
        N = M
        center_p = jnp.take_along_axis(
            cur_p, jnp.broadcast_to(idx[..., None], (B, M, 3)), axis=1)              # (B, M, 3)
        C = cur_f.shape[1]
        center_f = jnp.take_along_axis(
            cur_f, jnp.broadcast_to(idx[:, None, :], (B, C, M)), axis=2)             # (B, C, M)

        gidx = ball_query(radius, group_size, cur_p, center_p)                       # (B, M, K)
        gxyz = group_gather(jnp.transpose(cur_p, (0, 2, 1)), gidx)                   # (B, 3, M, K)
        dp = gxyz - jnp.transpose(center_p, (0, 2, 1))[..., None]                    # relative_xyz
        fj = group_gather(cur_f, gidx)                                               # (B, C, M, K)
        df = fj - center_f[..., None]
        # 'dp_df' aggregation; bf16 here (the kernel consumes bf16 anyway).
        feat = jnp.concatenate([dp.astype(jnp.bfloat16),
                                df.astype(jnp.bfloat16)], axis=1)                    # (B, C+3, M, K)

        o = stage_convs(feat, *stage)                                                # (B, E, M) [Pallas]
        out_f.append(o)                                                              # channels-first, bf16
        out_p.append(center_p)
    return out_p, out_f


def init_params(key, *, sample_ratio, scale, in_channels, embed_dim, layers=4):
    """Deterministic synthetic weights. Per stage:
    conv1: (C0->E), (E->E);  conv2: (2E->2E), (2E->E).  Biases zero-init."""
    stages = int(round(math.log(1.0 / sample_ratio, scale)))
    ed = int(embed_dim // 2 ** (stages - 1))
    cin = in_channels
    params = []
    for _ in range(stages):
        c_agg = cin + 3  # CHANNEL_MAP['dp_df'] = x + 3
        wshapes = [(c_agg, ed), (ed, ed), (2 * ed, 2 * ed), (2 * ed, ed)]
        stage = []
        for ci, co in wshapes:
            key, sub = jax.random.split(key)
            w = jax.random.normal(sub, (ci, co), jnp.float32) * (1.0 / math.sqrt(ci))
            stage += [w, jnp.zeros((1, co), jnp.float32)]
        params.append(tuple(stage))
        cin = ed
        ed *= 2
    return params


if __name__ == "__main__":
    # Small config: sample_ratio=0.0625, scale=4 -> 2 stages; embed_dim=32 -> E=16, 32.
    # B=4 so the batch-tiled path (Bt=2) AND the 2-step parallel grid are exercised.
    B, N = 4, 64
    scale, sample_ratio = 4, 0.0625
    group_size = 8
    in_channels = 3
    embed_dim = 32
    radius = 0.2  # constructor-configurable; larger than the 0.1 default so groups are non-trivial

    key = jax.random.PRNGKey(0)
    pkey, wkey = jax.random.split(key)
    p = jax.random.uniform(pkey, (B, N, 3), jnp.float32)       # points   (B, N, 3)
    f = jnp.transpose(p, (0, 2, 1))                            # features (B, 3, N) — xyz as features

    params = init_params(wkey, sample_ratio=sample_ratio, scale=scale,
                         in_channels=in_channels, embed_dim=embed_dim)

    out_p, out_f = pc_tokenizer_forward(p, f, params, scale=scale,
                                        group_size=group_size, radius=radius)

    jax.block_until_ready(out_f[-1])
    jax.block_until_ready(out_p[-1])
    assert out_p[-1].shape == (B, N // scale // scale, 3)
    assert out_f[-1].shape == (B, embed_dim, N // scale // scale)
    print("KERNEL_OK")
</pallas_src>

<mosaic_0001>
module attributes {stable_mosaic.version = 11 : i64} {
  func.func @_stage_kernel(%arg0: i32, %arg1: memref<2x16x128xbf16, #tpu.memory_space<vmem>>, %arg2: memref<16x16xbf16, #tpu.memory_space<vmem>>, %arg3: memref<1x16xf32, #tpu.memory_space<vmem>>, %arg4: memref<16x16xbf16, #tpu.memory_space<vmem>>, %arg5: memref<1x16xf32, #tpu.memory_space<vmem>>, %arg6: memref<16x32xbf16, #tpu.memory_space<vmem>>, %arg7: memref<16x32xbf16, #tpu.memory_space<vmem>>, %arg8: memref<1x32xf32, #tpu.memory_space<vmem>>, %arg9: memref<32x16xbf16, #tpu.memory_space<vmem>>, %arg10: memref<1x16xf32, #tpu.memory_space<vmem>>, %arg11: memref<2x16x16xbf16, #tpu.memory_space<vmem>>) attributes {dimension_semantics = [#tpu.dimension_semantics<parallel>], iteration_bounds = array<i64: 2>, scalar_prefetch = 0 : i64, scratch_operands = 0 : i64, tpu.core_type = #tpu.core_type<tc>, window_params = [{transform_indices = @transform_0, window_bounds = array<i64: 2, 16, 128>}, {pipeline_mode = #tpu.pipeline_mode<synchronous>, transform_indices = @transform_1, window_bounds = array<i64: 16, 16>}, {pipeline_mode = #tpu.pipeline_mode<synchronous>, transform_indices = @transform_2, window_bounds = array<i64: 1, 16>}, {pipeline_mode = #tpu.pipeline_mode<synchronous>, transform_indices = @transform_3, window_bounds = array<i64: 16, 16>}, {pipeline_mode = #tpu.pipeline_mode<synchronous>, transform_indices = @transform_4, window_bounds = array<i64: 1, 16>}, {pipeline_mode = #tpu.pipeline_mode<synchronous>, transform_indices = @transform_5, window_bounds = array<i64: 16, 32>}, {pipeline_mode = #tpu.pipeline_mode<synchronous>, transform_indices = @transform_6, window_bounds = array<i64: 16, 32>}, {pipeline_mode = #tpu.pipeline_mode<synchronous>, transform_indices = @transform_7, window_bounds = array<i64: 1, 32>}, {pipeline_mode = #tpu.pipeline_mode<synchronous>, transform_indices = @transform_8, window_bounds = array<i64: 32, 16>}, {pipeline_mode = #tpu.pipeline_mode<synchronous>, transform_indices = @transform_9, window_bounds = array<i64: 1, 16>}, {transform_indices = @transform_10, window_bounds = array<i64: 2, 16, 16>}]} {
    %c0 = arith.constant 0 : index
    %c0_0 = arith.constant 0 : index
    %c0_1 = arith.constant 0 : index
    %0 = vector.load %arg1[%c0, %c0_0, %c0_1] : memref<2x16x128xbf16, #tpu.memory_space<vmem>>, vector<1x16x128xbf16>
    %1 = vector.shape_cast %0 : vector<1x16x128xbf16> to vector<16x128xbf16>
    %2 = tpu.transpose %1, [1, 0] : vector<16x128xbf16> -> vector<128x16xbf16>
    %c1 = arith.constant 1 : index
    %c0_2 = arith.constant 0 : index
    %c0_3 = arith.constant 0 : index
    %3 = vector.load %arg1[%c1, %c0_2, %c0_3] : memref<2x16x128xbf16, #tpu.memory_space<vmem>>, vector<1x16x128xbf16>
    %4 = vector.shape_cast %3 : vector<1x16x128xbf16> to vector<16x128xbf16>
    %5 = tpu.transpose %4, [1, 0] : vector<16x128xbf16> -> vector<128x16xbf16>
    %6 = tpu.concatenate %2, %5 in 0 : vector<128x16xbf16>, vector<128x16xbf16> -> vector<256x16xbf16>
    %c0_4 = arith.constant 0 : index
    %c0_5 = arith.constant 0 : index
    %7 = vector.load %arg2[%c0_4, %c0_5] : memref<16x16xbf16, #tpu.memory_space<vmem>>, vector<16x16xbf16>
    %cst = arith.constant dense<0.000000e+00> : vector<256x16xf32>
    %8 = tpu.matmul %6, %7, %cst {dimension_numbers = #tpu.dot_dimension_numbers<[1], [0], [0], [1], [0, 0, 1, 1], [], []>} : vector<256x16xbf16>, vector<16x16xbf16>, vector<256x16xf32> -> vector<256x16xf32>
    %c0_6 = arith.constant 0 : index
    %c0_7 = arith.constant 0 : index
    %9 = vector.load %arg3[%c0_6, %c0_7] : memref<1x16xf32, #tpu.memory_space<vmem>>, vector<1x16xf32>
    %10 = vector.broadcast %9 : vector<1x16xf32> to vector<256x16xf32>
    %11 = arith.addf %8, %10 : vector<256x16xf32>
    %12 = vector.shape_cast %11 : vector<256x16xf32> to vector<2x128x16xf32>
    %cst_8 = arith.constant dense<0.000000e+00> : vector<2x16xf32>
    %13 = vector.multi_reduction <add>, %12, %cst_8 [1] : vector<2x128x16xf32> to vector<2x16xf32>
    %14 = vector.shape_cast %13 : vector<2x16xf32> to vector<2x1x16xf32>
    %cst_9 = arith.constant 1.280000e+02 : f32
    %15 = vector.broadcast %cst_9 : f32 to vector<2x1x16xf32>
    %16 = arith.divf %14, %15 : vector<2x1x16xf32>
    %17 = vector.broadcast %16 : vector<2x1x16xf32> to vector<2x128x16xf32>
    %18 = arith.subf %12, %17 : vector<2x128x16xf32>
    %19 = arith.mulf %18, %18 : vector<2x128x16xf32>
    %cst_10 = arith.constant dense<0.000000e+00> : vector<2x16xf32>
    %20 = vector.multi_reduction <add>, %19, %cst_10 [1] : vector<2x128x16xf32> to vector<2x16xf32>
    %21 = vector.shape_cast %20 : vector<2x16xf32> to vector<2x1x16xf32>
    %cst_11 = arith.constant 1.280000e+02 : f32
    %22 = vector.broadcast %cst_11 : f32 to vector<2x1x16xf32>
    %23 = arith.divf %21, %22 : vector<2x1x16xf32>
    %cst_12 = arith.constant 9.99999974E-6 : f32
    %24 = vector.broadcast %cst_12 : f32 to vector<2x1x16xf32>
    %25 = arith.addf %23, %24 : vector<2x1x16xf32>
    %26 = math.rsqrt %25 : vector<2x1x16xf32>
    %27 = vector.broadcast %26 : vector<2x1x16xf32> to vector<2x128x16xf32>
    %28 = arith.mulf %18, %27 : vector<2x128x16xf32>
    %cst_13 = arith.constant 0.000000e+00 : f32
    %29 = vector.broadcast %cst_13 : f32 to vector<2x128x16xf32>
    %30 = arith.maximumf %28, %29 : vector<2x128x16xf32>
    %31 = vector.shape_cast %30 : vector<2x128x16xf32> to vector<256x16xf32>
    %32 = arith.truncf %31 : vector<256x16xf32> to vector<256x16xbf16>
    %c0_14 = arith.constant 0 : index
    %c0_15 = arith.constant 0 : index
    %33 = vector.load %arg4[%c0_14, %c0_15] : memref<16x16xbf16, #tpu.memory_space<vmem>>, vector<16x16xbf16>
    %cst_16 = arith.constant dense<0.000000e+00> : vector<256x16xf32>
    %34 = tpu.matmul %32, %33, %cst_16 {dimension_numbers = #tpu.dot_dimension_numbers<[1], [0], [0], [1], [0, 0, 1, 1], [], []>} : vector<256x16xbf16>, vector<16x16xbf16>, vector<256x16xf32> -> vector<256x16xf32>
    %c0_17 = arith.constant 0 : index
    %c0_18 = arith.constant 0 : index
    %35 = vector.load %arg5[%c0_17, %c0_18] : memref<1x16xf32, #tpu.memory_space<vmem>>, vector<1x16xf32>
    %36 = vector.broadcast %35 : vector<1x16xf32> to vector<256x16xf32>
    %37 = arith.addf %34, %36 : vector<256x16xf32>
    %38 = vector.shape_cast %37 : vector<256x16xf32> to vector<32x8x16xf32>
    %cst_19 = arith.constant dense<0xFF800000> : vector<32x16xf32>
    %39 = vector.multi_reduction <maximumf>, %38, %cst_19 [1] : vector<32x8x16xf32> to vector<32x16xf32>
    %40 = arith.truncf %37 : vector<256x16xf32> to vector<256x16xbf16>
    %c0_20 = arith.constant 0 : index
    %c0_21 = arith.constant 0 : index
    %41 = vector.load %arg7[%c0_20, %c0_21] : memref<16x32xbf16, #tpu.memory_space<vmem>>, vector<16x32xbf16>
    %cst_22 = arith.constant dense<0.000000e+00> : vector<256x32xf32>
    %42 = tpu.matmul %40, %41, %cst_22 {dimension_numbers = #tpu.dot_dimension_numbers<[1], [0], [0], [1], [0, 0, 1, 1], [], []>} : vector<256x16xbf16>, vector<16x32xbf16>, vector<256x32xf32> -> vector<256x32xf32>
    %43 = arith.truncf %39 : vector<32x16xf32> to vector<32x16xbf16>
    %c0_23 = arith.constant 0 : index
    %c0_24 = arith.constant 0 : index
    %44 = vector.load %arg6[%c0_23, %c0_24] : memref<16x32xbf16, #tpu.memory_space<vmem>>, vector<16x32xbf16>
    %cst_25 = arith.constant dense<0.000000e+00> : vector<32x32xf32>
    %45 = tpu.matmul %43, %44, %cst_25 {dimension_numbers = #tpu.dot_dimension_numbers<[1], [0], [0], [1], [0, 0, 1, 1], [], []>} : vector<32x16xbf16>, vector<16x32xbf16>, vector<32x32xf32> -> vector<32x32xf32>
    %c0_26 = arith.constant 0 : index
    %c0_27 = arith.constant 0 : index
    %46 = vector.load %arg8[%c0_26, %c0_27] : memref<1x32xf32, #tpu.memory_space<vmem>>, vector<1x32xf32>
    %47 = vector.broadcast %46 : vector<1x32xf32> to vector<32x32xf32>
    %48 = arith.addf %45, %47 : vector<32x32xf32>
    %49 = vector.shape_cast %42 : vector<256x32xf32> to vector<32x8x32xf32>
    %50 = vector.shape_cast %48 : vector<32x32xf32> to vector<32x1x32xf32>
    %51 = vector.broadcast %50 : vector<32x1x32xf32> to vector<32x8x32xf32>
    %52 = arith.addf %49, %51 : vector<32x8x32xf32>
    %53 = vector.shape_cast %52 : vector<32x8x32xf32> to vector<256x32xf32>
    %54 = vector.shape_cast %53 : vector<256x32xf32> to vector<2x128x32xf32>
    %cst_28 = arith.constant dense<0.000000e+00> : vector<2x32xf32>
    %55 = vector.multi_reduction <add>, %54, %cst_28 [1] : vector<2x128x32xf32> to vector<2x32xf32>
    %56 = vector.shape_cast %55 : vector<2x32xf32> to vector<2x1x32xf32>
    %cst_29 = arith.constant 1.280000e+02 : f32
    %57 = vector.broadcast %cst_29 : f32 to vector<2x1x32xf32>
    %58 = arith.divf %56, %57 : vector<2x1x32xf32>
    %59 = vector.broadcast %58 : vector<2x1x32xf32> to vector<2x128x32xf32>
    %60 = arith.subf %54, %59 : vector<2x128x32xf32>
    %61 = arith.mulf %60, %60 : vector<2x128x32xf32>
    %cst_30 = arith.constant dense<0.000000e+00> : vector<2x32xf32>
    %62 = vector.multi_reduction <add>, %61, %cst_30 [1] : vector<2x128x32xf32> to vector<2x32xf32>
    %63 = vector.shape_cast %62 : vector<2x32xf32> to vector<2x1x32xf32>
    %cst_31 = arith.constant 1.280000e+02 : f32
    %64 = vector.broadcast %cst_31 : f32 to vector<2x1x32xf32>
    %65 = arith.divf %63, %64 : vector<2x1x32xf32>
    %cst_32 = arith.constant 9.99999974E-6 : f32
    %66 = vector.broadcast %cst_32 : f32 to vector<2x1x32xf32>
    %67 = arith.addf %65, %66 : vector<2x1x32xf32>
    %68 = math.rsqrt %67 : vector<2x1x32xf32>
    %69 = vector.broadcast %68 : vector<2x1x32xf32> to vector<2x128x32xf32>
    %70 = arith.mulf %60, %69 : vector<2x128x32xf32>
    %cst_33 = arith.constant 0.000000e+00 : f32
    %71 = vector.broadcast %cst_33 : f32 to vector<2x128x32xf32>
    %72 = arith.maximumf %70, %71 : vector<2x128x32xf32>
    %73 = vector.shape_cast %72 : vector<2x128x32xf32> to vector<256x32xf32>
    %74 = arith.truncf %73 : vector<256x32xf32> to vector<256x32xbf16>
    %c0_34 = arith.constant 0 : index
    %c0_35 = arith.constant 0 : index
    %75 = vector.load %arg9[%c0_34, %c0_35] : memref<32x16xbf16, #tpu.memory_space<vmem>>, vector<32x16xbf16>
    %cst_36 = arith.constant dense<0.000000e+00> : vector<256x16xf32>
    %76 = tpu.matmul %74, %75, %cst_36 {dimension_numbers = #tpu.dot_dimension_numbers<[1], [0], [0], [1], [0, 0, 1, 1], [], []>} : vector<256x32xbf16>, vector<32x16xbf16>, vector<256x16xf32> -> vector<256x16xf32>
    %c0_37 = arith.constant 0 : index
    %c0_38 = arith.constant 0 : index
    %77 = vector.load %arg10[%c0_37, %c0_38] : memref<1x16xf32, #tpu.memory_space<vmem>>, vector<1x16xf32>
    %78 = vector.broadcast %77 : vector<1x16xf32> to vector<256x16xf32>
    %79 = arith.addf %76, %78 : vector<256x16xf32>
    %80 = vector.shape_cast %79 : vector<256x16xf32> to vector<2x128x16xf32>
    %cst_39 = arith.constant dense<0.000000e+00> : vector<2x16xf32>
    %81 = vector.multi_reduction <add>, %80, %cst_39 [1] : vector<2x128x16xf32> to vector<2x16xf32>
    %82 = vector.shape_cast %81 : vector<2x16xf32> to vector<2x1x16xf32>
    %cst_40 = arith.constant 1.280000e+02 : f32
    %83 = vector.broadcast %cst_40 : f32 to vector<2x1x16xf32>
    %84 = arith.divf %82, %83 : vector<2x1x16xf32>
    %85 = vector.broadcast %84 : vector<2x1x16xf32> to vector<2x128x16xf32>
    %86 = arith.subf %80, %85 : vector<2x128x16xf32>
    %87 = arith.mulf %86, %86 : vector<2x128x16xf32>
    %cst_41 = arith.constant dense<0.000000e+00> : vector<2x16xf32>
    %88 = vector.multi_reduction <add>, %87, %cst_41 [1] : vector<2x128x16xf32> to vector<2x16xf32>
    %89 = vector.shape_cast %88 : vector<2x16xf32> to vector<2x1x16xf32>
    %cst_42 = arith.constant 1.280000e+02 : f32
    %90 = vector.broadcast %cst_42 : f32 to vector<2x1x16xf32>
    %91 = arith.divf %89, %90 : vector<2x1x16xf32>
    %cst_43 = arith.constant 9.99999974E-6 : f32
    %92 = vector.broadcast %cst_43 : f32 to vector<2x1x16xf32>
    %93 = arith.addf %91, %92 : vector<2x1x16xf32>
    %94 = math.rsqrt %93 : vector<2x1x16xf32>
    %95 = vector.broadcast %94 : vector<2x1x16xf32> to vector<2x128x16xf32>
    %96 = arith.mulf %86, %95 : vector<2x128x16xf32>
    %cst_44 = arith.constant 0.000000e+00 : f32
    %97 = vector.broadcast %cst_44 : f32 to vector<2x128x16xf32>
    %98 = arith.maximumf %96, %97 : vector<2x128x16xf32>
    %99 = vector.shape_cast %98 : vector<2x128x16xf32> to vector<256x16xf32>
    %100 = arith.truncf %99 : vector<256x16xf32> to vector<256x16xbf16>
    %101 = vector.shape_cast %100 : vector<256x16xbf16> to vector<32x8x16xbf16>
    %cst_45 = arith.constant dense<0xFF80> : vector<32x16xbf16>
    %102 = vector.multi_reduction <maximumf>, %101, %cst_45 [1] : vector<32x8x16xbf16> to vector<32x16xbf16>
    %103 = tpu.transpose %102, [1, 0] : vector<32x16xbf16> -> vector<16x32xbf16>
    %104 = vector.extract_strided_slice %103 {offsets = [0, 0], sizes = [16, 16], strides = [1, 1]} : vector<16x32xbf16> to vector<16x16xbf16>
    %c0_46 = arith.constant 0 : index
    %c0_47 = arith.constant 0 : index
    %c0_48 = arith.constant 0 : index
    %105 = vector.load %arg11[%c0_46, %c0_47, %c0_48] : memref<2x16x16xbf16, #tpu.memory_space<vmem>>, vector<1x16x16xbf16>
    %106 = vector.shape_cast %105 : vector<1x16x16xbf16> to vector<16x16xbf16>
    %107 = vector.shape_cast %104 : vector<16x16xbf16> to vector<1x16x16xbf16>
    tpu.vector_store %arg11[%c0_46, %c0_47, %c0_48], %107 {strides = array<i32>} : memref<2x16x16xbf16, #tpu.memory_space<vmem>>, vector<1x16x16xbf16>,
    %108 = vector.extract_strided_slice %103 {offsets = [0, 16], sizes = [16, 16], strides = [1, 1]} : vector<16x32xbf16> to vector<16x16xbf16>
    %c1_49 = arith.constant 1 : index
    %c0_50 = arith.constant 0 : index
    %c0_51 = arith.constant 0 : index
    %109 = vector.load %arg11[%c1_49, %c0_50, %c0_51] : memref<2x16x16xbf16, #tpu.memory_space<vmem>>, vector<1x16x16xbf16>
    %110 = vector.shape_cast %109 : vector<1x16x16xbf16> to vector<16x16xbf16>
    %111 = vector.shape_cast %108 : vector<16x16xbf16> to vector<1x16x16xbf16>
    tpu.vector_store %arg11[%c1_49, %c0_50, %c0_51], %111 {strides = array<i32>} : memref<2x16x16xbf16, #tpu.memory_space<vmem>>, vector<1x16x16xbf16>,
    return
  }
  func.func @transform_0(%arg0: i32) -> (i32, i32, i32) {
    %c0_i32 = arith.constant 0 : i32
    %c0_i32_0 = arith.constant 0 : i32
    %c0_i32_1 = arith.constant 0 : i32
    return %arg0, %c0_i32, %c0_i32_0 : i32, i32, i32
  }
  func.func @transform_1(%arg0: i32) -> (i32, i32) {
    %c0_i32 = arith.constant 0 : i32
    %c0_i32_0 = arith.constant 0 : i32
    %c0_i32_1 = arith.constant 0 : i32
    return %c0_i32, %c0_i32_0 : i32, i32
  }
  func.func @transform_2(%arg0: i32) -> (i32, i32) {
    %c0_i32 = arith.constant 0 : i32
    %c0_i32_0 = arith.constant 0 : i32
    %c0_i32_1 = arith.constant 0 : i32
    return %c0_i32, %c0_i32_0 : i32, i32
  }
  func.func @transform_3(%arg0: i32) -> (i32, i32) {
    %c0_i32 = arith.constant 0 : i32
    %c0_i32_0 = arith.constant 0 : i32
    %c0_i32_1 = arith.constant 0 : i32
    return %c0_i32, %c0_i32_0 : i32, i32
  }
  func.func @transform_4(%arg0: i32) -> (i32, i32) {
    %c0_i32 = arith.constant 0 : i32
    %c0_i32_0 = arith.constant 0 : i32
    %c0_i32_1 = arith.constant 0 : i32
    return %c0_i32, %c0_i32_0 : i32, i32
  }
  func.func @transform_5(%arg0: i32) -> (i32, i32) {
    %c0_i32 = arith.constant 0 : i32
    %c0_i32_0 = arith.constant 0 : i32
    %c0_i32_1 = arith.constant 0 : i32
    return %c0_i32, %c0_i32_0 : i32, i32
  }
  func.func @transform_6(%arg0: i32) -> (i32, i32) {
    %c0_i32 = arith.constant 0 : i32
    %c0_i32_0 = arith.constant 0 : i32
    %c0_i32_1 = arith.constant 0 : i32
    return %c0_i32, %c0_i32_0 : i32, i32
  }
  func.func @transform_7(%arg0: i32) -> (i32, i32) {
    %c0_i32 = arith.constant 0 : i32
    %c0_i32_0 = arith.constant 0 : i32
    %c0_i32_1 = arith.constant 0 : i32
    return %c0_i32, %c0_i32_0 : i32, i32
  }
  func.func @transform_8(%arg0: i32) -> (i32, i32) {
    %c0_i32 = arith.constant 0 : i32
    %c0_i32_0 = arith.constant 0 : i32
    %c0_i32_1 = arith.constant 0 : i32
    return %c0_i32, %c0_i32_0 : i32, i32
  }
  func.func @transform_9(%arg0: i32) -> (i32, i32) {
    %c0_i32 = arith.constant 0 : i32
    %c0_i32_0 = arith.constant 0 : i32
    %c0_i32_1 = arith.constant 0 : i32
    return %c0_i32, %c0_i32_0 : i32, i32
  }
  func.func @transform_10(%arg0: i32) -> (i32, i32, i32) {
    %c0_i32 = arith.constant 0 : i32
    %c0_i32_0 = arith.constant 0 : i32
    %c0_i32_1 = arith.constant 0 : i32
    return %arg0, %c0_i32, %c0_i32_0 : i32, i32, i32
  }
}

</mosaic_0001>

<llo_original>
// kernel: tpu_custom_call.1
$region0: #{tpu_custom_call.1}
  #allocation0 [shape = 'u32[]', space=smem, size = 0x4, offset = 0x4, fixed_abs, tag = 'smem constant byte address 0x4 - core index']
  #allocation1 [shape = 'u32[144,128]{1,0:T(1,128)}', space=vmem, size = 0x12000, scoped, tag = 'internal scratch']
  %s0 = inlined_call_operand.hbm [shape: bf16[4,16,128], index: 0, kind: input, shape index: {}]
  %s1 = inlined_call_operand.vmem [shape: bf16[16,16], index: 1, kind: input, shape index: {}]
  %s2 = inlined_call_operand.vmem [shape: f32[1,16], index: 2, kind: input, shape index: {}]
  %s3 = inlined_call_operand.vmem [shape: bf16[16,16], index: 3, kind: input, shape index: {}]
  %s4 = inlined_call_operand.vmem [shape: f32[1,16], index: 4, kind: input, shape index: {}]
  %s5 = inlined_call_operand.vmem [shape: bf16[16,32], index: 5, kind: input, shape index: {}]
  %s6 = inlined_call_operand.vmem [shape: bf16[16,32], index: 6, kind: input, shape index: {}]
  %s7 = inlined_call_operand.vmem [shape: f32[1,32], index: 7, kind: input, shape index: {}]
  %s8 = inlined_call_operand.vmem [shape: bf16[32,16], index: 8, kind: input, shape index: {}]
  %s9 = inlined_call_operand.vmem [shape: f32[1,16], index: 9, kind: input, shape index: {}]
  %s10 = inlined_call_operand.hbm [shape: bf16[4,16,16], index: 10, kind: output, shape index: {}]
  %s11 = sld [smem:[#allocation0]]
  $region77: #{tpu_custom_call.1} parent=0
    _
  %s13 = ssub.s32 1, %s11
  %s14 = scalar_select 0, %s13, %s11
  $region1: #{tpu_custom_call.1} parent=0
    #allocation2 [shape = 'u8[16384]{0}', space=vmem, size = 0x4000, scoped, tag = 'input window, operand 0']
    #allocation3 [shape = 's32[2]{0}', space=sflag, size = 0x8, scoped, tag = 'scoped memory for tpu_custom_call.1']
    #allocation4 [shape = 's32[2]{0}', space=sflag, size = 0x8, scoped, tag = 'scoped memory for tpu_custom_call.1']
    #allocation5 [shape = 'u8[16384]{0}', space=vmem, size = 0x4000, scoped, tag = 'output window, operand 0']
    %15 = vsyncpa [#allocation3], 0
    %s16 = scalar_lea.sflag [#allocation3], 1
    %17 = vsyncpa %s16, 0
    %18 = vsyncpa [#allocation4], 0
    %s19 = scalar_lea.sflag [#allocation4], 1
    %20 = vsyncpa %s19, 0
    loop: start=0, step=1, limit=4
    $region2: #{tpu_custom_call.1} parent=1 // loop_pre_header
      _
    $region3: #{tpu_custom_call.1} parent=1 // loop_header
      %s22 = sphi 0, %s26
      %p23 = scmp.ge.s32.totalorder %s22, 4
      %s32 = sphi 0, %s34
      %s35 = sphi 0, %s32
      %s36 = sphi 0, %s35
      %s52 = sphi 0, %s36
      %s56 = sphi 0, %s56
      %s58 = sphi 0, %s56
      %s59 = sphi 0, %s58
      %s73 = sphi 0, %s59
      %s77 = sphi 0, %s77
      %s79 = sphi 0, %s77
      %s80 = sphi 0, %s79
      %s94 = sphi 0, %s80
      %s98 = sphi 0, %s98
      %s100 = sphi 0, %s98
      %s101 = sphi 0, %s100
      %s115 = sphi 0, %s101
      %s119 = sphi 0, %s119
      %s121 = sphi 0, %s119
      %s122 = sphi 0, %s121
      %s136 = sphi 0, %s122
      %s140 = sphi 0, %s140
      %s142 = sphi 0, %s140
      %s143 = sphi 0, %s142
      %s157 = sphi 0, %s143
      %s161 = sphi 0, %s161
      %s163 = sphi 0, %s161
      %s164 = sphi 0, %s163
      %s178 = sphi 0, %s164
      %s182 = sphi 0, %s182
      %s184 = sphi 0, %s182
      %s185 = sphi 0, %s184
      %s199 = sphi 0, %s185
      %s203 = sphi 0, %s203
      %s205 = sphi 0, %s203
      %s206 = sphi 0, %s205
      %s220 = sphi 0, %s206
      %s224 = sphi 0, %s224
      %s226 = sphi 0, %s224
      %s227 = sphi 0, %s226
      %s241 = sphi 0, %s227
      %s247 = sphi 0, %s249
      %s250 = sphi 0, %s247
      %s251 = sphi 0, %s250
      %s267 = sphi 0, %s251
    $region4: #{tpu_custom_call.1} parent=1 // loop_header_branch
      %25 = sbr.rel (%p23) target = $region8
    $region5: #{tpu_custom_call.1} parent=1 // loop_body
      %s27 = ssub.s32 %s22, 1
      %s28 = ssub.s32 %s22, 2
      %s29 = sadd.s32 %s22, 1
      %s30 = ssub.s32 %s22, %s29
      %p31 = scmp.eq.s32.totalorder %s30, 0
      %s33 = sadd.s32 %s32, 1
      %s34 = scalar_select %p31, %s32, %s33
      %p37 = pneg %p31
      %p38 = scmp.eq.s32.totalorder %s22, 1
      %p39 = por %p37, %p38
      %p40 = scmp.ne.s32.totalorder %s32, %s35
      %p41 = scmp.eq.s32.totalorder %s22, 0
      %p42 = por %p40, %p41
      %p43 = scmp.ne.s32.totalorder %s32, %s35
      %p44 = scmp.eq.s32.totalorder %s27, 1
      %p45 = por %p43, %p44
      %p46 = scmp.ne.s32.totalorder %s35, %s36
      %p47 = scmp.eq.s32.totalorder %s27, 0
      %p48 = por %p46, %p47
      %p49 = scmp.ne.s32.totalorder %s35, %s36
      %p50 = scmp.eq.s32.totalorder %s28, 1
      %p51 = por %p49, %p50
      %p53 = scmp.ne.s32.totalorder %s36, %s52
      %p54 = scmp.eq.s32.totalorder %s28, 0
      %p55 = por %p53, %p54
      %s57 = sadd.s32 %s56, 1
      %p60 = scmp.eq.s32.totalorder %s22, 1
      %p61 = scmp.ne.s32.totalorder %s56, %s58
      %p62 = scmp.eq.s32.totalorder %s22, 0
      %p63 = por %p61, %p62
      %p64 = scmp.ne.s32.totalorder %s56, %s58
      %p65 = scmp.eq.s32.totalorder %s27, 1
      %p66 = por %p64, %p65
      %p67 = scmp.ne.s32.totalorder %s58, %s59
      %p68 = scmp.eq.s32.totalorder %s27, 0
      %p69 = por %p67, %p68
      %p70 = scmp.ne.s32.totalorder %s58, %s59
      %p71 = scmp.eq.s32.totalorder %s28, 1
      %p72 = por %p70, %p71
      %p74 = scmp.ne.s32.totalorder %s59, %s73
      %p75 = scmp.eq.s32.totalorder %s28, 0
      %p76 = por %p74, %p75
      %s78 = sadd.s32 %s77, 1
      %p81 = scmp.eq.s32.totalorder %s22, 1
      %p82 = scmp.ne.s32.totalorder %s77, %s79
      %p83 = scmp.eq.s32.totalorder %s22, 0
      %p84 = por %p82, %p83
      %p85 = scmp.ne.s32.totalorder %s77, %s79
      %p86 = scmp.eq.s32.totalorder %s27, 1
      %p87 = por %p85, %p86
      %p88 = scmp.ne.s32.totalorder %s79, %s80
      %p89 = scmp.eq.s32.totalorder %s27, 0
      %p90 = por %p88, %p89
      %p91 = scmp.ne.s32.totalorder %s79, %s80
      %p92 = scmp.eq.s32.totalorder %s28, 1
      %p93 = por %p91, %p92
      %p95 = scmp.ne.s32.totalorder %s80, %s94
      %p96 = scmp.eq.s32.totalorder %s28, 0
      %p97 = por %p95, %p96
      %s99 = sadd.s32 %s98, 1
      %p102 = scmp.eq.s32.totalorder %s22, 1
      %p103 = scmp.ne.s32.totalorder %s98, %s100
      %p104 = scmp.eq.s32.totalorder %s22, 0
      %p105 = por %p103, %p104
      %p106 = scmp.ne.s32.totalorder %s98, %s100
      %p107 = scmp.eq.s32.totalorder %s27, 1
      %p108 = por %p106, %p107
      %p109 = scmp.ne.s32.totalorder %s100, %s101
      %p110 = scmp.eq.s32.totalorder %s27, 0
      %p111 = por %p109, %p110
      %p112 = scmp.ne.s32.totalorder %s100, %s101
      %p113 = scmp.eq.s32.totalorder %s28, 1
      %p114 = por %p112, %p113
      %p116 = scmp.ne.s32.totalorder %s101, %s115
      %p117 = scmp.eq.s32.totalorder %s28, 0
      %p118 = por %p116, %p117
      %s120 = sadd.s32 %s119, 1
      %p123 = scmp.eq.s32.totalorder %s22, 1
      %p124 = scmp.ne.s32.totalorder %s119, %s121
      %p125 = scmp.eq.s32.totalorder %s22, 0
      %p126 = por %p124, %p125
      %p127 = scmp.ne.s32.totalorder %s119, %s121
      %p128 = scmp.eq.s32.totalorder %s27, 1
      %p129 = por %p127, %p128
      %p130 = scmp.ne.s32.totalorder %s121, %s122
      %p131 = scmp.eq.s32.totalorder %s27, 0
      %p132 = por %p130, %p131
      %p133 = scmp.ne.s32.totalorder %s121, %s122
      %p134 = scmp.eq.s32.totalorder %s28, 1
      %p135 = por %p133, %p134
      %p137 = scmp.ne.s32.totalorder %s122, %s136
      %p138 = scmp.eq.s32.totalorder %s28, 0
      %p139 = por %p137, %p138
      %s141 = sadd.s32 %s140, 1
      %p144 = scmp.eq.s32.totalorder %s22, 1
      %p145 = scmp.ne.s32.totalorder %s140, %s142
      %p146 = scmp.eq.s32.totalorder %s22, 0
      %p147 = por %p145, %p146
      %p148 = scmp.ne.s32.totalorder %s140, %s142
      %p149 = scmp.eq.s32.totalorder %s27, 1
      %p150 = por %p148, %p149
      %p151 = scmp.ne.s32.totalorder %s142, %s143
      %p152 = scmp.eq.s32.totalorder %s27, 0
      %p153 = por %p151, %p152
      %p154 = scmp.ne.s32.totalorder %s142, %s143
      %p155 = scmp.eq.s32.totalorder %s28, 1
      %p156 = por %p154, %p155
      %p158 = scmp.ne.s32.totalorder %s143, %s157
      %p159 = scmp.eq.s32.totalorder %s28, 0
      %p160 = por %p158, %p159
      %s162 = sadd.s32 %s161, 1
      %p165 = scmp.eq.s32.totalorder %s22, 1
      %p166 = scmp.ne.s32.totalorder %s161, %s163
      %p167 = scmp.eq.s32.totalorder %s22, 0
      %p168 = por %p166, %p167
      %p169 = scmp.ne.s32.totalorder %s161, %s163
      %p170 = scmp.eq.s32.totalorder %s27, 1
      %p171 = por %p169, %p170
      %p172 = scmp.ne.s32.totalorder %s163, %s164
      %p173 = scmp.eq.s32.totalorder %s27, 0
      %p174 = por %p172, %p173
      %p175 = scmp.ne.s32.totalorder %s163, %s164
      %p176 = scmp.eq.s32.totalorder %s28, 1
      %p177 = por %p175, %p176
      %p179 = scmp.ne.s32.totalorder %s164, %s178
      %p180 = scmp.eq.s32.totalorder %s28, 0
      %p181 = por %p179, %p180
      %s183 = sadd.s32 %s182, 1
      %p186 = scmp.eq.s32.totalorder %s22, 1
      %p187 = scmp.ne.s32.totalorder %s182, %s184
      %p188 = scmp.eq.s32.totalorder %s22, 0
      %p189 = por %p187, %p188
      %p190 = scmp.ne.s32.totalorder %s182, %s184
      %p191 = scmp.eq.s32.totalorder %s27, 1
      %p192 = por %p190, %p191
      %p193 = scmp.ne.s32.totalorder %s184, %s185
      %p194 = scmp.eq.s32.totalorder %s27, 0
      %p195 = por %p193, %p194
      %p196 = scmp.ne.s32.totalorder %s184, %s185
      %p197 = scmp.eq.s32.totalorder %s28, 1
      %p198 = por %p196, %p197
      %p200 = scmp.ne.s32.totalorder %s185, %s199
      %p201 = scmp.eq.s32.totalorder %s28, 0
      %p202 = por %p200, %p201
      %s204 = sadd.s32 %s203, 1
      %p207 = scmp.eq.s32.totalorder %s22, 1
      %p208 = scmp.ne.s32.totalorder %s203, %s205
      %p209 = scmp.eq.s32.totalorder %s22, 0
      %p210 = por %p208, %p209
      %p211 = scmp.ne.s32.totalorder %s203, %s205
      %p212 = scmp.eq.s32.totalorder %s27, 1
      %p213 = por %p211, %p212
      %p214 = scmp.ne.s32.totalorder %s205, %s206
      %p215 = scmp.eq.s32.totalorder %s27, 0
      %p216 = por %p214, %p215
      %p217 = scmp.ne.s32.totalorder %s205, %s206
      %p218 = scmp.eq.s32.totalorder %s28, 1
      %p219 = por %p217, %p218
      %p221 = scmp.ne.s32.totalorder %s206, %s220
      %p222 = scmp.eq.s32.totalorder %s28, 0
      %p223 = por %p221, %p222
      %s225 = sadd.s32 %s224, 1
      %p228 = scmp.eq.s32.totalorder %s22, 1
      %p229 = scmp.ne.s32.totalorder %s224, %s226
      %p230 = scmp.eq.s32.totalorder %s22, 0
      %p231 = por %p229, %p230
      %p232 = scmp.ne.s32.totalorder %s224, %s226
      %p233 = scmp.eq.s32.totalorder %s27, 1
      %p234 = por %p232, %p233
      %p235 = scmp.ne.s32.totalorder %s226, %s227
      %p236 = scmp.eq.s32.totalorder %s27, 0
      %p237 = por %p235, %p236
      %p238 = scmp.ne.s32.totalorder %s226, %s227
      %p239 = scmp.eq.s32.totalorder %s28, 1
      %p240 = por %p238, %p239
      %p242 = scmp.ne.s32.totalorder %s227, %s241
      %p243 = scmp.eq.s32.totalorder %s28, 0
      %p244 = por %p242, %p243
      %s245 = ssub.s32 %s22, %s29
      %p246 = scmp.eq.s32.totalorder %s245, 0
      %s248 = sadd.s32 %s247, 1
      %s249 = scalar_select %p246, %s247, %s248
      %p252 = pneg %p246
      %p253 = scmp.eq.s32.totalorder %s22, 1
      %p254 = por %p252, %p253
      %p255 = scmp.ne.s32.totalorder %s247, %s250
      %p256 = scmp.eq.s32.totalorder %s22, 0
      %p257 = por %p255, %p256
      %p258 = scmp.ne.s32.totalorder %s247, %s250
      %p259 = scmp.eq.s32.totalorder %s27, 1
      %p260 = por %p258, %p259
      %p261 = scmp.ne.s32.totalorder %s250, %s251
      %p262 = scmp.eq.s32.totalorder %s27, 0
      %p263 = por %p261, %p262
      %p264 = scmp.ne.s32.totalorder %s250, %s251
      %p265 = scmp.eq.s32.totalorder %s28, 1
      %p266 = por %p264, %p265
      %p268 = scmp.ne.s32.totalorder %s251, %s267
      %p269 = scmp.eq.s32.totalorder %s28, 0
      %p270 = por %p268, %p269
      %p271 = scmp.le.s32.totalorder 1, %s22
      %p272 = scmp.lt.s32.totalorder %s22, 3
      %p273 = pnand %p271, %p272
      %p274 = pneg %p273
      // Predicated region
      $region9: #{tpu_custom_call.1} parent=5 // pred_check
        _
      $region10: #{tpu_custom_call.1} parent=5 // pred_check_branch
        %276 = sbr.rel (%p273) target = $region12
      $region11: #{tpu_custom_call.1} parent=5 // pred_region
        %s277 = ssub.s32 %s22, 1
        // Predicated region
        $region13: #{tpu_custom_call.1} parent=11 // pred_check
          %p278 = pneg %p69
        $region14: #{tpu_custom_call.1} parent=11 // pred_check_branch
          %280 = sbr.rel (%p278) target = $region16
        $region15: #{tpu_custom_call.1} parent=11 // pred_region
          _
        $region16: #{tpu_custom_call.1} parent=11 // pred_fallthru
          _
        // Predicated region
        $region17: #{tpu_custom_call.1} parent=11 // pred_check
          %p281 = pneg %p90
        $region18: #{tpu_custom_call.1} parent=11 // pred_check_branch
          %283 = sbr.rel (%p281) target = $region20
        $region19: #{tpu_custom_call.1} parent=11 // pred_region
          _
        $region20: #{tpu_custom_call.1} parent=11 // pred_fallthru
          _
        // Predicated region
        $region21: #{tpu_custom_call.1} parent=11 // pred_check
          %p284 = pneg %p111
        $region22: #{tpu_custom_call.1} parent=11 // pred_check_branch
          %286 = sbr.rel (%p284) target = $region24
        $region23: #{tpu_custom_call.1} parent=11 // pred_region
          _
        $region24: #{tpu_custom_call.1} parent=11 // pred_fallthru
          _
        // Predicated region
        $region25: #{tpu_custom_call.1} parent=11 // pred_check
          %p287 = pneg %p132
        $region26: #{tpu_custom_call.1} parent=11 // pred_check_branch
          %289 = sbr.rel (%p287) target = $region28
        $region27: #{tpu_custom_call.1} parent=11 // pred_region
          _
        $region28: #{tpu_custom_call.1} parent=11 // pred_fallthru
          _
        // Predicated region
        $region29: #{tpu_custom_call.1} parent=11 // pred_check
          %p290 = pneg %p153
        $region30: #{tpu_custom_call.1} parent=11 // pred_check_branch
          %292 = sbr.rel (%p290) target = $region32
        $region31: #{tpu_custom_call.1} parent=11 // pred_region
          _
        $region32: #{tpu_custom_call.1} parent=11 // pred_fallthru
          _
        // Predicated region
        $region33: #{tpu_custom_call.1} parent=11 // pred_check
          %p293 = pneg %p174
        $region34: #{tpu_custom_call.1} parent=11 // pred_check_branch
          %295 = sbr.rel (%p293) target = $region36
        $region35: #{tpu_custom_call.1} parent=11 // pred_region
          _
        $region36: #{tpu_custom_call.1} parent=11 // pred_fallthru
          _
        // Predicated region
        $region37: #{tpu_custom_call.1} parent=11 // pred_check
          %p296 = pneg %p195
        $region38: #{tpu_custom_call.1} parent=11 // pred_check_branch
          %298 = sbr.rel (%p296) target = $region40
        $region39: #{tpu_custom_call.1} parent=11 // pred_region
          _
        $region40: #{tpu_custom_call.1} parent=11 // pred_fallthru
          _
        // Predicated region
        $region41: #{tpu_custom_call.1} parent=11 // pred_check
          %p299 = pneg %p216
        $region42: #{tpu_custom_call.1} parent=11 // pred_check_branch
          %301 = sbr.rel (%p299) target = $region44
        $region43: #{tpu_custom_call.1} parent=11 // pred_region
          _
        $region44: #{tpu_custom_call.1} parent=11 // pred_fallthru
          _
        // Predicated region
        $region45: #{tpu_custom_call.1} parent=11 // pred_check
          %p302 = pneg %p237
        $region46: #{tpu_custom_call.1} parent=11 // pred_check_branch
          %304 = sbr.rel (%p302) target = $region48
        $region47: #{tpu_custom_call.1} parent=11 // pred_region
          _
        $region48: #{tpu_custom_call.1} parent=11 // pred_fallthru
          _
      $region12: #{tpu_custom_call.1} parent=5 // pred_fallthru
        _
      %p305 = scmp.lt.s32.totalorder %s22, 2
      // Predicated region
      $region49: #{tpu_custom_call.1} parent=5 // pred_check
        %p306 = pneg %p305
      $region50: #{tpu_custom_call.1} parent=5 // pred_check_branch
        %308 = sbr.rel (%p306) target = $region52
      $region51: #{tpu_custom_call.1} parent=5 // pred_region
        // Predicated region
        $region53: #{tpu_custom_call.1} parent=51 // pred_check
          %p309 = pneg %p42
        $region54: #{tpu_custom_call.1} parent=51 // pred_check_branch
          %311 = sbr.rel (%p309) target = $region56
        $region55: #{tpu_custom_call.1} parent=51 // pred_region
          %s312 = sand.u32 %s32, 1
          %s313 = scalar_lea.sflag [#allocation3], %s312
          %s314 = sand.u32 %s32, 1
          %s315 = smul.addr %s314, 16
          %s316 = scalar_lea.vmem [#allocation2], %s315
          %s317 = smul.u32 2, %s22
          %s319 = ssub.s32 256, 256
          %320 = vsyncadd %s313, %s319
          %s321 = smul.addr %s317, 2
          %s322 = smul.addr %s321, 64
          %s323 = scalar_lea.hbm %s0, %s322
          %s324 = sshll.u32 %s316, 4
          %s325 = int_to_ptr.vmem [resolvable:$true] %s324
          %330 = dma.hbm_to_vmem [thread:$0]  %s323, 256, %s325, %s313, 64, 64, 4
        $region56: #{tpu_custom_call.1} parent=51 // pred_fallthru
          _
      $region52: #{tpu_custom_call.1} parent=5 // pred_fallthru
        _
      %p331 = scmp.le.s32.totalorder 1, %s22
      %p332 = scmp.lt.s32.totalorder %s22, 3
      %p333 = pnand %p331, %p332
      %p334 = pneg %p333
      // Predicated region
      $region57: #{tpu_custom_call.1} parent=5 // pred_check
        _
      $region58: #{tpu_custom_call.1} parent=5 // pred_check_branch
        %336 = sbr.rel (%p333) target = $region60
      $region59: #{tpu_custom_call.1} parent=5 // pred_region
        %s337 = ssub.s32 %s22, 1
        %s338 = sand.u32 %s35, 1
        %s339 = scalar_lea.sflag [#allocation3], %s338
        %s340 = sand.u32 %s35, 1
        %s341 = smul.addr %s340, 16
        %s342 = scalar_lea.vmem [#allocation2], %s341
        // Predicated region
        $region61: #{tpu_custom_call.1} parent=59 // pred_check
          %p343 = pneg %p48
        $region62: #{tpu_custom_call.1} parent=59 // pred_check_branch
          %345 = sbr.rel (%p343) target = $region64
        $region63: #{tpu_custom_call.1} parent=59 // pred_region
          %346 = dma.done %s339, 256
        $region64: #{tpu_custom_call.1} parent=59 // pred_fallthru
          _
        %s347 = sand.u32 %s35, 1
        %s348 = scalar_lea.sflag [#allocation3], %s347
        %s349 = sand.u32 %s35, 1
        %s350 = smul.addr %s349, 16
        %s351 = scalar_lea.vmem [#allocation2], %s350
        %p352 = pneg %p48
        %p353 = pneg %p45
        %p354 = pneg %p69
        %p355 = pneg %p66
        %p356 = pneg %p90
        %p357 = pneg %p87
        %p358 = pneg %p111
        %p359 = pneg %p108
        %p360 = pneg %p132
        %p361 = pneg %p129
        %p362 = pneg %p153
        %p363 = pneg %p150
        %p364 = pneg %p174
        %p365 = pneg %p171
        %p366 = pneg %p195
        %p367 = pneg %p192
        %p368 = pneg %p216
        %p369 = pneg %p213
        %p370 = pneg %p237
        %p371 = pneg %p234
        %p372 = pneg %p263
        %p373 = pneg %p260
        %s374 = sand.u32 %s250, 1
        %s375 = scalar_lea.sflag [#allocation4], %s374
        %s376 = sand.u32 %s250, 1
        %s377 = smul.addr %s376, 16
        %s378 = scalar_lea.vmem [#allocation5], %s377
        %s379 = smul.u32 2, %s27
        %s380 = smul.u32 2, %s27
        %v383 = vld [vmem:[%s342] sm:$0xf]
        %v384 = vld [vmem:[%s342 + $0x4] sm:$0xf]
        %v387 = vunpack.c.l.b16 %v383
        %v388 = vunpack.c.l.b16 %v384
        %v389 = vpack.c.b16 %v388, %v387
        %391 = vxpose.xlu0.c.b16.start [1/8] %v389, 128
        %392 = vxpose.xlu0.c.b16.cont [2/8] 0, 128
        %393 = vxpose.xlu0.c.b16.cont [3/8] 0, 128
        %394 = vxpose.xlu0.c.b16.cont [4/8] 0, 128
        %395 = vxpose.xlu0.c.b16.cont [5/8] 0, 128
        %396 = vxpose.xlu0.c.b16.cont [6/8] 0, 128
        %397 = vxpose.xlu0.c.b16.cont [7/8] 0, 128
        %398 = vxpose.xlu0.c.b16.end [8/8] 0, 128
        %v399 = vpop.trf.xlu0
        %v400 = vpop.trf.xlu0
        %v401 = vpop.trf.xlu0
        %v402 = vpop.trf.xlu0
        %v403 = vpop.trf.xlu0
        %v404 = vpop.trf.xlu0
        %v405 = vpop.trf.xlu0
        %v406 = vpop.trf.xlu0
        %s407 = scalar_lea.vmem %s342, 8 [#allocation2]
        %v408 = vld [vmem:[%s407] sm:$0xf]
        %v409 = vld [vmem:[%s407 + $0x4] sm:$0xf]
        %v412 = vunpack.c.l.b16 %v408
        %v413 = vunpack.c.l.b16 %v409
        %v414 = vpack.c.b16 %v413, %v412
        %416 = vxpose.xlu0.c.b16.start [1/8] %v414, 128
        %417 = vxpose.xlu0.c.b16.cont [2/8] 0, 128
        %418 = vxpose.xlu0.c.b16.cont [3/8] 0, 128
        %419 = vxpose.xlu0.c.b16.cont [4/8] 0, 128
        %420 = vxpose.xlu0.c.b16.cont [5/8] 0, 128
        %421 = vxpose.xlu0.c.b16.cont [6/8] 0, 128
        %422 = vxpose.xlu0.c.b16.cont [7/8] 0, 128
        %423 = vxpose.xlu0.c.b16.end [8/8] 0, 128
        %v424 = vpop.trf.xlu0
        %v425 = vpop.trf.xlu0
        %v426 = vpop.trf.xlu0
        %v427 = vpop.trf.xlu0
        %v428 = vpop.trf.xlu0
        %v429 = vpop.trf.xlu0
        %v430 = vpop.trf.xlu0
        %v431 = vpop.trf.xlu0
        %v432 = vld [vmem:[%s1] sm:$0xf]
        %v433 = vld [vmem:[%s1 + $0x4] sm:$0xf]
        %v434 = vld [vmem:[%s2] sm:$0x1]
        %v436 = vlaneseq
        %v437 = vshrl.u32 %v436, 7
        %v438 = vsub.s32 0, %v437
        %v439 = vrot.slane %v434, %v438
        %v443 = vunpack.c.l.b16 %v432
        %v444 = vunpack.c.l.b16 %v433
        %v445 = vpack.c.b16 %v444, %v443
        %vm447 = vcmask 130048
        %v449 = vsel %vm447, %v399, 0
        %v452 = vsel %vm447, %v400, 0
        %v455 = vsel %vm447, %v401, 0
        %v458 = vsel %vm447, %v402, 0
        %v461 = vsel %vm447, %v403, 0
        %v464 = vsel %vm447, %v404, 0
        %v467 = vsel %vm447, %v405, 0
        %v470 = vsel %vm447, %v406, 0
        %v473 = vsel %vm447, %v424, 0
        %v476 = vsel %vm447, %v425, 0
        %v479 = vsel %vm447, %v426, 0
        %v482 = vsel %vm447, %v427, 0
        %v485 = vsel %vm447, %v428, 0
        %v488 = vsel %vm447, %v429, 0
        %v491 = vsel %vm447, %v430, 0
        %v494 = vsel %vm447, %v431, 0
        %496 = vmatprep.subr.bf16.mxu0 0
        %497 = vmatpush1.bf16.msra.mxu0 %v445
        %498 = vmatprep.subr.bf16.mxu0 0
        %499 = vmatpush1.bf16.msra.mxu0 0
        %500 = vmatprep.subr.bf16.mxu0 0
        %501 = vmatpush1.bf16.msra.mxu0 0
        %502 = vmatprep.subr.bf16.mxu0 0
        %503 = vmatpush1.bf16.msra.mxu0 0
        %504 = vmatprep.subr.bf16.mxu0 0
        %505 = vmatpush1.bf16.msra.mxu0 0
        %506 = vmatprep.subr.bf16.mxu0 0
        %507 = vmatpush1.bf16.msra.mxu0 0
        %508 = vmatprep.subr.bf16.mxu0 0
        %509 = vmatpush1.bf16.msra.mxu0 0
        %510 = vmatprep.subr.bf16.mxu0 0
        %511 = vmatpush1.bf16.msra.mxu0 0
        %512 = vmatprep.subr.bf16.mxu0 0
        %513 = vmatpush1.bf16.msra.mxu0 0
        %514 = vmatprep.subr.bf16.mxu0 0
        %515 = vmatpush1.bf16.msra.mxu0 0
        %516 = vmatprep.subr.bf16.mxu0 0
        %517 = vmatpush1.bf16.msra.mxu0 0
        %518 = vmatprep.subr.bf16.mxu0 0
        %519 = vmatpush1.bf16.msra.mxu0 0
        %520 = vmatprep.subr.bf16.mxu0 0
        %521 = vmatpush1.bf16.msra.mxu0 0
        %522 = vmatprep.subr.bf16.mxu0 0
        %523 = vmatpush1.bf16.msra.mxu0 0
        %524 = vmatprep.subr.bf16.mxu0 0
        %525 = vmatpush1.bf16.msra.mxu0 0
        %526 = vmatprep.subr.bf16.mxu0 0
        %527 = vmatpush1.bf16.msra.mxu0 0
        %528 = vmatprep.mubr.bf16.mxu0 0
        %529 = vmatmul.mubr.bf16.gmra.mrb[0].mxu0 %v449
        %v530 = vpop.f32.mrb[0].mxu0
        %v531 = vadd.f32 %v439, %v530
        %v532 = vpop.f32.mrb[0].mxu0
        %v533 = vpop.f32.mrb[0].mxu0
        %v534 = vadd.f32 %v439, %v533
        %v535 = vpop.f32.mrb[0].mxu0
        %536 = vmatprep.mubr.bf16.mxu0 0
        %537 = vmatmul.mubr.bf16.gmra.mrb[0].mxu0 %v452
        %v538 = vpop.f32.mrb[0].mxu0
        %v539 = vadd.f32 %v439, %v538
        %v540 = vpop.f32.mrb[0].mxu0
        %v541 = vpop.f32.mrb[0].mxu0
        %v542 = vadd.f32 %v439, %v541
        %v543 = vpop.f32.mrb[0].mxu0
        %544 = vmatprep.mubr.bf16.mxu0 0
        %545 = vmatmul.mubr.bf16.gmra.mrb[0].mxu0 %v455
        %v546 = vpop.f32.mrb[0].mxu0
        %v547 = vadd.f32 %v439, %v546
        %v548 = vpop.f32.mrb[0].mxu0
        %v549 = vpop.f32.mrb[0].mxu0
        %v550 = vadd.f32 %v439, %v549
        %v551 = vpop.f32.mrb[0].mxu0
        %552 = vmatprep.mubr.bf16.mxu0 0
        %553 = vmatmul.mubr.bf16.gmra.mrb[0].mxu0 %v458
        %v554 = vpop.f32.mrb[0].mxu0
        %v555 = vadd.f32 %v439, %v554
        %v556 = vpop.f32.mrb[0].mxu0
        %v557 = vpop.f32.mrb[0].mxu0
        %v558 = vadd.f32 %v439, %v557
        %v559 = vpop.f32.mrb[0].mxu0
        %560 = vmatprep.mubr.bf16.mxu0 0
        %561 = vmatmul.mubr.bf16.gmra.mrb[0].mxu0 %v461
        %v562 = vpop.f32.mrb[0].mxu0
        %v563 = vadd.f32 %v439, %v562
        %v564 = vpop.f32.mrb[0].mxu0
        %v565 = vpop.f32.mrb[0].mxu0
        %v566 = vadd.f32 %v439, %v565
        %v567 = vpop.f32.mrb[0].mxu0
        %568 = vmatprep.mubr.bf16.mxu0 0
        %569 = vmatmul.mubr.bf16.gmra.mrb[0].mxu0 %v464
        %v570 = vpop.f32.mrb[0].mxu0
        %v571 = vadd.f32 %v439, %v570
        %v572 = vpop.f32.mrb[0].mxu0
        %v573 = vpop.f32.mrb[0].mxu0
        %v574 = vadd.f32 %v439, %v573
        %v575 = vpop.f32.mrb[0].mxu0
        %576 = vmatprep.mubr.bf16.mxu0 0
        %577 = vmatmul.mubr.bf16.gmra.mrb[0].mxu0 %v467
        %v578 = vpop.f32.mrb[0].mxu0
        %v579 = vadd.f32 %v439, %v578
        %v580 = vpop.f32.mrb[0].mxu0
        %v581 = vpop.f32.mrb[0].mxu0
        %v582 = vadd.f32 %v439, %v581
        %v583 = vpop.f32.mrb[0].mxu0
        %584 = vmatprep.mubr.bf16.mxu0 0
        %585 = vmatmul.mubr.bf16.gmra.mrb[0].mxu0 %v470
        %v586 = vpop.f32.mrb[0].mxu0
        %v587 = vadd.f32 %v439, %v586
        %v588 = vpop.f32.mrb[0].mxu0
        %v589 = vpop.f32.mrb[0].mxu0
        %v590 = vadd.f32 %v439, %v589
        %v591 = vpop.f32.mrb[0].mxu0
        %592 = vmatprep.mubr.bf16.mxu0 0
        %593 = vmatmul.mubr.bf16.gmra.mrb[0].mxu0 %v473
        %v594 = vpop.f32.mrb[0].mxu0
        %v595 = vadd.f32 %v439, %v594
        %v596 = vpop.f32.mrb[0].mxu0
        %v597 = vpop.f32.mrb[0].mxu0
        %v598 = vadd.f32 %v439, %v597
        %v599 = vpop.f32.mrb[0].mxu0
        %600 = vmatprep.mubr.bf16.mxu0 0
        %601 = vmatmul.mubr.bf16.gmra.mrb[0].mxu0 %v476
        %v602 = vpop.f32.mrb[0].mxu0
        %v603 = vadd.f32 %v439, %v602
        %v604 = vpop.f32.mrb[0].mxu0
        %v605 = vpop.f32.mrb[0].mxu0
        %v606 = vadd.f32 %v439, %v605
        %v607 = vpop.f32.mrb[0].mxu0
        %608 = vmatprep.mubr.bf16.mxu0 0
        %609 = vmatmul.mubr.bf16.gmra.mrb[0].mxu0 %v479
        %v610 = vpop.f32.mrb[0].mxu0
        %v611 = vadd.f32 %v439, %v610
        %v612 = vpop.f32.mrb[0].mxu0
        %v613 = vpop.f32.mrb[0].mxu0
        %v614 = vadd.f32 %v439, %v613
        %v615 = vpop.f32.mrb[0].mxu0
        %616 = vmatprep.mubr.bf16.mxu0 0
        %617 = vmatmul.mubr.bf16.gmra.mrb[0].mxu0 %v482
        %v618 = vpop.f32.mrb[0].mxu0
        %v619 = vadd.f32 %v439, %v618
        %v620 = vpop.f32.mrb[0].mxu0
        %v621 = vpop.f32.mrb[0].mxu0
        %v622 = vadd.f32 %v439, %v621
        %v623 = vpop.f32.mrb[0].mxu0
        %624 = vmatprep.mubr.bf16.mxu0 0
        %625 = vmatmul.mubr.bf16.gmra.mrb[0].mxu0 %v485
        %v626 = vpop.f32.mrb[0].mxu0
        %v627 = vadd.f32 %v439, %v626
        %v628 = vpop.f32.mrb[0].mxu0
        %v629 = vpop.f32.mrb[0].mxu0
        %v630 = vadd.f32 %v439, %v629
        %v631 = vpop.f32.mrb[0].mxu0
        %632 = vmatprep.mubr.bf16.mxu0 0
        %633 = vmatmul.mubr.bf16.gmra.mrb[0].mxu0 %v488
        %v634 = vpop.f32.mrb[0].mxu0
        %v635 = vadd.f32 %v439, %v634
        %v636 = vpop.f32.mrb[0].mxu0
        %v637 = vpop.f32.mrb[0].mxu0
        %v638 = vadd.f32 %v439, %v637
        %v639 = vpop.f32.mrb[0].mxu0
        %640 = vmatprep.mubr.bf16.mxu0 0
        %641 = vmatmul.mubr.bf16.gmra.mrb[0].mxu0 %v491
        %v642 = vpop.f32.mrb[0].mxu0
        %v643 = vadd.f32 %v439, %v642
        %v644 = vpop.f32.mrb[0].mxu0
        %v645 = vpop.f32.mrb[0].mxu0
        %v646 = vadd.f32 %v439, %v645
        %v647 = vpop.f32.mrb[0].mxu0
        %648 = vmatprep.mubr.bf16.mxu0 0
        %649 = vmatmul.mubr.bf16.gmra.mrb[0].mxu0 %v494
        %v650 = vpop.f32.mrb[0].mxu0
        %v651 = vadd.f32 %v439, %v650
        %v652 = vpop.f32.mrb[0].mxu0
        %v653 = vpop.f32.mrb[0].mxu0
        %v654 = vadd.f32 %v439, %v653
        %v655 = vpop.f32.mrb[0].mxu0
        %656 = vdwg.mxu0
        %v657 = vsel %vm447, %v531, 0.0
        %v658 = vsel %vm447, %v534, 0.0
        %v659 = vadd.f32 %v657, %v658
        %v660 = vsel %vm447, %v539, 0.0
        %v661 = vadd.f32 %v659, %v660
        %v662 = vsel %vm447, %v542, 0.0
        %v663 = vadd.f32 %v661, %v662
        %v664 = vsel %vm447, %v547, 0.0
        %v665 = vadd.f32 %v663, %v664
        %v666 = vsel %vm447, %v550, 0.0
        %v667 = vadd.f32 %v665, %v666
        %v668 = vsel %vm447, %v555, 0.0
        %v669 = vadd.f32 %v667, %v668
        %v670 = vsel %vm447, %v558, 0.0
        %v671 = vadd.f32 %v669, %v670
        %v672 = vsel %vm447, %v563, 0.0
        %v673 = vadd.f32 %v671, %v672
        %v674 = vsel %vm447, %v566, 0.0
        %v675 = vadd.f32 %v673, %v674
        %v676 = vsel %vm447, %v571, 0.0
        %v677 = vadd.f32 %v675, %v676
        %v678 = vsel %vm447, %v574, 0.0
        %v679 = vadd.f32 %v677, %v678
        %v680 = vsel %vm447, %v579, 0.0
        %v681 = vadd.f32 %v679, %v680
        %v682 = vsel %vm447, %v582, 0.0
        %v683 = vadd.f32 %v681, %v682
        %v684 = vsel %vm447, %v587, 0.0
        %v685 = vadd.f32 %v683, %v684
        %v686 = vsel %vm447, %v590, 0.0
        %v687 = vadd.f32 %v685, %v686
        %v688 = vrot.slane %v687, 4
        %v689 = vadd.f32 %v687, %v688
        %v690 = vrot.slane %v689, 2
        %v691 = vadd.f32 %v689, %v690
        %v692 = vrot.slane %v691, 1
        %v693 = vadd.f32 %v691, %v692
        %v694 = vsel %vm447, %v595, 0.0
        %v695 = vsel %vm447, %v598, 0.0
        %v696 = vadd.f32 %v694, %v695
        %v697 = vsel %vm447, %v603, 0.0
        %v698 = vadd.f32 %v696, %v697
        %v699 = vsel %vm447, %v606, 0.0
        %v700 = vadd.f32 %v698, %v699
        %v701 = vsel %vm447, %v611, 0.0
        %v702 = vadd.f32 %v700, %v701
        %v703 = vsel %vm447, %v614, 0.0
        %v704 = vadd.f32 %v702, %v703
        %v705 = vsel %vm447, %v619, 0.0
        %v706 = vadd.f32 %v704, %v705
        %v707 = vsel %vm447, %v622, 0.0
        %v708 = vadd.f32 %v706, %v707
        %v709 = vsel %vm447, %v627, 0.0
        %v710 = vadd.f32 %v708, %v709
        %v711 = vsel %vm447, %v630, 0.0
        %v712 = vadd.f32 %v710, %v711
        %v713 = vsel %vm447, %v635, 0.0
        %v714 = vadd.f32 %v712, %v713
        %v715 = vsel %vm447, %v638, 0.0
        %v716 = vadd.f32 %v714, %v715
        %v717 = vsel %vm447, %v643, 0.0
        %v718 = vadd.f32 %v716, %v717
        %v719 = vsel %vm447, %v646, 0.0
        %v720 = vadd.f32 %v718, %v719
        %v721 = vsel %vm447, %v651, 0.0
        %v722 = vadd.f32 %v720, %v721
        %v723 = vsel %vm447, %v654, 0.0
        %v724 = vadd.f32 %v722, %v723
        %v725 = vrot.slane %v724, 4
        %v726 = vadd.f32 %v724, %v725
        %v727 = vrot.slane %v726, 2
        %v728 = vadd.f32 %v726, %v727
        %v729 = vrot.slane %v728, 1
        %v730 = vadd.f32 %v728, %v729
        %v731 = vrcp.pop 128.0
        %v732 = vmul.f32 %v693, %v731
        %v733 = vmul.f32 %v730, %v731
        %v734 = vsub.f32 %v531, %v732
        %v735 = vsub.f32 %v534, %v732
        %v736 = vsub.f32 %v539, %v732
        %v737 = vsub.f32 %v542, %v732
        %v738 = vsub.f32 %v547, %v732
        %v739 = vsub.f32 %v550, %v732
        %v740 = vsub.f32 %v555, %v732
        %v741 = vsub.f32 %v558, %v732
        %v742 = vsub.f32 %v563, %v732
        %v743 = vsub.f32 %v566, %v732
        %v744 = vsub.f32 %v571, %v732
        %v745 = vsub.f32 %v574, %v732
        %v746 = vsub.f32 %v579, %v732
        %v747 = vsub.f32 %v582, %v732
        %v748 = vsub.f32 %v587, %v732
        %v749 = vsub.f32 %v590, %v732
        %v750 = vsub.f32 %v595, %v733
        %v751 = vsub.f32 %v598, %v733
        %v752 = vsub.f32 %v603, %v733
        %v753 = vsub.f32 %v606, %v733
        %v754 = vsub.f32 %v611, %v733
        %v755 = vsub.f32 %v614, %v733
        %v756 = vsub.f32 %v619, %v733
        %v757 = vsub.f32 %v622, %v733
        %v758 = vsub.f32 %v627, %v733
        %v759 = vsub.f32 %v630, %v733
        %v760 = vsub.f32 %v635, %v733
        %v761 = vsub.f32 %v638, %v733
        %v762 = vsub.f32 %v643, %v733
        %v763 = vsub.f32 %v646, %v733
        %v764 = vsub.f32 %v651, %v733
        %v765 = vsub.f32 %v654, %v733
        %v766 = vmul.f32 %v734, %v734
        %v767 = vmul.f32 %v735, %v735
        %v768 = vmul.f32 %v736, %v736
        %v769 = vmul.f32 %v737, %v737
        %v770 = vmul.f32 %v738, %v738
        %v771 = vmul.f32 %v739, %v739
        %v772 = vmul.f32 %v740, %v740
        %v773 = vmul.f32 %v741, %v741
        %v774 = vmul.f32 %v742, %v742
        %v775 = vmul.f32 %v743, %v743
        %v776 = vmul.f32 %v744, %v744
        %v777 = vmul.f32 %v745, %v745
        %v778 = vmul.f32 %v746, %v746
        %v779 = vmul.f32 %v747, %v747
        %v780 = vmul.f32 %v748, %v748
        %v781 = vmul.f32 %v749, %v749
        %v782 = vmul.f32 %v750, %v750
        %v783 = vmul.f32 %v751, %v751
        %v784 = vmul.f32 %v752, %v752
        %v785 = vmul.f32 %v753, %v753
        %v786 = vmul.f32 %v754, %v754
        %v787 = vmul.f32 %v755, %v755
        %v788 = vmul.f32 %v756, %v756
        %v789 = vmul.f32 %v757, %v757
        %v790 = vmul.f32 %v758, %v758
        %v791 = vmul.f32 %v759, %v759
        %v792 = vmul.f32 %v760, %v760
        %v793 = vmul.f32 %v761, %v761
        %v794 = vmul.f32 %v762, %v762
        %v795 = vmul.f32 %v763, %v763
        %v796 = vmul.f32 %v764, %v764
        %v797 = vmul.f32 %v765, %v765
        %v798 = vsel %vm447, %v766, 0.0
        %v799 = vsel %vm447, %v767, 0.0
        %v800 = vadd.f32 %v798, %v799
        %v801 = vsel %vm447, %v768, 0.0
        %v802 = vadd.f32 %v800, %v801
        %v803 = vsel %vm447, %v769, 0.0
        %v804 = vadd.f32 %v802, %v803
        %v805 = vsel %vm447, %v770, 0.0
        %v806 = vadd.f32 %v804, %v805
        %v807 = vsel %vm447, %v771, 0.0
        %v808 = vadd.f32 %v806, %v807
        %v809 = vsel %vm447, %v772, 0.0
        %v810 = vadd.f32 %v808, %v809
        %v811 = vsel %vm447, %v773, 0.0
        %v812 = vadd.f32 %v810, %v811
        %v813 = vsel %vm447, %v774, 0.0
        %v814 = vadd.f32 %v812, %v813
        %v815 = vsel %vm447, %v775, 0.0
        %v816 = vadd.f32 %v814, %v815
        %v817 = vsel %vm447, %v776, 0.0
        %v818 = vadd.f32 %v816, %v817
        %v819 = vsel %vm447, %v777, 0.0
        %v820 = vadd.f32 %v818, %v819
        %v821 = vsel %vm447, %v778, 0.0
        %v822 = vadd.f32 %v820, %v821
        %v823 = vsel %vm447, %v779, 0.0
        %v824 = vadd.f32 %v822, %v823
        %v825 = vsel %vm447, %v780, 0.0
        %v826 = vadd.f32 %v824, %v825
        %v827 = vsel %vm447, %v781, 0.0
        %v828 = vadd.f32 %v826, %v827
        %v829 = vrot.slane %v828, 4
        %v830 = vadd.f32 %v828, %v829
        %v831 = vrot.slane %v830, 2
        %v832 = vadd.f32 %v830, %v831
        %v833 = vrot.slane %v832, 1
        %v834 = vadd.f32 %v832, %v833
        %v835 = vsel %vm447, %v782, 0.0
        %v836 = vsel %vm447, %v783, 0.0
        %v837 = vadd.f32 %v835, %v836
        %v838 = vsel %vm447, %v784, 0.0
        %v839 = vadd.f32 %v837, %v838
        %v840 = vsel %vm447, %v785, 0.0
        %v841 = vadd.f32 %v839, %v840
        %v842 = vsel %vm447, %v786, 0.0
        %v843 = vadd.f32 %v841, %v842
        %v844 = vsel %vm447, %v787, 0.0
        %v845 = vadd.f32 %v843, %v844
        %v846 = vsel %vm447, %v788, 0.0
        %v847 = vadd.f32 %v845, %v846
        %v848 = vsel %vm447, %v789, 0.0
        %v849 = vadd.f32 %v847, %v848
        %v850 = vsel %vm447, %v790, 0.0
        %v851 = vadd.f32 %v849, %v850
        %v852 = vsel %vm447, %v791, 0.0
        %v853 = vadd.f32 %v851, %v852
        %v854 = vsel %vm447, %v792, 0.0
        %v855 = vadd.f32 %v853, %v854
        %v856 = vsel %vm447, %v793, 0.0
        %v857 = vadd.f32 %v855, %v856
        %v858 = vsel %vm447, %v794, 0.0
        %v859 = vadd.f32 %v857, %v858
        %v860 = vsel %vm447, %v795, 0.0
        %v861 = vadd.f32 %v859, %v860
        %v862 = vsel %vm447, %v796, 0.0
        %v863 = vadd.f32 %v861, %v862
        %v864 = vsel %vm447, %v797, 0.0
        %v865 = vadd.f32 %v863, %v864
        %v866 = vrot.slane %v865, 4
        %v867 = vadd.f32 %v865, %v866
        %v868 = vrot.slane %v867, 2
        %v869 = vadd.f32 %v867, %v868
        %v870 = vrot.slane %v869, 1
        %v871 = vadd.f32 %v869, %v870
        %v872 = vmul.f32 %v834, %v731
        %v873 = vmul.f32 %v871, %v731
        %v874 = vadd.f32 %v872, 1e-05
        %v875 = vadd.f32 %v873, 1e-05
        %v876 = vrsqrt.pop %v874
        %v877 = vrsqrt.pop %v875
        %v878 = vmul.f32 %v734, %v876
        %v879 = vmul.f32 %v735, %v876
        %v880 = vmul.f32 %v736, %v876
        %v881 = vmul.f32 %v737, %v876
        %v882 = vmul.f32 %v738, %v876
        %v883 = vmul.f32 %v739, %v876
        %v884 = vmul.f32 %v740, %v876
        %v885 = vmul.f32 %v741, %v876
        %v886 = vmul.f32 %v742, %v876
        %v887 = vmul.f32 %v743, %v876
        %v888 = vmul.f32 %v744, %v876
        %v889 = vmul.f32 %v745, %v876
        %v890 = vmul.f32 %v746, %v876
        %v891 = vmul.f32 %v747, %v876
        %v892 = vmul.f32 %v748, %v876
        %v893 = vmul.f32 %v749, %v876
        %v894 = vmul.f32 %v750, %v877
        %v895 = vmul.f32 %v751, %v877
        %v896 = vmul.f32 %v752, %v877
        %v897 = vmul.f32 %v753, %v877
        %v898 = vmul.f32 %v754, %v877
        %v899 = vmul.f32 %v755, %v877
        %v900 = vmul.f32 %v756, %v877
        %v901 = vmul.f32 %v757, %v877
        %v902 = vmul.f32 %v758, %v877
        %v903 = vmul.f32 %v759, %v877
        %v904 = vmul.f32 %v760, %v877
        %v905 = vmul.f32 %v761, %v877
        %v906 = vmul.f32 %v762, %v877
        %v907 = vmul.f32 %v763, %v877
        %v908 = vmul.f32 %v764, %v877
        %v909 = vmul.f32 %v765, %v877
        %v910 = vmax.f32 %v878, 0.0
        %v911 = vmax.f32 %v879, 0.0
        %v912 = vmax.f32 %v880, 0.0
        %v913 = vmax.f32 %v881, 0.0
        %v914 = vmax.f32 %v882, 0.0
        %v915 = vmax.f32 %v883, 0.0
        %v916 = vmax.f32 %v884, 0.0
        %v917 = vmax.f32 %v885, 0.0
        %v918 = vmax.f32 %v886, 0.0
        %v919 = vmax.f32 %v887, 0.0
        %v920 = vmax.f32 %v888, 0.0
        %v921 = vmax.f32 %v889, 0.0
        %v922 = vmax.f32 %v890, 0.0
        %v923 = vmax.f32 %v891, 0.0
        %v924 = vmax.f32 %v892, 0.0
        %v925 = vmax.f32 %v893, 0.0
        %v926 = vmax.f32 %v894, 0.0
        %v927 = vmax.f32 %v895, 0.0
        %v928 = vmax.f32 %v896, 0.0
        %v929 = vmax.f32 %v897, 0.0
        %v930 = vmax.f32 %v898, 0.0
        %v931 = vmax.f32 %v899, 0.0
        %v932 = vmax.f32 %v900, 0.0
        %v933 = vmax.f32 %v901, 0.0
        %v934 = vmax.f32 %v902, 0.0
        %v935 = vmax.f32 %v903, 0.0
        %v936 = vmax.f32 %v904, 0.0
        %v937 = vmax.f32 %v905, 0.0
        %v938 = vmax.f32 %v906, 0.0
        %v939 = vmax.f32 %v907, 0.0
        %v940 = vmax.f32 %v908, 0.0
        %v941 = vmax.f32 %v909, 0.0
        %v942 = vpack.c.bf16 %v911, %v910
        %v943 = vpack.c.bf16 %v913, %v912
        %v944 = vpack.c.bf16 %v915, %v914
        %v945 = vpack.c.bf16 %v917, %v916
        %v946 = vpack.c.bf16 %v919, %v918
        %v947 = vpack.c.bf16 %v921, %v920
        %v948 = vpack.c.bf16 %v923, %v922
        %v949 = vpack.c.bf16 %v925, %v924
        %v950 = vpack.c.bf16 %v927, %v926
        %v951 = vpack.c.bf16 %v929, %v928
        %v952 = vpack.c.bf16 %v931, %v930
        %v953 = vpack.c.bf16 %v933, %v932
        %v954 = vpack.c.bf16 %v935, %v934
        %v955 = vpack.c.bf16 %v937, %v936
        %v956 = vpack.c.bf16 %v939, %v938
        %v957 = vpack.c.bf16 %v941, %v940
        %v958 = vld [vmem:[%s3] sm:$0xf]
        %v959 = vld [vmem:[%s3 + $0x4] sm:$0xf]
        %v960 = vld [vmem:[%s4] sm:$0x1]
        %v962 = vlaneseq
        %v963 = vshrl.u32 %v962, 7
        %v964 = vsub.s32 0, %v963
        %v965 = vrot.slane %v960, %v964
        %v969 = vunpack.c.l.b16 %v958
        %v970 = vunpack.c.l.b16 %v959
        %v971 = vpack.c.b16 %v970, %v969
        %v974 = vsel %vm447, %v942, 0
        %v977 = vsel %vm447, %v943, 0
        %v980 = vsel %vm447, %v944, 0
        %v983 = vsel %vm447, %v945, 0
        %v986 = vsel %vm447, %v946, 0
        %v989 = vsel %vm447, %v947, 0
        %v992 = vsel %vm447, %v948, 0
        %v995 = vsel %vm447, %v949, 0
        %v998 = vsel %vm447, %v950, 0
        %v1001 = vsel %vm447, %v951, 0
        %v1004 = vsel %vm447, %v952, 0
        %v1007 = vsel %vm447, %v953, 0
        %v1010 = vsel %vm447, %v954, 0
        %v1013 = vsel %vm447, %v955, 0
        %v1016 = vsel %vm447, %v956, 0
        %v1019 = vsel %vm447, %v957, 0
        %1021 = vmatprep.subr.bf16.mxu0 0
        %1022 = vmatpush1.bf16.msra.mxu0 %v971
        %1023 = vmatprep.subr.bf16.mxu0 0
        %1024 = vmatpush1.bf16.msra.mxu0 0
        %1025 = vmatprep.subr.bf16.mxu0 0
        %1026 = vmatpush1.bf16.msra.mxu0 0
        %1027 = vmatprep.subr.bf16.mxu0 0
        %1028 = vmatpush1.bf16.msra.mxu0 0
        %1029 = vmatprep.subr.bf16.mxu0 0
        %1030 = vmatpush1.bf16.msra.mxu0 0
        %1031 = vmatprep.subr.bf16.mxu0 0
        %1032 = vmatpush1.bf16.msra.mxu0 0
        %1033 = vmatprep.subr.bf16.mxu0 0
        %1034 = vmatpush1.bf16.msra.mxu0 0
        %1035 = vmatprep.subr.bf16.mxu0 0
        %1036 = vmatpush1.bf16.msra.mxu0 0
        %1037 = vmatprep.subr.bf16.mxu0 0
        %1038 = vmatpush1.bf16.msra.mxu0 0
        %1039 = vmatprep.subr.bf16.mxu0 0
        %1040 = vmatpush1.bf16.msra.mxu0 0
        %1041 = vmatprep.subr.bf16.mxu0 0
        %1042 = vmatpush1.bf16.msra.mxu0 0
        %1043 = vmatprep.subr.bf16.mxu0 0
        %1044 = vmatpush1.bf16.msra.mxu0 0
        %1045 = vmatprep.subr.bf16.mxu0 0
        %1046 = vmatpush1.bf16.msra.mxu0 0
        %1047 = vmatprep.subr.bf16.mxu0 0
        %1048 = vmatpush1.bf16.msra.mxu0 0
        %1049 = vmatprep.subr.bf16.mxu0 0
        %1050 = vmatpush1.bf16.msra.mxu0 0
        %1051 = vmatprep.subr.bf16.mxu0 0
        %1052 = vmatpush1.bf16.msra.mxu0 0
        %1053 = vmatprep.mubr.bf16.mxu0 0
        %1054 = vmatmul.mubr.bf16.gmra.mrb[0].mxu0 %v974
        %v1055 = vpop.f32.mrb[0].mxu0
        %v1056 = vadd.f32 %v965, %v1055
        %v1057 = vpop.f32.mrb[0].mxu0
        %v1058 = vpop.f32.mrb[0].mxu0
        %v1059 = vadd.f32 %v965, %v1058
        %v1060 = vpop.f32.mrb[0].mxu0
        %1061 = vmatprep.mubr.bf16.mxu0 0
        %1062 = vmatmul.mubr.bf16.gmra.mrb[0].mxu0 %v977
        %v1063 = vpop.f32.mrb[0].mxu0
        %v1064 = vadd.f32 %v965, %v1063
        %v1065 = vpop.f32.mrb[0].mxu0
        %v1066 = vpop.f32.mrb[0].mxu0
        %v1067 = vadd.f32 %v965, %v1066
        %v1068 = vpop.f32.mrb[0].mxu0
        %1069 = vmatprep.mubr.bf16.mxu0 0
        %1070 = vmatmul.mubr.bf16.gmra.mrb[0].mxu0 %v980
        %v1071 = vpop.f32.mrb[0].mxu0
        %v1072 = vadd.f32 %v965, %v1071
        %v1073 = vpop.f32.mrb[0].mxu0
        %v1074 = vpop.f32.mrb[0].mxu0
        %v1075 = vadd.f32 %v965, %v1074
        %v1076 = vpop.f32.mrb[0].mxu0
        %1077 = vmatprep.mubr.bf16.mxu0 0
        %1078 = vmatmul.mubr.bf16.gmra.mrb[0].mxu0 %v983
        %v1079 = vpop.f32.mrb[0].mxu0
        %v1080 = vadd.f32 %v965, %v1079
        %v1081 = vpop.f32.mrb[0].mxu0
        %v1082 = vpop.f32.mrb[0].mxu0
        %v1083 = vadd.f32 %v965, %v1082
        %v1084 = vpop.f32.mrb[0].mxu0
        %1085 = vmatprep.mubr.bf16.mxu0 0
        %1086 = vmatmul.mubr.bf16.gmra.mrb[0].mxu0 %v986
        %v1087 = vpop.f32.mrb[0].mxu0
        %v1088 = vadd.f32 %v965, %v1087
        %v1089 = vpop.f32.mrb[0].mxu0
        %v1090 = vpop.f32.mrb[0].mxu0
        %v1091 = vadd.f32 %v965, %v1090
        %v1092 = vpop.f32.mrb[0].mxu0
        %1093 = vmatprep.mubr.bf16.mxu0 0
        %1094 = vmatmul.mubr.bf16.gmra.mrb[0].mxu0 %v989
        %v1095 = vpop.f32.mrb[0].mxu0
        %v1096 = vadd.f32 %v965, %v1095
        %v1097 = vpop.f32.mrb[0].mxu0
        %v1098 = vpop.f32.mrb[0].mxu0
        %v1099 = vadd.f32 %v965, %v1098
        %v1100 = vpop.f32.mrb[0].mxu0
        %1101 = vmatprep.mubr.bf16.mxu0 0
        %1102 = vmatmul.mubr.bf16.gmra.mrb[0].mxu0 %v992
        %v1103 = vpop.f32.mrb[0].mxu0
        %v1104 = vadd.f32 %v965, %v1103
        %v1105 = vpop.f32.mrb[0].mxu0
        %v1106 = vpop.f32.mrb[0].mxu0
        %v1107 = vadd.f32 %v965, %v1106
        %v1108 = vpop.f32.mrb[0].mxu0
        %1109 = vmatprep.mubr.bf16.mxu0 0
        %1110 = vmatmul.mubr.bf16.gmra.mrb[0].mxu0 %v995
        %v1111 = vpop.f32.mrb[0].mxu0
        %v1112 = vadd.f32 %v965, %v1111
        %v1113 = vpop.f32.mrb[0].mxu0
        %v1114 = vpop.f32.mrb[0].mxu0
        %v1115 = vadd.f32 %v965, %v1114
        %v1116 = vpop.f32.mrb[0].mxu0
        %1117 = vmatprep.mubr.bf16.mxu0 0
        %1118 = vmatmul.mubr.bf16.gmra.mrb[0].mxu0 %v998
        %v1119 = vpop.f32.mrb[0].mxu0
        %v1120 = vadd.f32 %v965, %v1119
        %v1121 = vpop.f32.mrb[0].mxu0
        %v1122 = vpop.f32.mrb[0].mxu0
        %v1123 = vadd.f32 %v965, %v1122
        %v1124 = vpop.f32.mrb[0].mxu0
        %1125 = vmatprep.mubr.bf16.mxu0 0
        %1126 = vmatmul.mubr.bf16.gmra.mrb[0].mxu0 %v1001
        %v1127 = vpop.f32.mrb[0].mxu0
        %v1128 = vadd.f32 %v965, %v1127
        %v1129 = vpop.f32.mrb[0].mxu0
        %v1130 = vpop.f32.mrb[0].mxu0
        %v1131 = vadd.f32 %v965, %v1130
        %v1132 = vpop.f32.mrb[0].mxu0
        %1133 = vmatprep.mubr.bf16.mxu0 0
        %1134 = vmatmul.mubr.bf16.gmra.mrb[0].mxu0 %v1004
        %v1135 = vpop.f32.mrb[0].mxu0
        %v1136 = vadd.f32 %v965, %v1135
        %v1137 = vpop.f32.mrb[0].mxu0
        %v1138 = vpop.f32.mrb[0].mxu0
        %v1139 = vadd.f32 %v965, %v1138
        %v1140 = vpop.f32.mrb[0].mxu0
        %1141 = vmatprep.mubr.bf16.mxu0 0
        %1142 = vmatmul.mubr.bf16.gmra.mrb[0].mxu0 %v1007
        %v1143 = vpop.f32.mrb[0].mxu0
        %v1144 = vadd.f32 %v965, %v1143
        %v1145 = vpop.f32.mrb[0].mxu0
        %v1146 = vpop.f32.mrb[0].mxu0
        %v1147 = vadd.f32 %v965, %v1146
        %v1148 = vpop.f32.mrb[0].mxu0
        %1149 = vmatprep.mubr.bf16.mxu0 0
        %1150 = vmatmul.mubr.bf16.gmra.mrb[0].mxu0 %v1010
        %v1151 = vpop.f32.mrb[0].mxu0
        %v1152 = vadd.f32 %v965, %v1151
        %v1153 = vpop.f32.mrb[0].mxu0
        %v1154 = vpop.f32.mrb[0].mxu0
        %v1155 = vadd.f32 %v965, %v1154
        %v1156 = vpop.f32.mrb[0].mxu0
        %1157 = vmatprep.mubr.bf16.mxu0 0
        %1158 = vmatmul.mubr.bf16.gmra.mrb[0].mxu0 %v1013
        %v1159 = vpop.f32.mrb[0].mxu0
        %v1160 = vadd.f32 %v965, %v1159
        %v1161 = vpop.f32.mrb[0].mxu0
        %v1162 = vpop.f32.mrb[0].mxu0
        %v1163 = vadd.f32 %v965, %v1162
        %v1164 = vpop.f32.mrb[0].mxu0
        %1165 = vmatprep.mubr.bf16.mxu0 0
        %1166 = vmatmul.mubr.bf16.gmra.mrb[0].mxu0 %v1016
        %v1167 = vpop.f32.mrb[0].mxu0
        %v1168 = vadd.f32 %v965, %v1167
        %v1169 = vpop.f32.mrb[0].mxu0
        %v1170 = vpop.f32.mrb[0].mxu0
        %v1171 = vadd.f32 %v965, %v1170
        %v1172 = vpop.f32.mrb[0].mxu0
        %1173 = vmatprep.mubr.bf16.mxu0 0
        %1174 = vmatmul.mubr.bf16.gmra.mrb[0].mxu0 %v1019
        %v1175 = vpop.f32.mrb[0].mxu0
        %v1176 = vadd.f32 %v965, %v1175
        %v1177 = vpop.f32.mrb[0].mxu0
        %v1178 = vpop.f32.mrb[0].mxu0
        %v1179 = vadd.f32 %v965, %v1178
        %v1180 = vpop.f32.mrb[0].mxu0
        %1181 = vdwg.mxu0
        %v1182 = vsel %vm447, %v1056, -inf
        %v1183 = vrot.slane %v1182, 4
        %v1184 = vmax.f32 %v1182, %v1183
        %v1185 = vrot.slane %v1184, 2
        %v1186 = vmax.f32 %v1184, %v1185
        %v1187 = vrot.slane %v1186, 1
        %v1188 = vmax.f32 %v1186, %v1187
        %v1189 = vsel %vm447, %v1059, -inf
        %v1190 = vrot.slane %v1189, 4
        %v1191 = vmax.f32 %v1189, %v1190
        %v1192 = vrot.slane %v1191, 2
        %v1193 = vmax.f32 %v1191, %v1192
        %v1194 = vrot.slane %v1193, 1
        %v1195 = vmax.f32 %v1193, %v1194
        %v1196 = vsel %vm447, %v1064, -inf
        %v1197 = vrot.slane %v1196, 4
        %v1198 = vmax.f32 %v1196, %v1197
        %v1199 = vrot.slane %v1198, 2
        %v1200 = vmax.f32 %v1198, %v1199
        %v1201 = vrot.slane %v1200, 1
        %v1202 = vmax.f32 %v1200, %v1201
        %v1203 = vsel %vm447, %v1067, -inf
        %v1204 = vrot.slane %v1203, 4
        %v1205 = vmax.f32 %v1203, %v1204
        %v1206 = vrot.slane %v1205, 2
        %v1207 = vmax.f32 %v1205, %v1206
        %v1208 = vrot.slane %v1207, 1
        %v1209 = vmax.f32 %v1207, %v1208
        %v1210 = vsel %vm447, %v1072, -inf
        %v1211 = vrot.slane %v1210, 4
        %v1212 = vmax.f32 %v1210, %v1211
        %v1213 = vrot.slane %v1212, 2
        %v1214 = vmax.f32 %v1212, %v1213
        %v1215 = vrot.slane %v1214, 1
        %v1216 = vmax.f32 %v1214, %v1215
        %v1217 = vsel %vm447, %v1075, -inf
        %v1218 = vrot.slane %v1217, 4
        %v1219 = vmax.f32 %v1217, %v1218
        %v1220 = vrot.slane %v1219, 2
        %v1221 = vmax.f32 %v1219, %v1220
        %v1222 = vrot.slane %v1221, 1
        %v1223 = vmax.f32 %v1221, %v1222
        %v1224 = vsel %vm447, %v1080, -inf
        %v1225 = vrot.slane %v1224, 4
        %v1226 = vmax.f32 %v1224, %v1225
        %v1227 = vrot.slane %v1226, 2
        %v1228 = vmax.f32 %v1226, %v1227
        %v1229 = vrot.slane %v1228, 1
        %v1230 = vmax.f32 %v1228, %v1229
        %v1231 = vsel %vm447, %v1083, -inf
        %v1232 = vrot.slane %v1231, 4
        %v1233 = vmax.f32 %v1231, %v1232
        %v1234 = vrot.slane %v1233, 2
        %v1235 = vmax.f32 %v1233, %v1234
        %v1236 = vrot.slane %v1235, 1
        %v1237 = vmax.f32 %v1235, %v1236
        %v1238 = vsel %vm447, %v1088, -inf
        %v1239 = vrot.slane %v1238, 4
        %v1240 = vmax.f32 %v1238, %v1239
        %v1241 = vrot.slane %v1240, 2
        %v1242 = vmax.f32 %v1240, %v1241
        %v1243 = vrot.slane %v1242, 1
        %v1244 = vmax.f32 %v1242, %v1243
        %v1245 = vsel %vm447, %v1091, -inf
        %v1246 = vrot.slane %v1245, 4
        %v1247 = vmax.f32 %v1245, %v1246
        %v1248 = vrot.slane %v1247, 2
        %v1249 = vmax.f32 %v1247, %v1248
        %v1250 = vrot.slane %v1249, 1
        %v1251 = vmax.f32 %v1249, %v1250
        %v1252 = vsel %vm447, %v1096, -inf
        %v1253 = vrot.slane %v1252, 4
        %v1254 = vmax.f32 %v1252, %v1253
        %v1255 = vrot.slane %v1254, 2
        %v1256 = vmax.f32 %v1254, %v1255
        %v1257 = vrot.slane %v1256, 1
        %v1258 = vmax.f32 %v1256, %v1257
        %v1259 = vsel %vm447, %v1099, -inf
        %v1260 = vrot.slane %v1259, 4
        %v1261 = vmax.f32 %v1259, %v1260
        %v1262 = vrot.slane %v1261, 2
        %v1263 = vmax.f32 %v1261, %v1262
        %v1264 = vrot.slane %v1263, 1
        %v1265 = vmax.f32 %v1263, %v1264
        %v1266 = vsel %vm447, %v1104, -inf
        %v1267 = vrot.slane %v1266, 4
        %v1268 = vmax.f32 %v1266, %v1267
        %v1269 = vrot.slane %v1268, 2
        %v1270 = vmax.f32 %v1268, %v1269
        %v1271 = vrot.slane %v1270, 1
        %v1272 = vmax.f32 %v1270, %v1271
        %v1273 = vsel %vm447, %v1107, -inf
        %v1274 = vrot.slane %v1273, 4
        %v1275 = vmax.f32 %v1273, %v1274
        %v1276 = vrot.slane %v1275, 2
        %v1277 = vmax.f32 %v1275, %v1276
        %v1278 = vrot.slane %v1277, 1
        %v1279 = vmax.f32 %v1277, %v1278
        %v1280 = vsel %vm447, %v1112, -inf
        %v1281 = vrot.slane %v1280, 4
        %v1282 = vmax.f32 %v1280, %v1281
        %v1283 = vrot.slane %v1282, 2
        %v1284 = vmax.f32 %v1282, %v1283
        %v1285 = vrot.slane %v1284, 1
        %v1286 = vmax.f32 %v1284, %v1285
        %v1287 = vsel %vm447, %v1115, -inf
        %v1288 = vrot.slane %v1287, 4
        %v1289 = vmax.f32 %v1287, %v1288
        %v1290 = vrot.slane %v1289, 2
        %v1291 = vmax.f32 %v1289, %v1290
        %v1292 = vrot.slane %v1291, 1
        %v1293 = vmax.f32 %v1291, %v1292
        %v1294 = vsel %vm447, %v1120, -inf
        %v1295 = vrot.slane %v1294, 4
        %v1296 = vmax.f32 %v1294, %v1295
        %v1297 = vrot.slane %v1296, 2
        %v1298 = vmax.f32 %v1296, %v1297
        %v1299 = vrot.slane %v1298, 1
        %v1300 = vmax.f32 %v1298, %v1299
        %v1301 = vsel %vm447, %v1123, -inf
        %v1302 = vrot.slane %v1301, 4
        %v1303 = vmax.f32 %v1301, %v1302
        %v1304 = vrot.slane %v1303, 2
        %v1305 = vmax.f32 %v1303, %v1304
        %v1306 = vrot.slane %v1305, 1
        %v1307 = vmax.f32 %v1305, %v1306
        %v1308 = vsel %vm447, %v1128, -inf
        %v1309 = vrot.slane %v1308, 4
        %v1310 = vmax.f32 %v1308, %v1309
        %v1311 = vrot.slane %v1310, 2
        %v1312 = vmax.f32 %v1310, %v1311
        %v1313 = vrot.slane %v1312, 1
        %v1314 = vmax.f32 %v1312, %v1313
        %v1315 = vsel %vm447, %v1131, -inf
        %v1316 = vrot.slane %v1315, 4
        %v1317 = vmax.f32 %v1315, %v1316
        %v1318 = vrot.slane %v1317, 2
        %v1319 = vmax.f32 %v1317, %v1318
        %v1320 = vrot.slane %v1319, 1
        %v1321 = vmax.f32 %v1319, %v1320
        %v1322 = vsel %vm447, %v1136, -inf
        %v1323 = vrot.slane %v1322, 4
        %v1324 = vmax.f32 %v1322, %v1323
        %v1325 = vrot.slane %v1324, 2
        %v1326 = vmax.f32 %v1324, %v1325
        %v1327 = vrot.slane %v1326, 1
        %v1328 = vmax.f32 %v1326, %v1327
        %v1329 = vsel %vm447, %v1139, -inf
        %v1330 = vrot.slane %v1329, 4
        %v1331 = vmax.f32 %v1329, %v1330
        %v1332 = vrot.slane %v1331, 2
        %v1333 = vmax.f32 %v1331, %v1332
        %v1334 = vrot.slane %v1333, 1
        %v1335 = vmax.f32 %v1333, %v1334
        %v1336 = vsel %vm447, %v1144, -inf
        %v1337 = vrot.slane %v1336, 4
        %v1338 = vmax.f32 %v1336, %v1337
        %v1339 = vrot.slane %v1338, 2
        %v1340 = vmax.f32 %v1338, %v1339
        %v1341 = vrot.slane %v1340, 1
        %v1342 = vmax.f32 %v1340, %v1341
        %v1343 = vsel %vm447, %v1147, -inf
        %v1344 = vrot.slane %v1343, 4
        %v1345 = vmax.f32 %v1343, %v1344
        %v1346 = vrot.slane %v1345, 2
        %v1347 = vmax.f32 %v1345, %v1346
        %v1348 = vrot.slane %v1347, 1
        %v1349 = vmax.f32 %v1347, %v1348
        %v1350 = vsel %vm447, %v1152, -inf
        %v1351 = vrot.slane %v1350, 4
        %v1352 = vmax.f32 %v1350, %v1351
        %v1353 = vrot.slane %v1352, 2
        %v1354 = vmax.f32 %v1352, %v1353
        %v1355 = vrot.slane %v1354, 1
        %v1356 = vmax.f32 %v1354, %v1355
        %v1357 = vsel %vm447, %v1155, -inf
        %v1358 = vrot.slane %v1357, 4
        %v1359 = vmax.f32 %v1357, %v1358
        %v1360 = vrot.slane %v1359, 2
        %v1361 = vmax.f32 %v1359, %v1360
        %v1362 = vrot.slane %v1361, 1
        %v1363 = vmax.f32 %v1361, %v1362
        %v1364 = vsel %vm447, %v1160, -inf
        %v1365 = vrot.slane %v1364, 4
        %v1366 = vmax.f32 %v1364, %v1365
        %v1367 = vrot.slane %v1366, 2
        %v1368 = vmax.f32 %v1366, %v1367
        %v1369 = vrot.slane %v1368, 1
        %v1370 = vmax.f32 %v1368, %v1369
        %v1371 = vsel %vm447, %v1163, -inf
        %v1372 = vrot.slane %v1371, 4
        %v1373 = vmax.f32 %v1371, %v1372
        %v1374 = vrot.slane %v1373, 2
        %v1375 = vmax.f32 %v1373, %v1374
        %v1376 = vrot.slane %v1375, 1
        %v1377 = vmax.f32 %v1375, %v1376
        %v1378 = vsel %vm447, %v1168, -inf
        %v1379 = vrot.slane %v1378, 4
        %v1380 = vmax.f32 %v1378, %v1379
        %v1381 = vrot.slane %v1380, 2
        %v1382 = vmax.f32 %v1380, %v1381
        %v1383 = vrot.slane %v1382, 1
        %v1384 = vmax.f32 %v1382, %v1383
        %v1385 = vsel %vm447, %v1171, -inf
        %v1386 = vrot.slane %v1385, 4
        %v1387 = vmax.f32 %v1385, %v1386
        %v1388 = vrot.slane %v1387, 2
        %v1389 = vmax.f32 %v1387, %v1388
        %v1390 = vrot.slane %v1389, 1
        %v1391 = vmax.f32 %v1389, %v1390
        %v1392 = vsel %vm447, %v1176, -inf
        %v1393 = vrot.slane %v1392, 4
        %v1394 = vmax.f32 %v1392, %v1393
        %v1395 = vrot.slane %v1394, 2
        %v1396 = vmax.f32 %v1394, %v1395
        %v1397 = vrot.slane %v1396, 1
        %v1398 = vmax.f32 %v1396, %v1397
        %v1399 = vsel %vm447, %v1179, -inf
        %v1400 = vrot.slane %v1399, 4
        %v1401 = vmax.f32 %v1399, %v1400
        %v1402 = vrot.slane %v1401, 2
        %v1403 = vmax.f32 %v1401, %v1402
        %v1404 = vrot.slane %v1403, 1
        %v1405 = vmax.f32 %v1403, %v1404
        %v1406 = vpack.c.bf16 %v1059, %v1056
        %v1407 = vpack.c.bf16 %v1067, %v1064
        %v1408 = vpack.c.bf16 %v1075, %v1072
        %v1409 = vpack.c.bf16 %v1083, %v1080
        %v1410 = vpack.c.bf16 %v1091, %v1088
        %v1411 = vpack.c.bf16 %v1099, %v1096
        %v1412 = vpack.c.bf16 %v1107, %v1104
        %v1413 = vpack.c.bf16 %v1115, %v1112
        %v1414 = vpack.c.bf16 %v1123, %v1120
        %v1415 = vpack.c.bf16 %v1131, %v1128
        %v1416 = vpack.c.bf16 %v1139, %v1136
        %v1417 = vpack.c.bf16 %v1147, %v1144
        %v1418 = vpack.c.bf16 %v1155, %v1152
        %v1419 = vpack.c.bf16 %v1163, %v1160
        %v1420 = vpack.c.bf16 %v1171, %v1168
        %v1421 = vpack.c.bf16 %v1179, %v1176
        %v1422 = vld [vmem:[%s6] sm:$0xf]
        %v1423 = vld [vmem:[%s6 + $0x4] sm:$0xf]
        %v1426 = vunpack.c.l.b16 %v1422
        %v1427 = vunpack.c.l.b16 %v1423
        %v1428 = vpack.c.b16 %v1427, %v1426
        %v1431 = vsel %vm447, %v1406, 0
        %v1434 = vsel %vm447, %v1407, 0
        %v1437 = vsel %vm447, %v1408, 0
        %v1440 = vsel %vm447, %v1409, 0
        %v1443 = vsel %vm447, %v1410, 0
        %v1446 = vsel %vm447, %v1411, 0
        %v1449 = vsel %vm447, %v1412, 0
        %v1452 = vsel %vm447, %v1413, 0
        %v1455 = vsel %vm447, %v1414, 0
        %v1458 = vsel %vm447, %v1415, 0
        %v1461 = vsel %vm447, %v1416, 0
        %v1464 = vsel %vm447, %v1417, 0
        %v1467 = vsel %vm447, %v1418, 0
        %v1470 = vsel %vm447, %v1419, 0
        %v1473 = vsel %vm447, %v1420, 0
        %v1476 = vsel %vm447, %v1421, 0
        %1478 = vmatprep.subr.bf16.mxu0 0
        %1479 = vmatpush1.bf16.msra.mxu0 %v1428
        %1480 = vmatprep.subr.bf16.mxu0 0
        %1481 = vmatpush1.bf16.msra.mxu0 0
        %1482 = vmatprep.subr.bf16.mxu0 0
        %1483 = vmatpush1.bf16.msra.mxu0 0
        %1484 = vmatprep.subr.bf16.mxu0 0
        %1485 = vmatpush1.bf16.msra.mxu0 0
        %1486 = vmatprep.subr.bf16.mxu0 0
        %1487 = vmatpush1.bf16.msra.mxu0 0
        %1488 = vmatprep.subr.bf16.mxu0 0
        %1489 = vmatpush1.bf16.msra.mxu0 0
        %1490 = vmatprep.subr.bf16.mxu0 0
        %1491 = vmatpush1.bf16.msra.mxu0 0
        %1492 = vmatprep.subr.bf16.mxu0 0
        %1493 = vmatpush1.bf16.msra.mxu0 0
        %1494 = vmatprep.subr.bf16.mxu0 0
        %1495 = vmatpush1.bf16.msra.mxu0 0
        %1496 = vmatprep.subr.bf16.mxu0 0
        %1497 = vmatpush1.bf16.msra.mxu0 0
        %1498 = vmatprep.subr.bf16.mxu0 0
        %1499 = vmatpush1.bf16.msra.mxu0 0
        %1500 = vmatprep.subr.bf16.mxu0 0
        %1501 = vmatpush1.bf16.msra.mxu0 0
        %1502 = vmatprep.subr.bf16.mxu0 0
        %1503 = vmatpush1.bf16.msra.mxu0 0
        %1504 = vmatprep.subr.bf16.mxu0 0
        %1505 = vmatpush1.bf16.msra.mxu0 0
        %1506 = vmatprep.subr.bf16.mxu0 0
        %1507 = vmatpush1.bf16.msra.mxu0 0
        %1508 = vmatprep.subr.bf16.mxu0 0
        %1509 = vmatpush1.bf16.msra.mxu0 0
        %1510 = vmatprep.mubr.bf16.mxu0 0
        %1511 = vmatmul.mubr.bf16.gmra.mrb[0].mxu0 %v1431
        %v1512 = vpop.f32.mrb[0].mxu0
        %v1513 = vadd.f32 0.0, %v1512
        %v1514 = vpop.f32.mrb[0].mxu0
        %v1515 = vpop.f32.mrb[0].mxu0
        %v1516 = vadd.f32 0.0, %v1515
        %v1517 = vpop.f32.mrb[0].mxu0
        %1518 = vmatprep.mubr.bf16.mxu0 0
        %1519 = vmatmul.mubr.bf16.gmra.mrb[0].mxu0 %v1434
        %v1520 = vpop.f32.mrb[0].mxu0
        %v1521 = vadd.f32 0.0, %v1520
        %v1522 = vpop.f32.mrb[0].mxu0
        %v1523 = vpop.f32.mrb[0].mxu0
        %v1524 = vadd.f32 0.0, %v1523
        %v1525 = vpop.f32.mrb[0].mxu0
        %1526 = vmatprep.mubr.bf16.mxu0 0
        %1527 = vmatmul.mubr.bf16.gmra.mrb[0].mxu0 %v1437
        %v1528 = vpop.f32.mrb[0].mxu0
        %v1529 = vadd.f32 0.0, %v1528
        %v1530 = vpop.f32.mrb[0].mxu0
        %v1531 = vpop.f32.mrb[0].mxu0
        %v1532 = vadd.f32 0.0, %v1531
        %v1533 = vpop.f32.mrb[0].mxu0
        %1534 = vmatprep.mubr.bf16.mxu0 0
        %1535 = vmatmul.mubr.bf16.gmra.mrb[0].mxu0 %v1440
        %v1536 = vpop.f32.mrb[0].mxu0
        %v1537 = vadd.f32 0.0, %v1536
        %v1538 = vpop.f32.mrb[0].mxu0
        %v1539 = vpop.f32.mrb[0].mxu0
        %v1540 = vadd.f32 0.0, %v1539
        %v1541 = vpop.f32.mrb[0].mxu0
        %1542 = vmatprep.mubr.bf16.mxu0 0
        %1543 = vmatmul.mubr.bf16.gmra.mrb[0].mxu0 %v1443
        %v1544 = vpop.f32.mrb[0].mxu0
        %v1545 = vadd.f32 0.0, %v1544
        %v1546 = vpop.f32.mrb[0].mxu0
        %v1547 = vpop.f32.mrb[0].mxu0
        %v1548 = vadd.f32 0.0, %v1547
        %v1549 = vpop.f32.mrb[0].mxu0
        %1550 = vmatprep.mubr.bf16.mxu0 0
        %1551 = vmatmul.mubr.bf16.gmra.mrb[0].mxu0 %v1446
        %v1552 = vpop.f32.mrb[0].mxu0
        %v1553 = vadd.f32 0.0, %v1552
        %v1554 = vpop.f32.mrb[0].mxu0
        %v1555 = vpop.f32.mrb[0].mxu0
        %v1556 = vadd.f32 0.0, %v1555
        %v1557 = vpop.f32.mrb[0].mxu0
        %1558 = vmatprep.mubr.bf16.mxu0 0
        %1559 = vmatmul.mubr.bf16.gmra.mrb[0].mxu0 %v1449
        %v1560 = vpop.f32.mrb[0].mxu0
        %v1561 = vadd.f32 0.0, %v1560
        %v1562 = vpop.f32.mrb[0].mxu0
        %v1563 = vpop.f32.mrb[0].mxu0
        %v1564 = vadd.f32 0.0, %v1563
        %v1565 = vpop.f32.mrb[0].mxu0
        %1566 = vmatprep.mubr.bf16.mxu0 0
        %1567 = vmatmul.mubr.bf16.gmra.mrb[0].mxu0 %v1452
        %v1568 = vpop.f32.mrb[0].mxu0
        %v1569 = vadd.f32 0.0, %v1568
        %v1570 = vpop.f32.mrb[0].mxu0
        %v1571 = vpop.f32.mrb[0].mxu0
        %v1572 = vadd.f32 0.0, %v1571
        %v1573 = vpop.f32.mrb[0].mxu0
        %1574 = vmatprep.mubr.bf16.mxu0 0
        %1575 = vmatmul.mubr.bf16.gmra.mrb[0].mxu0 %v1455
        %v1576 = vpop.f32.mrb[0].mxu0
        %v1577 = vadd.f32 0.0, %v1576
        %v1578 = vpop.f32.mrb[0].mxu0
        %v1579 = vpop.f32.mrb[0].mxu0
        %v1580 = vadd.f32 0.0, %v1579
        %v1581 = vpop.f32.mrb[0].mxu0
        %1582 = vmatprep.mubr.bf16.mxu0 0
        %1583 = vmatmul.mubr.bf16.gmra.mrb[0].mxu0 %v1458
        %v1584 = vpop.f32.mrb[0].mxu0
        %v1585 = vadd.f32 0.0, %v1584
        %v1586 = vpop.f32.mrb[0].mxu0
        %v1587 = vpop.f32.mrb[0].mxu0
        %v1588 = vadd.f32 0.0, %v1587
        %v1589 = vpop.f32.mrb[0].mxu0
        %1590 = vmatprep.mubr.bf16.mxu0 0
        %1591 = vmatmul.mubr.bf16.gmra.mrb[0].mxu0 %v1461
        %v1592 = vpop.f32.mrb[0].mxu0
        %v1593 = vadd.f32 0.0, %v1592
        %v1594 = vpop.f32.mrb[0].mxu0
        %v1595 = vpop.f32.mrb[0].mxu0
        %v1596 = vadd.f32 0.0, %v1595
        %v1597 = vpop.f32.mrb[0].mxu0
        %1598 = vmatprep.mubr.bf16.mxu0 0
        %1599 = vmatmul.mubr.bf16.gmra.mrb[0].mxu0 %v1464
        %v1600 = vpop.f32.mrb[0].mxu0
        %v1601 = vadd.f32 0.0, %v1600
        %v1602 = vpop.f32.mrb[0].mxu0
        %v1603 = vpop.f32.mrb[0].mxu0
        %v1604 = vadd.f32 0.0, %v1603
        %v1605 = vpop.f32.mrb[0].mxu0
        %1606 = vmatprep.mubr.bf16.mxu0 0
        %1607 = vmatmul.mubr.bf16.gmra.mrb[0].mxu0 %v1467
        %v1608 = vpop.f32.mrb[0].mxu0
        %v1609 = vadd.f32 0.0, %v1608
        %v1610 = vpop.f32.mrb[0].mxu0
        %v1611 = vpop.f32.mrb[0].mxu0
        %v1612 = vadd.f32 0.0, %v1611
        %v1613 = vpop.f32.mrb[0].mxu0
        %1614 = vmatprep.mubr.bf16.mxu0 0
        %1615 = vmatmul.mubr.bf16.gmra.mrb[0].mxu0 %v1470
        %v1616 = vpop.f32.mrb[0].mxu0
        %v1617 = vadd.f32 0.0, %v1616
        %v1618 = vpop.f32.mrb[0].mxu0
        %v1619 = vpop.f32.mrb[0].mxu0
        %v1620 = vadd.f32 0.0, %v1619
        %v1621 = vpop.f32.mrb[0].mxu0
        %1622 = vmatprep.mubr.bf16.mxu0 0
        %1623 = vmatmul.mubr.bf16.gmra.mrb[0].mxu0 %v1473
        %v1624 = vpop.f32.mrb[0].mxu0
        %v1625 = vadd.f32 0.0, %v1624
        %v1626 = vpop.f32.mrb[0].mxu0
        %v1627 = vpop.f32.mrb[0].mxu0
        %v1628 = vadd.f32 0.0, %v1627
        %v1629 = vpop.f32.mrb[0].mxu0
        %1630 = vmatprep.mubr.bf16.mxu0 0
        %1631 = vmatmul.mubr.bf16.gmra.mrb[0].mxu0 %v1476
        %v1632 = vpop.f32.mrb[0].mxu0
        %v1633 = vadd.f32 0.0, %v1632
        %v1634 = vpop.f32.mrb[0].mxu0
        %v1635 = vpop.f32.mrb[0].mxu0
        %v1636 = vadd.f32 0.0, %v1635
        %v1637 = vpop.f32.mrb[0].mxu0
        %1638 = vdwg.mxu0
        %v1639 = vpack.c.bf16 %v1188, %v1188
        %v1640 = vpack.c.bf16 %v1195, %v1195
        %v1641 = vpack.c.bf16 %v1202, %v1202
        %v1642 = vpack.c.bf16 %v1209, %v1209
        %v1643 = vpack.c.bf16 %v1216, %v1216
        %v1644 = vpack.c.bf16 %v1223, %v1223
        %v1645 = vpack.c.bf16 %v1230, %v1230
        %v1646 = vpack.c.bf16 %v1237, %v1237
        %v1647 = vpack.c.bf16 %v1244, %v1244
        %v1648 = vpack.c.bf16 %v1251, %v1251
        %v1649 = vpack.c.bf16 %v1258, %v1258
        %v1650 = vpack.c.bf16 %v1265, %v1265
        %v1651 = vpack.c.bf16 %v1272, %v1272
        %v1652 = vpack.c.bf16 %v1279, %v1279
        %v1653 = vpack.c.bf16 %v1286, %v1286
        %v1654 = vpack.c.bf16 %v1293, %v1293
        %v1655 = vpack.c.bf16 %v1300, %v1300
        %v1656 = vpack.c.bf16 %v1307, %v1307
        %v1657 = vpack.c.bf16 %v1314, %v1314
        %v1658 = vpack.c.bf16 %v1321, %v1321
        %v1659 = vpack.c.bf16 %v1328, %v1328
        %v1660 = vpack.c.bf16 %v1335, %v1335
        %v1661 = vpack.c.bf16 %v1342, %v1342
        %v1662 = vpack.c.bf16 %v1349, %v1349
        %v1663 = vpack.c.bf16 %v1356, %v1356
        %v1664 = vpack.c.bf16 %v1363, %v1363
        %v1665 = vpack.c.bf16 %v1370, %v1370
        %v1666 = vpack.c.bf16 %v1377, %v1377
        %v1667 = vpack.c.bf16 %v1384, %v1384
        %v1668 = vpack.c.bf16 %v1391, %v1391
        %v1669 = vpack.c.bf16 %v1398, %v1398
        %v1670 = vpack.c.bf16 %v1405, %v1405
        %v1671 = vld [vmem:[%s5] sm:$0xf]
        %v1672 = vld [vmem:[%s5 + $0x4] sm:$0xf]
        %v1673 = vld [vmem:[%s7] sm:$0x1]
        %v1675 = vlaneseq
        %v1676 = vshrl.u32 %v1675, 7
        %v1677 = vsub.s32 0, %v1676
        %v1678 = vrot.slane %v1673, %v1677
        %v1712 = vunpack.c.l.b16 %v1639
        %v1713 = vunpack.c.l.b16 %v1640
        %v1714 = vunpack.c.l.b16 %v1641
        %v1715 = vunpack.c.l.b16 %v1642
        %v1716 = vunpack.c.l.b16 %v1643
        %v1717 = vunpack.c.l.b16 %v1644
        %v1718 = vunpack.c.l.b16 %v1645
        %v1719 = vunpack.c.l.b16 %v1646
        %v1720 = vunpack.c.l.b16 %v1647
        %v1721 = vunpack.c.l.b16 %v1648
        %v1722 = vunpack.c.l.b16 %v1649
        %v1723 = vunpack.c.l.b16 %v1650
        %v1724 = vunpack.c.l.b16 %v1651
        %v1725 = vunpack.c.l.b16 %v1652
        %v1726 = vunpack.c.l.b16 %v1653
        %v1727 = vunpack.c.l.b16 %v1654
        %v1728 = vunpack.c.l.b16 %v1655
        %v1729 = vunpack.c.l.b16 %v1656
        %v1730 = vunpack.c.l.b16 %v1657
        %v1731 = vunpack.c.l.b16 %v1658
        %v1732 = vunpack.c.l.b16 %v1659
        %v1733 = vunpack.c.l.b16 %v1660
        %v1734 = vunpack.c.l.b16 %v1661
        %v1735 = vunpack.c.l.b16 %v1662
        %v1736 = vunpack.c.l.b16 %v1663
        %v1737 = vunpack.c.l.b16 %v1664
        %v1738 = vunpack.c.l.b16 %v1665
        %v1739 = vunpack.c.l.b16 %v1666
        %v1740 = vunpack.c.l.b16 %v1667
        %v1741 = vunpack.c.l.b16 %v1668
        %v1742 = vunpack.c.l.b16 %v1669
        %v1743 = vunpack.c.l.b16 %v1670
        %vm1744 = vcmask 1041409
        %v1745 = vsel %vm1744, %v1713, %v1712
        %vm1746 = vcmask 1042434
        %v1747 = vsel %vm1746, %v1714, %v1745
        %vm1748 = vcmask 1043459
        %v1749 = vsel %vm1748, %v1715, %v1747
        %vm1750 = vcmask 1044484
        %v1751 = vsel %vm1750, %v1716, %v1749
        %vm1752 = vcmask 1045509
        %v1753 = vsel %vm1752, %v1717, %v1751
        %vm1754 = vcmask 1046534
        %v1755 = vsel %vm1754, %v1718, %v1753
        %vm1756 = vcmask 1047559
        %v1757 = vsel %vm1756, %v1719, %v1755
        %v1758 = vsel %vm1744, %v1721, %v1720
        %v1759 = vsel %vm1746, %v1722, %v1758
        %v1760 = vsel %vm1748, %v1723, %v1759
        %v1761 = vsel %vm1750, %v1724, %v1760
        %v1762 = vsel %vm1752, %v1725, %v1761
        %v1763 = vsel %vm1754, %v1726, %v1762
        %v1764 = vsel %vm1756, %v1727, %v1763
        %v1765 = vsel %vm1744, %v1729, %v1728
        %v1766 = vsel %vm1746, %v1730, %v1765
        %v1767 = vsel %vm1748, %v1731, %v1766
        %v1768 = vsel %vm1750, %v1732, %v1767
        %v1769 = vsel %vm1752, %v1733, %v1768
        %v1770 = vsel %vm1754, %v1734, %v1769
        %v1771 = vsel %vm1756, %v1735, %v1770
        %v1772 = vsel %vm1744, %v1737, %v1736
        %v1773 = vsel %vm1746, %v1738, %v1772
        %v1774 = vsel %vm1748, %v1739, %v1773
        %v1775 = vsel %vm1750, %v1740, %v1774
        %v1776 = vsel %vm1752, %v1741, %v1775
        %v1777 = vsel %vm1754, %v1742, %v1776
        %v1778 = vsel %vm1756, %v1743, %v1777
        %v1779 = vpack.c.b16 %v1764, %v1757
        %v1780 = vpack.c.b16 %v1778, %v1771
        %v1783 = vunpack.c.l.b16 %v1671
        %v1784 = vunpack.c.l.b16 %v1672
        %v1785 = vpack.c.b16 %v1784, %v1783
        %v1788 = vsel %vm447, %v1779, 0
        %v1791 = vsel %vm447, %v1780, 0
        %1793 = vmatprep.subr.bf16.mxu0 0
        %1794 = vmatpush1.bf16.msra.mxu0 %v1785
        %1795 = vmatprep.subr.bf16.mxu0 0
        %1796 = vmatpush1.bf16.msra.mxu0 0
        %1797 = vmatprep.subr.bf16.mxu0 0
        %1798 = vmatpush1.bf16.msra.mxu0 0
        %1799 = vmatprep.subr.bf16.mxu0 0
        %1800 = vmatpush1.bf16.msra.mxu0 0
        %1801 = vmatprep.subr.bf16.mxu0 0
        %1802 = vmatpush1.bf16.msra.mxu0 0
        %1803 = vmatprep.subr.bf16.mxu0 0
        %1804 = vmatpush1.bf16.msra.mxu0 0
        %1805 = vmatprep.subr.bf16.mxu0 0
        %1806 = vmatpush1.bf16.msra.mxu0 0
        %1807 = vmatprep.subr.bf16.mxu0 0
        %1808 = vmatpush1.bf16.msra.mxu0 0
        %1809 = vmatprep.subr.bf16.mxu0 0
        %1810 = vmatpush1.bf16.msra.mxu0 0
        %1811 = vmatprep.subr.bf16.mxu0 0
        %1812 = vmatpush1.bf16.msra.mxu0 0
        %1813 = vmatprep.subr.bf16.mxu0 0
        %1814 = vmatpush1.bf16.msra.mxu0 0
        %1815 = vmatprep.subr.bf16.mxu0 0
        %1816 = vmatpush1.bf16.msra.mxu0 0
        %1817 = vmatprep.subr.bf16.mxu0 0
        %1818 = vmatpush1.bf16.msra.mxu0 0
        %1819 = vmatprep.subr.bf16.mxu0 0
        %1820 = vmatpush1.bf16.msra.mxu0 0
        %1821 = vmatprep.subr.bf16.mxu0 0
        %1822 = vmatpush1.bf16.msra.mxu0 0
        %1823 = vmatprep.subr.bf16.mxu0 0
        %1824 = vmatpush1.bf16.msra.mxu0 0
        %1825 = vmatprep.mubr.bf16.mxu0 0
        %1826 = vmatmul.mubr.bf16.gmra.mrb[0].mxu0 %v1788
        %v1827 = vpop.f32.mrb[0].mxu0
        %v1828 = vadd.f32 %v1678, %v1827
        %v1829 = vpop.f32.mrb[0].mxu0
        %v1830 = vpop.f32.mrb[0].mxu0
        %v1831 = vadd.f32 %v1678, %v1830
        %v1832 = vpop.f32.mrb[0].mxu0
        %1833 = vmatprep.mubr.bf16.mxu0 0
        %1834 = vmatmul.mubr.bf16.gmra.mrb[0].mxu0 %v1791
        %v1835 = vpop.f32.mrb[0].mxu0
        %v1836 = vadd.f32 %v1678, %v1835
        %v1837 = vpop.f32.mrb[0].mxu0
        %v1838 = vpop.f32.mrb[0].mxu0
        %v1839 = vadd.f32 %v1678, %v1838
        %v1840 = vpop.f32.mrb[0].mxu0
        %1841 = vdwg.mxu0
        %v1846 = vcombine.high %v1828, %v1828
        %v1848 = vunpack.c.l.s4 1966171168
        %v1849 = vunpack.c.0.s8 %v1848
        %v1850 = vlaneseq
        %v1851 = vshrl.u32 %v1850, 7
        %v1852 = vsub.s32 %v1849, %v1851
        %v1853 = vrot.slane %v1828, %v1852
        %v1855 = vunpack.c.l.s4 1966171168
        %v1856 = vunpack.c.0.s8 %v1855
        %v1857 = vlaneseq
        %v1858 = vshrl.u32 %v1857, 7
        %v1859 = vsub.s32 %v1856, %v1858
        %v1860 = vrot.slane %v1846, %v1859
        %v1861 = vcombine.high %v1853, %v1853
        %v1862 = vcombine.high %v1860, %v1860
        %v1864 = vunpack.c.l.s4 1966171168
        %v1865 = vunpack.c.0.s8 %v1864
        %v1866 = vlaneseq
        %v1867 = vshrl.u32 %v1866, 7
        %v1868 = vsub.s32 %v1865, %v1867
        %v1869 = vrot.slane %v1853, %v1868
        %v1871 = vunpack.c.l.s4 1966171168
        %v1872 = vunpack.c.0.s8 %v1871
        %v1873 = vlaneseq
        %v1874 = vshrl.u32 %v1873, 7
        %v1875 = vsub.s32 %v1872, %v1874
        %v1876 = vrot.slane %v1860, %v1875
        %v1878 = vunpack.c.l.s4 1966171168
        %v1879 = vunpack.c.0.s8 %v1878
        %v1880 = vlaneseq
        %v1881 = vshrl.u32 %v1880, 7
        %v1882 = vsub.s32 %v1879, %v1881
        %v1883 = vrot.slane %v1861, %v1882
        %v1885 = vunpack.c.l.s4 1966171168
        %v1886 = vunpack.c.0.s8 %v1885
        %v1887 = vlaneseq
        %v1888 = vshrl.u32 %v1887, 7
        %v1889 = vsub.s32 %v1886, %v1888
        %v1890 = vrot.slane %v1862, %v1889
        %v1891 = vcombine.high %v1869, %v1869
        %v1892 = vcombine.high %v1876, %v1876
        %v1893 = vcombine.high %v1883, %v1883
        %v1894 = vcombine.high %v1890, %v1890
        %v1895 = vcombine.high %v1831, %v1831
        %v1897 = vunpack.c.l.s4 1966171168
        %v1898 = vunpack.c.0.s8 %v1897
        %v1899 = vlaneseq
        %v1900 = vshrl.u32 %v1899, 7
        %v1901 = vsub.s32 %v1898, %v1900
        %v1902 = vrot.slane %v1831, %v1901
        %v1904 = vunpack.c.l.s4 1966171168
        %v1905 = vunpack.c.0.s8 %v1904
        %v1906 = vlaneseq
        %v1907 = vshrl.u32 %v1906, 7
        %v1908 = vsub.s32 %v1905, %v1907
        %v1909 = vrot.slane %v1895, %v1908
        %v1910 = vcombine.high %v1902, %v1902
        %v1911 = vcombine.high %v1909, %v1909
        %v1913 = vunpack.c.l.s4 1966171168
        %v1914 = vunpack.c.0.s8 %v1913
        %v1915 = vlaneseq
        %v1916 = vshrl.u32 %v1915, 7
        %v1917 = vsub.s32 %v1914, %v1916
        %v1918 = vrot.slane %v1902, %v1917
        %v1920 = vunpack.c.l.s4 1966171168
        %v1921 = vunpack.c.0.s8 %v1920
        %v1922 = vlaneseq
        %v1923 = vshrl.u32 %v1922, 7
        %v1924 = vsub.s32 %v1921, %v1923
        %v1925 = vrot.slane %v1909, %v1924
        %v1927 = vunpack.c.l.s4 1966171168
        %v1928 = vunpack.c.0.s8 %v1927
        %v1929 = vlaneseq
        %v1930 = vshrl.u32 %v1929, 7
        %v1931 = vsub.s32 %v1928, %v1930
        %v1932 = vrot.slane %v1910, %v1931
        %v1934 = vunpack.c.l.s4 1966171168
        %v1935 = vunpack.c.0.s8 %v1934
        %v1936 = vlaneseq
        %v1937 = vshrl.u32 %v1936, 7
        %v1938 = vsub.s32 %v1935, %v1937
        %v1939 = vrot.slane %v1911, %v1938
        %v1940 = vcombine.high %v1918, %v1918
        %v1941 = vcombine.high %v1925, %v1925
        %v1942 = vcombine.high %v1932, %v1932
        %v1943 = vcombine.high %v1939, %v1939
        %v1944 = vcombine.high %v1836, %v1836
        %v1946 = vunpack.c.l.s4 1966171168
        %v1947 = vunpack.c.0.s8 %v1946
        %v1948 = vlaneseq
        %v1949 = vshrl.u32 %v1948, 7
        %v1950 = vsub.s32 %v1947, %v1949
        %v1951 = vrot.slane %v1836, %v1950
        %v1953 = vunpack.c.l.s4 1966171168
        %v1954 = vunpack.c.0.s8 %v1953
        %v1955 = vlaneseq
        %v1956 = vshrl.u32 %v1955, 7
        %v1957 = vsub.s32 %v1954, %v1956
        %v1958 = vrot.slane %v1944, %v1957
        %v1959 = vcombine.high %v1951, %v1951
        %v1960 = vcombine.high %v1958, %v1958
        %v1962 = vunpack.c.l.s4 1966171168
        %v1963 = vunpack.c.0.s8 %v1962
        %v1964 = vlaneseq
        %v1965 = vshrl.u32 %v1964, 7
        %v1966 = vsub.s32 %v1963, %v1965
        %v1967 = vrot.slane %v1951, %v1966
        %v1969 = vunpack.c.l.s4 1966171168
        %v1970 = vunpack.c.0.s8 %v1969
        %v1971 = vlaneseq
        %v1972 = vshrl.u32 %v1971, 7
        %v1973 = vsub.s32 %v1970, %v1972
        %v1974 = vrot.slane %v1958, %v1973
        %v1976 = vunpack.c.l.s4 1966171168
        %v1977 = vunpack.c.0.s8 %v1976
        %v1978 = vlaneseq
        %v1979 = vshrl.u32 %v1978, 7
        %v1980 = vsub.s32 %v1977, %v1979
        %v1981 = vrot.slane %v1959, %v1980
        %v1983 = vunpack.c.l.s4 1966171168
        %v1984 = vunpack.c.0.s8 %v1983
        %v1985 = vlaneseq
        %v1986 = vshrl.u32 %v1985, 7
        %v1987 = vsub.s32 %v1984, %v1986
        %v1988 = vrot.slane %v1960, %v1987
        %v1989 = vcombine.high %v1967, %v1967
        %v1990 = vcombine.high %v1974, %v1974
        %v1991 = vcombine.high %v1981, %v1981
        %v1992 = vcombine.high %v1988, %v1988
        %v1993 = vcombine.high %v1839, %v1839
        %v1995 = vunpack.c.l.s4 1966171168
        %v1996 = vunpack.c.0.s8 %v1995
        %v1997 = vlaneseq
        %v1998 = vshrl.u32 %v1997, 7
        %v1999 = vsub.s32 %v1996, %v1998
        %v2000 = vrot.slane %v1839, %v1999
        %v2002 = vunpack.c.l.s4 1966171168
        %v2003 = vunpack.c.0.s8 %v2002
        %v2004 = vlaneseq
        %v2005 = vshrl.u32 %v2004, 7
        %v2006 = vsub.s32 %v2003, %v2005
        %v2007 = vrot.slane %v1993, %v2006
        %v2008 = vcombine.high %v2000, %v2000
        %v2009 = vcombine.high %v2007, %v2007
        %v2011 = vunpack.c.l.s4 1966171168
        %v2012 = vunpack.c.0.s8 %v2011
        %v2013 = vlaneseq
        %v2014 = vshrl.u32 %v2013, 7
        %v2015 = vsub.s32 %v2012, %v2014
        %v2016 = vrot.slane %v2000, %v2015
        %v2018 = vunpack.c.l.s4 1966171168
        %v2019 = vunpack.c.0.s8 %v2018
        %v2020 = vlaneseq
        %v2021 = vshrl.u32 %v2020, 7
        %v2022 = vsub.s32 %v2019, %v2021
        %v2023 = vrot.slane %v2007, %v2022
        %v2025 = vunpack.c.l.s4 1966171168
        %v2026 = vunpack.c.0.s8 %v2025
        %v2027 = vlaneseq
        %v2028 = vshrl.u32 %v2027, 7
        %v2029 = vsub.s32 %v2026, %v2028
        %v2030 = vrot.slane %v2008, %v2029
        %v2032 = vunpack.c.l.s4 1966171168
        %v2033 = vunpack.c.0.s8 %v2032
        %v2034 = vlaneseq
        %v2035 = vshrl.u32 %v2034, 7
        %v2036 = vsub.s32 %v2033, %v2035
        %v2037 = vrot.slane %v2009, %v2036
        %v2038 = vcombine.high %v2016, %v2016
        %v2039 = vcombine.high %v2023, %v2023
        %v2040 = vcombine.high %v2030, %v2030
        %v2041 = vcombine.high %v2037, %v2037
        %v2042 = vlaneseq
        %v2043 = vshrl.u32 %v2042, 7
        %v2044 = vsub.s32 0, %v2043
        %v2045 = vrot.slane %v1869, %v2044
        %v2046 = vlaneseq
        %v2047 = vshrl.u32 %v2046, 7
        %v2048 = vsub.s32 0, %v2047
        %v2049 = vrot.slane %v1883, %v2048
        %v2050 = vlaneseq
        %v2051 = vshrl.u32 %v2050, 7
        %v2052 = vsub.s32 0, %v2051
        %v2053 = vrot.slane %v1891, %v2052
        %v2054 = vlaneseq
        %v2055 = vshrl.u32 %v2054, 7
        %v2056 = vsub.s32 0, %v2055
        %v2057 = vrot.slane %v1893, %v2056
        %v2058 = vlaneseq
        %v2059 = vshrl.u32 %v2058, 7
        %v2060 = vsub.s32 0, %v2059
        %v2061 = vrot.slane %v1876, %v2060
        %v2062 = vlaneseq
        %v2063 = vshrl.u32 %v2062, 7
        %v2064 = vsub.s32 0, %v2063
        %v2065 = vrot.slane %v1890, %v2064
        %v2066 = vlaneseq
        %v2067 = vshrl.u32 %v2066, 7
        %v2068 = vsub.s32 0, %v2067
        %v2069 = vrot.slane %v1892, %v2068
        %v2070 = vlaneseq
        %v2071 = vshrl.u32 %v2070, 7
        %v2072 = vsub.s32 0, %v2071
        %v2073 = vrot.slane %v1894, %v2072
        %v2074 = vlaneseq
        %v2075 = vshrl.u32 %v2074, 7
        %v2076 = vsub.s32 0, %v2075
        %v2077 = vrot.slane %v1918, %v2076
        %v2078 = vlaneseq
        %v2079 = vshrl.u32 %v2078, 7
        %v2080 = vsub.s32 0, %v2079
        %v2081 = vrot.slane %v1932, %v2080
        %v2082 = vlaneseq
        %v2083 = vshrl.u32 %v2082, 7
        %v2084 = vsub.s32 0, %v2083
        %v2085 = vrot.slane %v1940, %v2084
        %v2086 = vlaneseq
        %v2087 = vshrl.u32 %v2086, 7
        %v2088 = vsub.s32 0, %v2087
        %v2089 = vrot.slane %v1942, %v2088
        %v2090 = vlaneseq
        %v2091 = vshrl.u32 %v2090, 7
        %v2092 = vsub.s32 0, %v2091
        %v2093 = vrot.slane %v1925, %v2092
        %v2094 = vlaneseq
        %v2095 = vshrl.u32 %v2094, 7
        %v2096 = vsub.s32 0, %v2095
        %v2097 = vrot.slane %v1939, %v2096
        %v2098 = vlaneseq
        %v2099 = vshrl.u32 %v2098, 7
        %v2100 = vsub.s32 0, %v2099
        %v2101 = vrot.slane %v1941, %v2100
        %v2102 = vlaneseq
        %v2103 = vshrl.u32 %v2102, 7
        %v2104 = vsub.s32 0, %v2103
        %v2105 = vrot.slane %v1943, %v2104
        %v2106 = vlaneseq
        %v2107 = vshrl.u32 %v2106, 7
        %v2108 = vsub.s32 0, %v2107
        %v2109 = vrot.slane %v1967, %v2108
        %v2110 = vlaneseq
        %v2111 = vshrl.u32 %v2110, 7
        %v2112 = vsub.s32 0, %v2111
        %v2113 = vrot.slane %v1981, %v2112
        %v2114 = vlaneseq
        %v2115 = vshrl.u32 %v2114, 7
        %v2116 = vsub.s32 0, %v2115
        %v2117 = vrot.slane %v1989, %v2116
        %v2118 = vlaneseq
        %v2119 = vshrl.u32 %v2118, 7
        %v2120 = vsub.s32 0, %v2119
        %v2121 = vrot.slane %v1991, %v2120
        %v2122 = vlaneseq
        %v2123 = vshrl.u32 %v2122, 7
        %v2124 = vsub.s32 0, %v2123
        %v2125 = vrot.slane %v1974, %v2124
        %v2126 = vlaneseq
        %v2127 = vshrl.u32 %v2126, 7
        %v2128 = vsub.s32 0, %v2127
        %v2129 = vrot.slane %v1988, %v2128
        %v2130 = vlaneseq
        %v2131 = vshrl.u32 %v2130, 7
        %v2132 = vsub.s32 0, %v2131
        %v2133 = vrot.slane %v1990, %v2132
        %v2134 = vlaneseq
        %v2135 = vshrl.u32 %v2134, 7
        %v2136 = vsub.s32 0, %v2135
        %v2137 = vrot.slane %v1992, %v2136
        %v2138 = vlaneseq
        %v2139 = vshrl.u32 %v2138, 7
        %v2140 = vsub.s32 0, %v2139
        %v2141 = vrot.slane %v2016, %v2140
        %v2142 = vlaneseq
        %v2143 = vshrl.u32 %v2142, 7
        %v2144 = vsub.s32 0, %v2143
        %v2145 = vrot.slane %v2030, %v2144
        %v2146 = vlaneseq
        %v2147 = vshrl.u32 %v2146, 7
        %v2148 = vsub.s32 0, %v2147
        %v2149 = vrot.slane %v2038, %v2148
        %v2150 = vlaneseq
        %v2151 = vshrl.u32 %v2150, 7
        %v2152 = vsub.s32 0, %v2151
        %v2153 = vrot.slane %v2040, %v2152
        %v2154 = vlaneseq
        %v2155 = vshrl.u32 %v2154, 7
        %v2156 = vsub.s32 0, %v2155
        %v2157 = vrot.slane %v2023, %v2156
        %v2158 = vlaneseq
        %v2159 = vshrl.u32 %v2158, 7
        %v2160 = vsub.s32 0, %v2159
        %v2161 = vrot.slane %v2037, %v2160
        %v2162 = vlaneseq
        %v2163 = vshrl.u32 %v2162, 7
        %v2164 = vsub.s32 0, %v2163
        %v2165 = vrot.slane %v2039, %v2164
        %v2166 = vlaneseq
        %v2167 = vshrl.u32 %v2166, 7
        %v2168 = vsub.s32 0, %v2167
        %v2169 = vrot.slane %v2041, %v2168
        %v2202 = vadd.f32 %v1513, %v2045
        %v2203 = vadd.f32 %v1516, %v2049
        %v2204 = vadd.f32 %v1521, %v2053
        %v2205 = vadd.f32 %v1524, %v2057
        %v2206 = vadd.f32 %v1529, %v2061
        %v2207 = vadd.f32 %v1532, %v2065
        %v2208 = vadd.f32 %v1537, %v2069
        %v2209 = vadd.f32 %v1540, %v2073
        %v2210 = vadd.f32 %v1545, %v2077
        %v2211 = vadd.f32 %v1548, %v2081
        %v2212 = vadd.f32 %v1553, %v2085
        %v2213 = vadd.f32 %v1556, %v2089
        %v2214 = vadd.f32 %v1561, %v2093
        %v2215 = vadd.f32 %v1564, %v2097
        %v2216 = vadd.f32 %v1569, %v2101
        %v2217 = vadd.f32 %v1572, %v2105
        %v2218 = vadd.f32 %v1577, %v2109
        %v2219 = vadd.f32 %v1580, %v2113
        %v2220 = vadd.f32 %v1585, %v2117
        %v2221 = vadd.f32 %v1588, %v2121
        %v2222 = vadd.f32 %v1593, %v2125
        %v2223 = vadd.f32 %v1596, %v2129
        %v2224 = vadd.f32 %v1601, %v2133
        %v2225 = vadd.f32 %v1604, %v2137
        %v2226 = vadd.f32 %v1609, %v2141
        %v2227 = vadd.f32 %v1612, %v2145
        %v2228 = vadd.f32 %v1617, %v2149
        %v2229 = vadd.f32 %v1620, %v2153
        %v2230 = vadd.f32 %v1625, %v2157
        %v2231 = vadd.f32 %v1628, %v2161
        %v2232 = vadd.f32 %v1633, %v2165
        %v2233 = vadd.f32 %v1636, %v2169
        %vm2234 = vcmask 261120
        %v2235 = vsel %vm2234, %v2202, 0.0
        %v2236 = vsel %vm2234, %v2203, 0.0
        %v2237 = vadd.f32 %v2235, %v2236
        %v2238 = vsel %vm2234, %v2204, 0.0
        %v2239 = vadd.f32 %v2237, %v2238
        %v2240 = vsel %vm2234, %v2205, 0.0
        %v2241 = vadd.f32 %v2239, %v2240
        %v2242 = vsel %vm2234, %v2206, 0.0
        %v2243 = vadd.f32 %v2241, %v2242
        %v2244 = vsel %vm2234, %v2207, 0.0
        %v2245 = vadd.f32 %v2243, %v2244
        %v2246 = vsel %vm2234, %v2208, 0.0
        %v2247 = vadd.f32 %v2245, %v2246
        %v2248 = vsel %vm2234, %v2209, 0.0
        %v2249 = vadd.f32 %v2247, %v2248
        %v2250 = vsel %vm2234, %v2210, 0.0
        %v2251 = vadd.f32 %v2249, %v2250
        %v2252 = vsel %vm2234, %v2211, 0.0
        %v2253 = vadd.f32 %v2251, %v2252
        %v2254 = vsel %vm2234, %v2212, 0.0
        %v2255 = vadd.f32 %v2253, %v2254
        %v2256 = vsel %vm2234, %v2213, 0.0
        %v2257 = vadd.f32 %v2255, %v2256
        %v2258 = vsel %vm2234, %v2214, 0.0
        %v2259 = vadd.f32 %v2257, %v2258
        %v2260 = vsel %vm2234, %v2215, 0.0
        %v2261 = vadd.f32 %v2259, %v2260
        %v2262 = vsel %vm2234, %v2216, 0.0
        %v2263 = vadd.f32 %v2261, %v2262
        %v2264 = vsel %vm2234, %v2217, 0.0
        %v2265 = vadd.f32 %v2263, %v2264
        %v2266 = vrot.slane %v2265, 4
        %v2267 = vadd.f32 %v2265, %v2266
        %v2268 = vrot.slane %v2267, 2
        %v2269 = vadd.f32 %v2267, %v2268
        %v2270 = vrot.slane %v2269, 1
        %v2271 = vadd.f32 %v2269, %v2270
        %v2272 = vsel %vm2234, %v2218, 0.0
        %v2273 = vsel %vm2234, %v2219, 0.0
        %v2274 = vadd.f32 %v2272, %v2273
        %v2275 = vsel %vm2234, %v2220, 0.0
        %v2276 = vadd.f32 %v2274, %v2275
        %v2277 = vsel %vm2234, %v2221, 0.0
        %v2278 = vadd.f32 %v2276, %v2277
        %v2279 = vsel %vm2234, %v2222, 0.0
        %v2280 = vadd.f32 %v2278, %v2279
        %v2281 = vsel %vm2234, %v2223, 0.0
        %v2282 = vadd.f32 %v2280, %v2281
        %v2283 = vsel %vm2234, %v2224, 0.0
        %v2284 = vadd.f32 %v2282, %v2283
        %v2285 = vsel %vm2234, %v2225, 0.0
        %v2286 = vadd.f32 %v2284, %v2285
        %v2287 = vsel %vm2234, %v2226, 0.0
        %v2288 = vadd.f32 %v2286, %v2287
        %v2289 = vsel %vm2234, %v2227, 0.0
        %v2290 = vadd.f32 %v2288, %v2289
        %v2291 = vsel %vm2234, %v2228, 0.0
        %v2292 = vadd.f32 %v2290, %v2291
        %v2293 = vsel %vm2234, %v2229, 0.0
        %v2294 = vadd.f32 %v2292, %v2293
        %v2295 = vsel %vm2234, %v2230, 0.0
        %v2296 = vadd.f32 %v2294, %v2295
        %v2297 = vsel %vm2234, %v2231, 0.0
        %v2298 = vadd.f32 %v2296, %v2297
        %v2299 = vsel %vm2234, %v2232, 0.0
        %v2300 = vadd.f32 %v2298, %v2299
        %v2301 = vsel %vm2234, %v2233, 0.0
        %v2302 = vadd.f32 %v2300, %v2301
        %v2303 = vrot.slane %v2302, 4
        %v2304 = vadd.f32 %v2302, %v2303
        %v2305 = vrot.slane %v2304, 2
        %v2306 = vadd.f32 %v2304, %v2305
        %v2307 = vrot.slane %v2306, 1
        %v2308 = vadd.f32 %v2306, %v2307
        %v2309 = vmul.f32 %v2271, %v731
        %v2310 = vmul.f32 %v2308, %v731
        %v2311 = vsub.f32 %v2202, %v2309
        %v2312 = vsub.f32 %v2203, %v2309
        %v2313 = vsub.f32 %v2204, %v2309
        %v2314 = vsub.f32 %v2205, %v2309
        %v2315 = vsub.f32 %v2206, %v2309
        %v2316 = vsub.f32 %v2207, %v2309
        %v2317 = vsub.f32 %v2208, %v2309
        %v2318 = vsub.f32 %v2209, %v2309
        %v2319 = vsub.f32 %v2210, %v2309
        %v2320 = vsub.f32 %v2211, %v2309
        %v2321 = vsub.f32 %v2212, %v2309
        %v2322 = vsub.f32 %v2213, %v2309
        %v2323 = vsub.f32 %v2214, %v2309
        %v2324 = vsub.f32 %v2215, %v2309
        %v2325 = vsub.f32 %v2216, %v2309
        %v2326 = vsub.f32 %v2217, %v2309
        %v2327 = vsub.f32 %v2218, %v2310
        %v2328 = vsub.f32 %v2219, %v2310
        %v2329 = vsub.f32 %v2220, %v2310
        %v2330 = vsub.f32 %v2221, %v2310
        %v2331 = vsub.f32 %v2222, %v2310
        %v2332 = vsub.f32 %v2223, %v2310
        %v2333 = vsub.f32 %v2224, %v2310
        %v2334 = vsub.f32 %v2225, %v2310
        %v2335 = vsub.f32 %v2226, %v2310
        %v2336 = vsub.f32 %v2227, %v2310
        %v2337 = vsub.f32 %v2228, %v2310
        %v2338 = vsub.f32 %v2229, %v2310
        %v2339 = vsub.f32 %v2230, %v2310
        %v2340 = vsub.f32 %v2231, %v2310
        %v2341 = vsub.f32 %v2232, %v2310
        %v2342 = vsub.f32 %v2233, %v2310
        %v2343 = vmul.f32 %v2311, %v2311
        %v2344 = vmul.f32 %v2312, %v2312
        %v2345 = vmul.f32 %v2313, %v2313
        %v2346 = vmul.f32 %v2314, %v2314
        %v2347 = vmul.f32 %v2315, %v2315
        %v2348 = vmul.f32 %v2316, %v2316
        %v2349 = vmul.f32 %v2317, %v2317
        %v2350 = vmul.f32 %v2318, %v2318
        %v2351 = vmul.f32 %v2319, %v2319
        %v2352 = vmul.f32 %v2320, %v2320
        %v2353 = vmul.f32 %v2321, %v2321
        %v2354 = vmul.f32 %v2322, %v2322
        %v2355 = vmul.f32 %v2323, %v2323
        %v2356 = vmul.f32 %v2324, %v2324
        %v2357 = vmul.f32 %v2325, %v2325
        %v2358 = vmul.f32 %v2326, %v2326
        %v2359 = vmul.f32 %v2327, %v2327
        %v2360 = vmul.f32 %v2328, %v2328
        %v2361 = vmul.f32 %v2329, %v2329
        %v2362 = vmul.f32 %v2330, %v2330
        %v2363 = vmul.f32 %v2331, %v2331
        %v2364 = vmul.f32 %v2332, %v2332
        %v2365 = vmul.f32 %v2333, %v2333
        %v2366 = vmul.f32 %v2334, %v2334
        %v2367 = vmul.f32 %v2335, %v2335
        %v2368 = vmul.f32 %v2336, %v2336
        %v2369 = vmul.f32 %v2337, %v2337
        %v2370 = vmul.f32 %v2338, %v2338
        %v2371 = vmul.f32 %v2339, %v2339
        %v2372 = vmul.f32 %v2340, %v2340
        %v2373 = vmul.f32 %v2341, %v2341
        %v2374 = vmul.f32 %v2342, %v2342
        %v2375 = vsel %vm2234, %v2343, 0.0
        %v2376 = vsel %vm2234, %v2344, 0.0
        %v2377 = vadd.f32 %v2375, %v2376
        %v2378 = vsel %vm2234, %v2345, 0.0
        %v2379 = vadd.f32 %v2377, %v2378
        %v2380 = vsel %vm2234, %v2346, 0.0
        %v2381 = vadd.f32 %v2379, %v2380
        %v2382 = vsel %vm2234, %v2347, 0.0
        %v2383 = vadd.f32 %v2381, %v2382
        %v2384 = vsel %vm2234, %v2348, 0.0
        %v2385 = vadd.f32 %v2383, %v2384
        %v2386 = vsel %vm2234, %v2349, 0.0
        %v2387 = vadd.f32 %v2385, %v2386
        %v2388 = vsel %vm2234, %v2350, 0.0
        %v2389 = vadd.f32 %v2387, %v2388
        %v2390 = vsel %vm2234, %v2351, 0.0
        %v2391 = vadd.f32 %v2389, %v2390
        %v2392 = vsel %vm2234, %v2352, 0.0
        %v2393 = vadd.f32 %v2391, %v2392
        %v2394 = vsel %vm2234, %v2353, 0.0
        %v2395 = vadd.f32 %v2393, %v2394
        %v2396 = vsel %vm2234, %v2354, 0.0
        %v2397 = vadd.f32 %v2395, %v2396
        %v2398 = vsel %vm2234, %v2355, 0.0
        %v2399 = vadd.f32 %v2397, %v2398
        %v2400 = vsel %vm2234, %v2356, 0.0
        %v2401 = vadd.f32 %v2399, %v2400
        %v2402 = vsel %vm2234, %v2357, 0.0
        %v2403 = vadd.f32 %v2401, %v2402
        %v2404 = vsel %vm2234, %v2358, 0.0
        %v2405 = vadd.f32 %v2403, %v2404
        %v2406 = vrot.slane %v2405, 4
        %v2407 = vadd.f32 %v2405, %v2406
        %v2408 = vrot.slane %v2407, 2
        %v2409 = vadd.f32 %v2407, %v2408
        %v2410 = vrot.slane %v2409, 1
        %v2411 = vadd.f32 %v2409, %v2410
        %v2412 = vsel %vm2234, %v2359, 0.0
        %v2413 = vsel %vm2234, %v2360, 0.0
        %v2414 = vadd.f32 %v2412, %v2413
        %v2415 = vsel %vm2234, %v2361, 0.0
        %v2416 = vadd.f32 %v2414, %v2415
        %v2417 = vsel %vm2234, %v2362, 0.0
        %v2418 = vadd.f32 %v2416, %v2417
        %v2419 = vsel %vm2234, %v2363, 0.0
        %v2420 = vadd.f32 %v2418, %v2419
        %v2421 = vsel %vm2234, %v2364, 0.0
        %v2422 = vadd.f32 %v2420, %v2421
        %v2423 = vsel %vm2234, %v2365, 0.0
        %v2424 = vadd.f32 %v2422, %v2423
        %v2425 = vsel %vm2234, %v2366, 0.0
        %v2426 = vadd.f32 %v2424, %v2425
        %v2427 = vsel %vm2234, %v2367, 0.0
        %v2428 = vadd.f32 %v2426, %v2427
        %v2429 = vsel %vm2234, %v2368, 0.0
        %v2430 = vadd.f32 %v2428, %v2429
        %v2431 = vsel %vm2234, %v2369, 0.0
        %v2432 = vadd.f32 %v2430, %v2431
        %v2433 = vsel %vm2234, %v2370, 0.0
        %v2434 = vadd.f32 %v2432, %v2433
        %v2435 = vsel %vm2234, %v2371, 0.0
        %v2436 = vadd.f32 %v2434, %v2435
        %v2437 = vsel %vm2234, %v2372, 0.0
        %v2438 = vadd.f32 %v2436, %v2437
        %v2439 = vsel %vm2234, %v2373, 0.0
        %v2440 = vadd.f32 %v2438, %v2439
        %v2441 = vsel %vm2234, %v2374, 0.0
        %v2442 = vadd.f32 %v2440, %v2441
        %v2443 = vrot.slane %v2442, 4
        %v2444 = vadd.f32 %v2442, %v2443
        %v2445 = vrot.slane %v2444, 2
        %v2446 = vadd.f32 %v2444, %v2445
        %v2447 = vrot.slane %v2446, 1
        %v2448 = vadd.f32 %v2446, %v2447
        %v2449 = vmul.f32 %v2411, %v731
        %v2450 = vmul.f32 %v2448, %v731
        %v2451 = vadd.f32 %v2449, 1e-05
        %v2452 = vadd.f32 %v2450, 1e-05
        %v2453 = vrsqrt.pop %v2451
        %v2454 = vrsqrt.pop %v2452
        %v2455 = vmul.f32 %v2311, %v2453
        %v2456 = vmul.f32 %v2312, %v2453
        %v2457 = vmul.f32 %v2313, %v2453
        %v2458 = vmul.f32 %v2314, %v2453
        %v2459 = vmul.f32 %v2315, %v2453
        %v2460 = vmul.f32 %v2316, %v2453
        %v2461 = vmul.f32 %v2317, %v2453
        %v2462 = vmul.f32 %v2318, %v2453
        %v2463 = vmul.f32 %v2319, %v2453
        %v2464 = vmul.f32 %v2320, %v2453
        %v2465 = vmul.f32 %v2321, %v2453
        %v2466 = vmul.f32 %v2322, %v2453
        %v2467 = vmul.f32 %v2323, %v2453
        %v2468 = vmul.f32 %v2324, %v2453
        %v2469 = vmul.f32 %v2325, %v2453
        %v2470 = vmul.f32 %v2326, %v2453
        %v2471 = vmul.f32 %v2327, %v2454
        %v2472 = vmul.f32 %v2328, %v2454
        %v2473 = vmul.f32 %v2329, %v2454
        %v2474 = vmul.f32 %v2330, %v2454
        %v2475 = vmul.f32 %v2331, %v2454
        %v2476 = vmul.f32 %v2332, %v2454
        %v2477 = vmul.f32 %v2333, %v2454
        %v2478 = vmul.f32 %v2334, %v2454
        %v2479 = vmul.f32 %v2335, %v2454
        %v2480 = vmul.f32 %v2336, %v2454
        %v2481 = vmul.f32 %v2337, %v2454
        %v2482 = vmul.f32 %v2338, %v2454
        %v2483 = vmul.f32 %v2339, %v2454
        %v2484 = vmul.f32 %v2340, %v2454
        %v2485 = vmul.f32 %v2341, %v2454
        %v2486 = vmul.f32 %v2342, %v2454
        %v2487 = vmax.f32 %v2455, 0.0
        %v2488 = vmax.f32 %v2456, 0.0
        %v2489 = vmax.f32 %v2457, 0.0
        %v2490 = vmax.f32 %v2458, 0.0
        %v2491 = vmax.f32 %v2459, 0.0
        %v2492 = vmax.f32 %v2460, 0.0
        %v2493 = vmax.f32 %v2461, 0.0
        %v2494 = vmax.f32 %v2462, 0.0
        %v2495 = vmax.f32 %v2463, 0.0
        %v2496 = vmax.f32 %v2464, 0.0
        %v2497 = vmax.f32 %v2465, 0.0
        %v2498 = vmax.f32 %v2466, 0.0
        %v2499 = vmax.f32 %v2467, 0.0
        %v2500 = vmax.f32 %v2468, 0.0
        %v2501 = vmax.f32 %v2469, 0.0
        %v2502 = vmax.f32 %v2470, 0.0
        %v2503 = vmax.f32 %v2471, 0.0
        %v2504 = vmax.f32 %v2472, 0.0
        %v2505 = vmax.f32 %v2473, 0.0
        %v2506 = vmax.f32 %v2474, 0.0
        %v2507 = vmax.f32 %v2475, 0.0
        %v2508 = vmax.f32 %v2476, 0.0
        %v2509 = vmax.f32 %v2477, 0.0
        %v2510 = vmax.f32 %v2478, 0.0
        %v2511 = vmax.f32 %v2479, 0.0
        %v2512 = vmax.f32 %v2480, 0.0
        %v2513 = vmax.f32 %v2481, 0.0
        %v2514 = vmax.f32 %v2482, 0.0
        %v2515 = vmax.f32 %v2483, 0.0
        %v2516 = vmax.f32 %v2484, 0.0
        %v2517 = vmax.f32 %v2485, 0.0
        %v2518 = vmax.f32 %v2486, 0.0
        %v2519 = vpack.c.bf16 %v2488, %v2487
        %v2520 = vpack.c.bf16 %v2490, %v2489
        %v2521 = vpack.c.bf16 %v2492, %v2491
        %v2522 = vpack.c.bf16 %v2494, %v2493
        %v2523 = vpack.c.bf16 %v2496, %v2495
        %v2524 = vpack.c.bf16 %v2498, %v2497
        %v2525 = vpack.c.bf16 %v2500, %v2499
        %v2526 = vpack.c.bf16 %v2502, %v2501
        %v2527 = vpack.c.bf16 %v2504, %v2503
        %v2528 = vpack.c.bf16 %v2506, %v2505
        %v2529 = vpack.c.bf16 %v2508, %v2507
        %v2530 = vpack.c.bf16 %v2510, %v2509
        %v2531 = vpack.c.bf16 %v2512, %v2511
        %v2532 = vpack.c.bf16 %v2514, %v2513
        %v2533 = vpack.c.bf16 %v2516, %v2515
        %v2534 = vpack.c.bf16 %v2518, %v2517
        %v2535 = vld [vmem:[%s8] sm:$0xf]
        %v2536 = vld [vmem:[%s8 + $0x4] sm:$0xf]
        %v2537 = vld [vmem:[%s8 + $0x8] sm:$0xf]
        %v2538 = vld [vmem:[%s8 + $0xc] sm:$0xf]
        %v2539 = vld [vmem:[%s9] sm:$0x1]
        %v2541 = vlaneseq
        %v2542 = vshrl.u32 %v2541, 7
        %v2543 = vsub.s32 0, %v2542
        %v2544 = vrot.slane %v2539, %v2543
        %v2550 = vunpack.c.l.b16 %v2535
        %v2551 = vunpack.c.l.b16 %v2536
        %v2552 = vunpack.c.l.b16 %v2537
        %v2553 = vunpack.c.l.b16 %v2538
        %v2554 = vpack.c.b16 %v2551, %v2550
        %v2555 = vpack.c.b16 %v2553, %v2552
        %v2559 = vsel %vm2234, %v2519, 0
        %v2562 = vsel %vm2234, %v2520, 0
        %v2565 = vsel %vm2234, %v2521, 0
        %v2568 = vsel %vm2234, %v2522, 0
        %v2571 = vsel %vm2234, %v2523, 0
        %v2574 = vsel %vm2234, %v2524, 0
        %v2577 = vsel %vm2234, %v2525, 0
        %v2580 = vsel %vm2234, %v2526, 0
        %v2583 = vsel %vm2234, %v2527, 0
        %v2586 = vsel %vm2234, %v2528, 0
        %v2589 = vsel %vm2234, %v2529, 0
        %v2592 = vsel %vm2234, %v2530, 0
        %v2595 = vsel %vm2234, %v2531, 0
        %v2598 = vsel %vm2234, %v2532, 0
        %v2601 = vsel %vm2234, %v2533, 0
        %v2604 = vsel %vm2234, %v2534, 0
        %2606 = vmatprep.subr.bf16.mxu0 0
        %2607 = vmatpush1.bf16.msra.mxu0 %v2554
        %2608 = vmatprep.subr.bf16.mxu0 0
        %2609 = vmatpush1.bf16.msra.mxu0 %v2555
        %2610 = vmatprep.subr.bf16.mxu0 0
        %2611 = vmatpush1.bf16.msra.mxu0 0
        %2612 = vmatprep.subr.bf16.mxu0 0
        %2613 = vmatpush1.bf16.msra.mxu0 0
        %2614 = vmatprep.subr.bf16.mxu0 0
        %2615 = vmatpush1.bf16.msra.mxu0 0
        %2616 = vmatprep.subr.bf16.mxu0 0
        %2617 = vmatpush1.bf16.msra.mxu0 0
        %2618 = vmatprep.subr.bf16.mxu0 0
        %2619 = vmatpush1.bf16.msra.mxu0 0
        %2620 = vmatprep.subr.bf16.mxu0 0
        %2621 = vmatpush1.bf16.msra.mxu0 0
        %2622 = vmatprep.subr.bf16.mxu0 0
        %2623 = vmatpush1.bf16.msra.mxu0 0
        %2624 = vmatprep.subr.bf16.mxu0 0
        %2625 = vmatpush1.bf16.msra.mxu0 0
        %2626 = vmatprep.subr.bf16.mxu0 0
        %2627 = vmatpush1.bf16.msra.mxu0 0
        %2628 = vmatprep.subr.bf16.mxu0 0
        %2629 = vmatpush1.bf16.msra.mxu0 0
        %2630 = vmatprep.subr.bf16.mxu0 0
        %2631 = vmatpush1.bf16.msra.mxu0 0
        %2632 = vmatprep.subr.bf16.mxu0 0
        %2633 = vmatpush1.bf16.msra.mxu0 0
        %2634 = vmatprep.subr.bf16.mxu0 0
        %2635 = vmatpush1.bf16.msra.mxu0 0
        %2636 = vmatprep.subr.bf16.mxu0 0
        %2637 = vmatpush1.bf16.msra.mxu0 0
        %2638 = vmatprep.mubr.bf16.mxu0 0
        %2639 = vmatmul.mubr.bf16.gmra.mrb[0].mxu0 %v2559
        %v2640 = vpop.f32.mrb[0].mxu0
        %v2641 = vadd.f32 %v2544, %v2640
        %v2642 = vpop.f32.mrb[0].mxu0
        %v2643 = vpop.f32.mrb[0].mxu0
        %v2644 = vadd.f32 %v2544, %v2643
        %v2645 = vpop.f32.mrb[0].mxu0
        %2646 = vmatprep.mubr.bf16.mxu0 0
        %2647 = vmatmul.mubr.bf16.gmra.mrb[0].mxu0 %v2562
        %v2648 = vpop.f32.mrb[0].mxu0
        %v2649 = vadd.f32 %v2544, %v2648
        %v2650 = vpop.f32.mrb[0].mxu0
        %v2651 = vpop.f32.mrb[0].mxu0
        %v2652 = vadd.f32 %v2544, %v2651
        %v2653 = vpop.f32.mrb[0].mxu0
        %2654 = vmatprep.mubr.bf16.mxu0 0
        %2655 = vmatmul.mubr.bf16.gmra.mrb[0].mxu0 %v2565
        %v2656 = vpop.f32.mrb[0].mxu0
        %v2657 = vadd.f32 %v2544, %v2656
        %v2658 = vpop.f32.mrb[0].mxu0
        %v2659 = vpop.f32.mrb[0].mxu0
        %v2660 = vadd.f32 %v2544, %v2659
        %v2661 = vpop.f32.mrb[0].mxu0
        %2662 = vmatprep.mubr.bf16.mxu0 0
        %2663 = vmatmul.mubr.bf16.gmra.mrb[0].mxu0 %v2568
        %v2664 = vpop.f32.mrb[0].mxu0
        %v2665 = vadd.f32 %v2544, %v2664
        %v2666 = vpop.f32.mrb[0].mxu0
        %v2667 = vpop.f32.mrb[0].mxu0
        %v2668 = vadd.f32 %v2544, %v2667
        %v2669 = vpop.f32.mrb[0].mxu0
        %2670 = vmatprep.mubr.bf16.mxu0 0
        %2671 = vmatmul.mubr.bf16.gmra.mrb[0].mxu0 %v2571
        %v2672 = vpop.f32.mrb[0].mxu0
        %v2673 = vadd.f32 %v2544, %v2672
        %v2674 = vpop.f32.mrb[0].mxu0
        %v2675 = vpop.f32.mrb[0].mxu0
        %v2676 = vadd.f32 %v2544, %v2675
        %v2677 = vpop.f32.mrb[0].mxu0
        %2678 = vmatprep.mubr.bf16.mxu0 0
        %2679 = vmatmul.mubr.bf16.gmra.mrb[0].mxu0 %v2574
        %v2680 = vpop.f32.mrb[0].mxu0
        %v2681 = vadd.f32 %v2544, %v2680
        %v2682 = vpop.f32.mrb[0].mxu0
        %v2683 = vpop.f32.mrb[0].mxu0
        %v2684 = vadd.f32 %v2544, %v2683
        %v2685 = vpop.f32.mrb[0].mxu0
        %2686 = vmatprep.mubr.bf16.mxu0 0
        %2687 = vmatmul.mubr.bf16.gmra.mrb[0].mxu0 %v2577
        %v2688 = vpop.f32.mrb[0].mxu0
        %v2689 = vadd.f32 %v2544, %v2688
        %v2690 = vpop.f32.mrb[0].mxu0
        %v2691 = vpop.f32.mrb[0].mxu0
        %v2692 = vadd.f32 %v2544, %v2691
        %v2693 = vpop.f32.mrb[0].mxu0
        %2694 = vmatprep.mubr.bf16.mxu0 0
        %2695 = vmatmul.mubr.bf16.gmra.mrb[0].mxu0 %v2580
        %v2696 = vpop.f32.mrb[0].mxu0
        %v2697 = vadd.f32 %v2544, %v2696
        %v2698 = vpop.f32.mrb[0].mxu0
        %v2699 = vpop.f32.mrb[0].mxu0
        %v2700 = vadd.f32 %v2544, %v2699
        %v2701 = vpop.f32.mrb[0].mxu0
        %2702 = vmatprep.mubr.bf16.mxu0 0
        %2703 = vmatmul.mubr.bf16.gmra.mrb[0].mxu0 %v2583
        %v2704 = vpop.f32.mrb[0].mxu0
        %v2705 = vadd.f32 %v2544, %v2704
        %v2706 = vpop.f32.mrb[0].mxu0
        %v2707 = vpop.f32.mrb[0].mxu0
        %v2708 = vadd.f32 %v2544, %v2707
        %v2709 = vpop.f32.mrb[0].mxu0
        %2710 = vmatprep.mubr.bf16.mxu0 0
        %2711 = vmatmul.mubr.bf16.gmra.mrb[0].mxu0 %v2586
        %v2712 = vpop.f32.mrb[0].mxu0
        %v2713 = vadd.f32 %v2544, %v2712
        %v2714 = vpop.f32.mrb[0].mxu0
        %v2715 = vpop.f32.mrb[0].mxu0
        %v2716 = vadd.f32 %v2544, %v2715
        %v2717 = vpop.f32.mrb[0].mxu0
        %2718 = vmatprep.mubr.bf16.mxu0 0
        %2719 = vmatmul.mubr.bf16.gmra.mrb[0].mxu0 %v2589
        %v2720 = vpop.f32.mrb[0].mxu0
        %v2721 = vadd.f32 %v2544, %v2720
        %v2722 = vpop.f32.mrb[0].mxu0
        %v2723 = vpop.f32.mrb[0].mxu0
        %v2724 = vadd.f32 %v2544, %v2723
        %v2725 = vpop.f32.mrb[0].mxu0
        %2726 = vmatprep.mubr.bf16.mxu0 0
        %2727 = vmatmul.mubr.bf16.gmra.mrb[0].mxu0 %v2592
        %v2728 = vpop.f32.mrb[0].mxu0
        %v2729 = vadd.f32 %v2544, %v2728
        %v2730 = vpop.f32.mrb[0].mxu0
        %v2731 = vpop.f32.mrb[0].mxu0
        %v2732 = vadd.f32 %v2544, %v2731
        %v2733 = vpop.f32.mrb[0].mxu0
        %2734 = vmatprep.mubr.bf16.mxu0 0
        %2735 = vmatmul.mubr.bf16.gmra.mrb[0].mxu0 %v2595
        %v2736 = vpop.f32.mrb[0].mxu0
        %v2737 = vadd.f32 %v2544, %v2736
        %v2738 = vpop.f32.mrb[0].mxu0
        %v2739 = vpop.f32.mrb[0].mxu0
        %v2740 = vadd.f32 %v2544, %v2739
        %v2741 = vpop.f32.mrb[0].mxu0
        %2742 = vmatprep.mubr.bf16.mxu0 0
        %2743 = vmatmul.mubr.bf16.gmra.mrb[0].mxu0 %v2598
        %v2744 = vpop.f32.mrb[0].mxu0
        %v2745 = vadd.f32 %v2544, %v2744
        %v2746 = vpop.f32.mrb[0].mxu0
        %v2747 = vpop.f32.mrb[0].mxu0
        %v2748 = vadd.f32 %v2544, %v2747
        %v2749 = vpop.f32.mrb[0].mxu0
        %2750 = vmatprep.mubr.bf16.mxu0 0
        %2751 = vmatmul.mubr.bf16.gmra.mrb[0].mxu0 %v2601
        %v2752 = vpop.f32.mrb[0].mxu0
        %v2753 = vadd.f32 %v2544, %v2752
        %v2754 = vpop.f32.mrb[0].mxu0
        %v2755 = vpop.f32.mrb[0].mxu0
        %v2756 = vadd.f32 %v2544, %v2755
        %v2757 = vpop.f32.mrb[0].mxu0
        %2758 = vmatprep.mubr.bf16.mxu0 0
        %2759 = vmatmul.mubr.bf16.gmra.mrb[0].mxu0 %v2604
        %v2760 = vpop.f32.mrb[0].mxu0
        %v2761 = vadd.f32 %v2544, %v2760
        %v2762 = vpop.f32.mrb[0].mxu0
        %v2763 = vpop.f32.mrb[0].mxu0
        %v2764 = vadd.f32 %v2544, %v2763
        %v2765 = vpop.f32.mrb[0].mxu0
        %2766 = vdwg.mxu0
        %v2767 = vsel %vm447, %v2641, 0.0
        %v2768 = vsel %vm447, %v2644, 0.0
        %v2769 = vadd.f32 %v2767, %v2768
        %v2770 = vsel %vm447, %v2649, 0.0
        %v2771 = vadd.f32 %v2769, %v2770
        %v2772 = vsel %vm447, %v2652, 0.0
        %v2773 = vadd.f32 %v2771, %v2772
        %v2774 = vsel %vm447, %v2657, 0.0
        %v2775 = vadd.f32 %v2773, %v2774
        %v2776 = vsel %vm447, %v2660, 0.0
        %v2777 = vadd.f32 %v2775, %v2776
        %v2778 = vsel %vm447, %v2665, 0.0
        %v2779 = vadd.f32 %v2777, %v2778
        %v2780 = vsel %vm447, %v2668, 0.0
        %v2781 = vadd.f32 %v2779, %v2780
        %v2782 = vsel %vm447, %v2673, 0.0
        %v2783 = vadd.f32 %v2781, %v2782
        %v2784 = vsel %vm447, %v2676, 0.0
        %v2785 = vadd.f32 %v2783, %v2784
        %v2786 = vsel %vm447, %v2681, 0.0
        %v2787 = vadd.f32 %v2785, %v2786
        %v2788 = vsel %vm447, %v2684, 0.0
        %v2789 = vadd.f32 %v2787, %v2788
        %v2790 = vsel %vm447, %v2689, 0.0
        %v2791 = vadd.f32 %v2789, %v2790
        %v2792 = vsel %vm447, %v2692, 0.0
        %v2793 = vadd.f32 %v2791, %v2792
        %v2794 = vsel %vm447, %v2697, 0.0
        %v2795 = vadd.f32 %v2793, %v2794
        %v2796 = vsel %vm447, %v2700, 0.0
        %v2797 = vadd.f32 %v2795, %v2796
        %v2798 = vrot.slane %v2797, 4
        %v2799 = vadd.f32 %v2797, %v2798
        %v2800 = vrot.slane %v2799, 2
        %v2801 = vadd.f32 %v2799, %v2800
        %v2802 = vrot.slane %v2801, 1
        %v2803 = vadd.f32 %v2801, %v2802
        %v2804 = vsel %vm447, %v2705, 0.0
        %v2805 = vsel %vm447, %v2708, 0.0
        %v2806 = vadd.f32 %v2804, %v2805
        %v2807 = vsel %vm447, %v2713, 0.0
        %v2808 = vadd.f32 %v2806, %v2807
        %v2809 = vsel %vm447, %v2716, 0.0
        %v2810 = vadd.f32 %v2808, %v2809
        %v2811 = vsel %vm447, %v2721, 0.0
        %v2812 = vadd.f32 %v2810, %v2811
        %v2813 = vsel %vm447, %v2724, 0.0
        %v2814 = vadd.f32 %v2812, %v2813
        %v2815 = vsel %vm447, %v2729, 0.0
        %v2816 = vadd.f32 %v2814, %v2815
        %v2817 = vsel %vm447, %v2732, 0.0
        %v2818 = vadd.f32 %v2816, %v2817
        %v2819 = vsel %vm447, %v2737, 0.0
        %v2820 = vadd.f32 %v2818, %v2819
        %v2821 = vsel %vm447, %v2740, 0.0
        %v2822 = vadd.f32 %v2820, %v2821
        %v2823 = vsel %vm447, %v2745, 0.0
        %v2824 = vadd.f32 %v2822, %v2823
        %v2825 = vsel %vm447, %v2748, 0.0
        %v2826 = vadd.f32 %v2824, %v2825
        %v2827 = vsel %vm447, %v2753, 0.0
        %v2828 = vadd.f32 %v2826, %v2827
        %v2829 = vsel %vm447, %v2756, 0.0
        %v2830 = vadd.f32 %v2828, %v2829
        %v2831 = vsel %vm447, %v2761, 0.0
        %v2832 = vadd.f32 %v2830, %v2831
        %v2833 = vsel %vm447, %v2764, 0.0
        %v2834 = vadd.f32 %v2832, %v2833
        %v2835 = vrot.slane %v2834, 4
        %v2836 = vadd.f32 %v2834, %v2835
        %v2837 = vrot.slane %v2836, 2
        %v2838 = vadd.f32 %v2836, %v2837
        %v2839 = vrot.slane %v2838, 1
        %v2840 = vadd.f32 %v2838, %v2839
        %v2841 = vmul.f32 %v2803, %v731
        %v2842 = vmul.f32 %v2840, %v731
        %v2843 = vsub.f32 %v2641, %v2841
        %v2844 = vsub.f32 %v2644, %v2841
        %v2845 = vsub.f32 %v2649, %v2841
        %v2846 = vsub.f32 %v2652, %v2841
        %v2847 = vsub.f32 %v2657, %v2841
        %v2848 = vsub.f32 %v2660, %v2841
        %v2849 = vsub.f32 %v2665, %v2841
        %v2850 = vsub.f32 %v2668, %v2841
        %v2851 = vsub.f32 %v2673, %v2841
        %v2852 = vsub.f32 %v2676, %v2841
        %v2853 = vsub.f32 %v2681, %v2841
        %v2854 = vsub.f32 %v2684, %v2841
        %v2855 = vsub.f32 %v2689, %v2841
        %v2856 = vsub.f32 %v2692, %v2841
        %v2857 = vsub.f32 %v2697, %v2841
        %v2858 = vsub.f32 %v2700, %v2841
        %v2859 = vsub.f32 %v2705, %v2842
        %v2860 = vsub.f32 %v2708, %v2842
        %v2861 = vsub.f32 %v2713, %v2842
        %v2862 = vsub.f32 %v2716, %v2842
        %v2863 = vsub.f32 %v2721, %v2842
        %v2864 = vsub.f32 %v2724, %v2842
        %v2865 = vsub.f32 %v2729, %v2842
        %v2866 = vsub.f32 %v2732, %v2842
        %v2867 = vsub.f32 %v2737, %v2842
        %v2868 = vsub.f32 %v2740, %v2842
        %v2869 = vsub.f32 %v2745, %v2842
        %v2870 = vsub.f32 %v2748, %v2842
        %v2871 = vsub.f32 %v2753, %v2842
        %v2872 = vsub.f32 %v2756, %v2842
        %v2873 = vsub.f32 %v2761, %v2842
        %v2874 = vsub.f32 %v2764, %v2842
        %v2875 = vmul.f32 %v2843, %v2843
        %v2876 = vmul.f32 %v2844, %v2844
        %v2877 = vmul.f32 %v2845, %v2845
        %v2878 = vmul.f32 %v2846, %v2846
        %v2879 = vmul.f32 %v2847, %v2847
        %v2880 = vmul.f32 %v2848, %v2848
        %v2881 = vmul.f32 %v2849, %v2849
        %v2882 = vmul.f32 %v2850, %v2850
        %v2883 = vmul.f32 %v2851, %v2851
        %v2884 = vmul.f32 %v2852, %v2852
        %v2885 = vmul.f32 %v2853, %v2853
        %v2886 = vmul.f32 %v2854, %v2854
        %v2887 = vmul.f32 %v2855, %v2855
        %v2888 = vmul.f32 %v2856, %v2856
        %v2889 = vmul.f32 %v2857, %v2857
        %v2890 = vmul.f32 %v2858, %v2858
        %v2891 = vmul.f32 %v2859, %v2859
        %v2892 = vmul.f32 %v2860, %v2860
        %v2893 = vmul.f32 %v2861, %v2861
        %v2894 = vmul.f32 %v2862, %v2862
        %v2895 = vmul.f32 %v2863, %v2863
        %v2896 = vmul.f32 %v2864, %v2864
        %v2897 = vmul.f32 %v2865, %v2865
        %v2898 = vmul.f32 %v2866, %v2866
        %v2899 = vmul.f32 %v2867, %v2867
        %v2900 = vmul.f32 %v2868, %v2868
        %v2901 = vmul.f32 %v2869, %v2869
        %v2902 = vmul.f32 %v2870, %v2870
        %v2903 = vmul.f32 %v2871, %v2871
        %v2904 = vmul.f32 %v2872, %v2872
        %v2905 = vmul.f32 %v2873, %v2873
        %v2906 = vmul.f32 %v2874, %v2874
        %v2907 = vsel %vm447, %v2875, 0.0
        %v2908 = vsel %vm447, %v2876, 0.0
        %v2909 = vadd.f32 %v2907, %v2908
        %v2910 = vsel %vm447, %v2877, 0.0
        %v2911 = vadd.f32 %v2909, %v2910
        %v2912 = vsel %vm447, %v2878, 0.0
        %v2913 = vadd.f32 %v2911, %v2912
        %v2914 = vsel %vm447, %v2879, 0.0
        %v2915 = vadd.f32 %v2913, %v2914
        %v2916 = vsel %vm447, %v2880, 0.0
        %v2917 = vadd.f32 %v2915, %v2916
        %v2918 = vsel %vm447, %v2881, 0.0
        %v2919 = vadd.f32 %v2917, %v2918
        %v2920 = vsel %vm447, %v2882, 0.0
        %v2921 = vadd.f32 %v2919, %v2920
        %v2922 = vsel %vm447, %v2883, 0.0
        %v2923 = vadd.f32 %v2921, %v2922
        %v2924 = vsel %vm447, %v2884, 0.0
        %v2925 = vadd.f32 %v2923, %v2924
        %v2926 = vsel %vm447, %v2885, 0.0
        %v2927 = vadd.f32 %v2925, %v2926
        %v2928 = vsel %vm447, %v2886, 0.0
        %v2929 = vadd.f32 %v2927, %v2928
        %v2930 = vsel %vm447, %v2887, 0.0
        %v2931 = vadd.f32 %v2929, %v2930
        %v2932 = vsel %vm447, %v2888, 0.0
        %v2933 = vadd.f32 %v2931, %v2932
        %v2934 = vsel %vm447, %v2889, 0.0
        %v2935 = vadd.f32 %v2933, %v2934
        %v2936 = vsel %vm447, %v2890, 0.0
        %v2937 = vadd.f32 %v2935, %v2936
        %v2938 = vrot.slane %v2937, 4
        %v2939 = vadd.f32 %v2937, %v2938
        %v2940 = vrot.slane %v2939, 2
        %v2941 = vadd.f32 %v2939, %v2940
        %v2942 = vrot.slane %v2941, 1
        %v2943 = vadd.f32 %v2941, %v2942
        %v2944 = vsel %vm447, %v2891, 0.0
        %v2945 = vsel %vm447, %v2892, 0.0
        %v2946 = vadd.f32 %v2944, %v2945
        %v2947 = vsel %vm447, %v2893, 0.0
        %v2948 = vadd.f32 %v2946, %v2947
        %v2949 = vsel %vm447, %v2894, 0.0
        %v2950 = vadd.f32 %v2948, %v2949
        %v2951 = vsel %vm447, %v2895, 0.0
        %v2952 = vadd.f32 %v2950, %v2951
        %v2953 = vsel %vm447, %v2896, 0.0
        %v2954 = vadd.f32 %v2952, %v2953
        %v2955 = vsel %vm447, %v2897, 0.0
        %v2956 = vadd.f32 %v2954, %v2955
        %v2957 = vsel %vm447, %v2898, 0.0
        %v2958 = vadd.f32 %v2956, %v2957
        %v2959 = vsel %vm447, %v2899, 0.0
        %v2960 = vadd.f32 %v2958, %v2959
        %v2961 = vsel %vm447, %v2900, 0.0
        %v2962 = vadd.f32 %v2960, %v2961
        %v2963 = vsel %vm447, %v2901, 0.0
        %v2964 = vadd.f32 %v2962, %v2963
        %v2965 = vsel %vm447, %v2902, 0.0
        %v2966 = vadd.f32 %v2964, %v2965
        %v2967 = vsel %vm447, %v2903, 0.0
        %v2968 = vadd.f32 %v2966, %v2967
        %v2969 = vsel %vm447, %v2904, 0.0
        %v2970 = vadd.f32 %v2968, %v2969
        %v2971 = vsel %vm447, %v2905, 0.0
        %v2972 = vadd.f32 %v2970, %v2971
        %v2973 = vsel %vm447, %v2906, 0.0
        %v2974 = vadd.f32 %v2972, %v2973
        %v2975 = vrot.slane %v2974, 4
        %v2976 = vadd.f32 %v2974, %v2975
        %v2977 = vrot.slane %v2976, 2
        %v2978 = vadd.f32 %v2976, %v2977
        %v2979 = vrot.slane %v2978, 1
        %v2980 = vadd.f32 %v2978, %v2979
        %v2981 = vmul.f32 %v2943, %v731
        %v2982 = vmul.f32 %v2980, %v731
        %v2983 = vadd.f32 %v2981, 1e-05
        %v2984 = vadd.f32 %v2982, 1e-05
        %v2985 = vrsqrt.pop %v2983
        %v2986 = vrsqrt.pop %v2984
        %v2987 = vmul.f32 %v2843, %v2985
        %v2988 = vmul.f32 %v2844, %v2985
        %v2989 = vmul.f32 %v2845, %v2985
        %v2990 = vmul.f32 %v2846, %v2985
        %v2991 = vmul.f32 %v2847, %v2985
        %v2992 = vmul.f32 %v2848, %v2985
        %v2993 = vmul.f32 %v2849, %v2985
        %v2994 = vmul.f32 %v2850, %v2985
        %v2995 = vmul.f32 %v2851, %v2985
        %v2996 = vmul.f32 %v2852, %v2985
        %v2997 = vmul.f32 %v2853, %v2985
        %v2998 = vmul.f32 %v2854, %v2985
        %v2999 = vmul.f32 %v2855, %v2985
        %v3000 = vmul.f32 %v2856, %v2985
        %v3001 = vmul.f32 %v2857, %v2985
        %v3002 = vmul.f32 %v2858, %v2985
        %v3003 = vmul.f32 %v2859, %v2986
        %v3004 = vmul.f32 %v2860, %v2986
        %v3005 = vmul.f32 %v2861, %v2986
        %v3006 = vmul.f32 %v2862, %v2986
        %v3007 = vmul.f32 %v2863, %v2986
        %v3008 = vmul.f32 %v2864, %v2986
        %v3009 = vmul.f32 %v2865, %v2986
        %v3010 = vmul.f32 %v2866, %v2986
        %v3011 = vmul.f32 %v2867, %v2986
        %v3012 = vmul.f32 %v2868, %v2986
        %v3013 = vmul.f32 %v2869, %v2986
        %v3014 = vmul.f32 %v2870, %v2986
        %v3015 = vmul.f32 %v2871, %v2986
        %v3016 = vmul.f32 %v2872, %v2986
        %v3017 = vmul.f32 %v2873, %v2986
        %v3018 = vmul.f32 %v2874, %v2986
        %v3019 = vmax.f32 %v2987, 0.0
        %v3020 = vmax.f32 %v2988, 0.0
        %v3021 = vmax.f32 %v2989, 0.0
        %v3022 = vmax.f32 %v2990, 0.0
        %v3023 = vmax.f32 %v2991, 0.0
        %v3024 = vmax.f32 %v2992, 0.0
        %v3025 = vmax.f32 %v2993, 0.0
        %v3026 = vmax.f32 %v2994, 0.0
        %v3027 = vmax.f32 %v2995, 0.0
        %v3028 = vmax.f32 %v2996, 0.0
        %v3029 = vmax.f32 %v2997, 0.0
        %v3030 = vmax.f32 %v2998, 0.0
        %v3031 = vmax.f32 %v2999, 0.0
        %v3032 = vmax.f32 %v3000, 0.0
        %v3033 = vmax.f32 %v3001, 0.0
        %v3034 = vmax.f32 %v3002, 0.0
        %v3035 = vmax.f32 %v3003, 0.0
        %v3036 = vmax.f32 %v3004, 0.0
        %v3037 = vmax.f32 %v3005, 0.0
        %v3038 = vmax.f32 %v3006, 0.0
        %v3039 = vmax.f32 %v3007, 0.0
        %v3040 = vmax.f32 %v3008, 0.0
        %v3041 = vmax.f32 %v3009, 0.0
        %v3042 = vmax.f32 %v3010, 0.0
        %v3043 = vmax.f32 %v3011, 0.0
        %v3044 = vmax.f32 %v3012, 0.0
        %v3045 = vmax.f32 %v3013, 0.0
        %v3046 = vmax.f32 %v3014, 0.0
        %v3047 = vmax.f32 %v3015, 0.0
        %v3048 = vmax.f32 %v3016, 0.0
        %v3049 = vmax.f32 %v3017, 0.0
        %v3050 = vmax.f32 %v3018, 0.0
        %v3051 = vpack.c.bf16 %v3020, %v3019
        %v3052 = vpack.c.bf16 %v3022, %v3021
        %v3053 = vpack.c.bf16 %v3024, %v3023
        %v3054 = vpack.c.bf16 %v3026, %v3025
        %v3055 = vpack.c.bf16 %v3028, %v3027
        %v3056 = vpack.c.bf16 %v3030, %v3029
        %v3057 = vpack.c.bf16 %v3032, %v3031
        %v3058 = vpack.c.bf16 %v3034, %v3033
        %v3059 = vpack.c.bf16 %v3036, %v3035
        %v3060 = vpack.c.bf16 %v3038, %v3037
        %v3061 = vpack.c.bf16 %v3040, %v3039
        %v3062 = vpack.c.bf16 %v3042, %v3041
        %v3063 = vpack.c.bf16 %v3044, %v3043
        %v3064 = vpack.c.bf16 %v3046, %v3045
        %v3065 = vpack.c.bf16 %v3048, %v3047
        %v3066 = vpack.c.bf16 %v3050, %v3049
        %v3083 = vunpack.c.l.b16 %v3051
        %v3084 = vunpack.c.h.b16 %v3051
        %v3085 = vunpack.c.l.b16 %v3052
        %v3086 = vunpack.c.h.b16 %v3052
        %v3087 = vunpack.c.l.b16 %v3053
        %v3088 = vunpack.c.h.b16 %v3053
        %v3089 = vunpack.c.l.b16 %v3054
        %v3090 = vunpack.c.h.b16 %v3054
        %v3091 = vunpack.c.l.b16 %v3055
        %v3092 = vunpack.c.h.b16 %v3055
        %v3093 = vunpack.c.l.b16 %v3056
        %v3094 = vunpack.c.h.b16 %v3056
        %v3095 = vunpack.c.l.b16 %v3057
        %v3096 = vunpack.c.h.b16 %v3057
        %v3097 = vunpack.c.l.b16 %v3058
        %v3098 = vunpack.c.h.b16 %v3058
        %v3099 = vunpack.c.l.b16 %v3059
        %v3100 = vunpack.c.h.b16 %v3059
        %v3101 = vunpack.c.l.b16 %v3060
        %v3102 = vunpack.c.h.b16 %v3060
        %v3103 = vunpack.c.l.b16 %v3061
        %v3104 = vunpack.c.h.b16 %v3061
        %v3105 = vunpack.c.l.b16 %v3062
        %v3106 = vunpack.c.h.b16 %v3062
        %v3107 = vunpack.c.l.b16 %v3063
        %v3108 = vunpack.c.h.b16 %v3063
        %v3109 = vunpack.c.l.b16 %v3064
        %v3110 = vunpack.c.h.b16 %v3064
        %v3111 = vunpack.c.l.b16 %v3065
        %v3112 = vunpack.c.h.b16 %v3065
        %v3113 = vunpack.c.l.b16 %v3066
        %v3114 = vunpack.c.h.b16 %v3066
        %v3115 = vpack.c.b16 %v3083, %v3083
        %v3116 = vpack.c.b16 %v3084, %v3084
        %v3117 = vpack.c.b16 %v3085, %v3085
        %v3118 = vpack.c.b16 %v3086, %v3086
        %v3119 = vpack.c.b16 %v3087, %v3087
        %v3120 = vpack.c.b16 %v3088, %v3088
        %v3121 = vpack.c.b16 %v3089, %v3089
        %v3122 = vpack.c.b16 %v3090, %v3090
        %v3123 = vpack.c.b16 %v3091, %v3091
        %v3124 = vpack.c.b16 %v3092, %v3092
        %v3125 = vpack.c.b16 %v3093, %v3093
        %v3126 = vpack.c.b16 %v3094, %v3094
        %v3127 = vpack.c.b16 %v3095, %v3095
        %v3128 = vpack.c.b16 %v3096, %v3096
        %v3129 = vpack.c.b16 %v3097, %v3097
        %v3130 = vpack.c.b16 %v3098, %v3098
        %v3131 = vpack.c.b16 %v3099, %v3099
        %v3132 = vpack.c.b16 %v3100, %v3100
        %v3133 = vpack.c.b16 %v3101, %v3101
        %v3134 = vpack.c.b16 %v3102, %v3102
        %v3135 = vpack.c.b16 %v3103, %v3103
        %v3136 = vpack.c.b16 %v3104, %v3104
        %v3137 = vpack.c.b16 %v3105, %v3105
        %v3138 = vpack.c.b16 %v3106, %v3106
        %v3139 = vpack.c.b16 %v3107, %v3107
        %v3140 = vpack.c.b16 %v3108, %v3108
        %v3141 = vpack.c.b16 %v3109, %v3109
        %v3142 = vpack.c.b16 %v3110, %v3110
        %v3143 = vpack.c.b16 %v3111, %v3111
        %v3144 = vpack.c.b16 %v3112, %v3112
        %v3145 = vpack.c.b16 %v3113, %v3113
        %v3146 = vpack.c.b16 %v3114, %v3114
        %vm3147 = vcmask 125952
        %v3150 = vsel %vm3147, %v3115, 4286644096
        %v3152 = vunpack.i.l.bf16 %v3150
        %v3153 = vunpack.i.h.bf16 %v3150
        %v3154 = vmax.f32 %v3152, %v3153
        %v3155 = vrot.slane %v3154, 4
        %v3156 = vmax.f32 %v3154, %v3155
        %v3157 = vrot.slane %v3156, 2
        %v3158 = vmax.f32 %v3156, %v3157
        %v3159 = vrot.slane %v3158, 1
        %v3160 = vmax.f32 %v3158, %v3159
        %v3161 = vpack.i.bf16 %v3160, %v3160
        %v3163 = vsel %vm3147, %v3116, 4286644096
        %v3165 = vunpack.i.l.bf16 %v3163
        %v3166 = vunpack.i.h.bf16 %v3163
        %v3167 = vmax.f32 %v3165, %v3166
        %v3168 = vrot.slane %v3167, 4
        %v3169 = vmax.f32 %v3167, %v3168
        %v3170 = vrot.slane %v3169, 2
        %v3171 = vmax.f32 %v3169, %v3170
        %v3172 = vrot.slane %v3171, 1
        %v3173 = vmax.f32 %v3171, %v3172
        %v3174 = vpack.i.bf16 %v3173, %v3173
        %v3176 = vsel %vm3147, %v3117, 4286644096
        %v3178 = vunpack.i.l.bf16 %v3176
        %v3179 = vunpack.i.h.bf16 %v3176
        %v3180 = vmax.f32 %v3178, %v3179
        %v3181 = vrot.slane %v3180, 4
        %v3182 = vmax.f32 %v3180, %v3181
        %v3183 = vrot.slane %v3182, 2
        %v3184 = vmax.f32 %v3182, %v3183
        %v3185 = vrot.slane %v3184, 1
        %v3186 = vmax.f32 %v3184, %v3185
        %v3187 = vpack.i.bf16 %v3186, %v3186
        %v3189 = vsel %vm3147, %v3118, 4286644096
        %v3191 = vunpack.i.l.bf16 %v3189
        %v3192 = vunpack.i.h.bf16 %v3189
        %v3193 = vmax.f32 %v3191, %v3192
        %v3194 = vrot.slane %v3193, 4
        %v3195 = vmax.f32 %v3193, %v3194
        %v3196 = vrot.slane %v3195, 2
        %v3197 = vmax.f32 %v3195, %v3196
        %v3198 = vrot.slane %v3197, 1
        %v3199 = vmax.f32 %v3197, %v3198
        %v3200 = vpack.i.bf16 %v3199, %v3199
        %v3202 = vsel %vm3147, %v3119, 4286644096
        %v3204 = vunpack.i.l.bf16 %v3202
        %v3205 = vunpack.i.h.bf16 %v3202
        %v3206 = vmax.f32 %v3204, %v3205
        %v3207 = vrot.slane %v3206, 4
        %v3208 = vmax.f32 %v3206, %v3207
        %v3209 = vrot.slane %v3208, 2
        %v3210 = vmax.f32 %v3208, %v3209
        %v3211 = vrot.slane %v3210, 1
        %v3212 = vmax.f32 %v3210, %v3211
        %v3213 = vpack.i.bf16 %v3212, %v3212
        %v3215 = vsel %vm3147, %v3120, 4286644096
        %v3217 = vunpack.i.l.bf16 %v3215
        %v3218 = vunpack.i.h.bf16 %v3215
        %v3219 = vmax.f32 %v3217, %v3218
        %v3220 = vrot.slane %v3219, 4
        %v3221 = vmax.f32 %v3219, %v3220
        %v3222 = vrot.slane %v3221, 2
        %v3223 = vmax.f32 %v3221, %v3222
        %v3224 = vrot.slane %v3223, 1
        %v3225 = vmax.f32 %v3223, %v3224
        %v3226 = vpack.i.bf16 %v3225, %v3225
        %v3228 = vsel %vm3147, %v3121, 4286644096
        %v3230 = vunpack.i.l.bf16 %v3228
        %v3231 = vunpack.i.h.bf16 %v3228
        %v3232 = vmax.f32 %v3230, %v3231
        %v3233 = vrot.slane %v3232, 4
        %v3234 = vmax.f32 %v3232, %v3233
        %v3235 = vrot.slane %v3234, 2
        %v3236 = vmax.f32 %v3234, %v3235
        %v3237 = vrot.slane %v3236, 1
        %v3238 = vmax.f32 %v3236, %v3237
        %v3239 = vpack.i.bf16 %v3238, %v3238
        %v3241 = vsel %vm3147, %v3122, 4286644096
        %v3243 = vunpack.i.l.bf16 %v3241
        %v3244 = vunpack.i.h.bf16 %v3241
        %v3245 = vmax.f32 %v3243, %v3244
        %v3246 = vrot.slane %v3245, 4
        %v3247 = vmax.f32 %v3245, %v3246
        %v3248 = vrot.slane %v3247, 2
        %v3249 = vmax.f32 %v3247, %v3248
        %v3250 = vrot.slane %v3249, 1
        %v3251 = vmax.f32 %v3249, %v3250
        %v3252 = vpack.i.bf16 %v3251, %v3251
        %v3254 = vsel %vm3147, %v3123, 4286644096
        %v3256 = vunpack.i.l.bf16 %v3254
        %v3257 = vunpack.i.h.bf16 %v3254
        %v3258 = vmax.f32 %v3256, %v3257
        %v3259 = vrot.slane %v3258, 4
        %v3260 = vmax.f32 %v3258, %v3259
        %v3261 = vrot.slane %v3260, 2
        %v3262 = vmax.f32 %v3260, %v3261
        %v3263 = vrot.slane %v3262, 1
        %v3264 = vmax.f32 %v3262, %v3263
        %v3265 = vpack.i.bf16 %v3264, %v3264
        %v3267 = vsel %vm3147, %v3124, 4286644096
        %v3269 = vunpack.i.l.bf16 %v3267
        %v3270 = vunpack.i.h.bf16 %v3267
        %v3271 = vmax.f32 %v3269, %v3270
        %v3272 = vrot.slane %v3271, 4
        %v3273 = vmax.f32 %v3271, %v3272
        %v3274 = vrot.slane %v3273, 2
        %v3275 = vmax.f32 %v3273, %v3274
        %v3276 = vrot.slane %v3275, 1
        %v3277 = vmax.f32 %v3275, %v3276
        %v3278 = vpack.i.bf16 %v3277, %v3277
        %v3280 = vsel %vm3147, %v3125, 4286644096
        %v3282 = vunpack.i.l.bf16 %v3280
        %v3283 = vunpack.i.h.bf16 %v3280
        %v3284 = vmax.f32 %v3282, %v3283
        %v3285 = vrot.slane %v3284, 4
        %v3286 = vmax.f32 %v3284, %v3285
        %v3287 = vrot.slane %v3286, 2
        %v3288 = vmax.f32 %v3286, %v3287
        %v3289 = vrot.slane %v3288, 1
        %v3290 = vmax.f32 %v3288, %v3289
        %v3291 = vpack.i.bf16 %v3290, %v3290
        %v3293 = vsel %vm3147, %v3126, 4286644096
        %v3295 = vunpack.i.l.bf16 %v3293
        %v3296 = vunpack.i.h.bf16 %v3293
        %v3297 = vmax.f32 %v3295, %v3296
        %v3298 = vrot.slane %v3297, 4
        %v3299 = vmax.f32 %v3297, %v3298
        %v3300 = vrot.slane %v3299, 2
        %v3301 = vmax.f32 %v3299, %v3300
        %v3302 = vrot.slane %v3301, 1
        %v3303 = vmax.f32 %v3301, %v3302
        %v3304 = vpack.i.bf16 %v3303, %v3303
        %v3306 = vsel %vm3147, %v3127, 4286644096
        %v3308 = vunpack.i.l.bf16 %v3306
        %v3309 = vunpack.i.h.bf16 %v3306
        %v3310 = vmax.f32 %v3308, %v3309
        %v3311 = vrot.slane %v3310, 4
        %v3312 = vmax.f32 %v3310, %v3311
        %v3313 = vrot.slane %v3312, 2
        %v3314 = vmax.f32 %v3312, %v3313
        %v3315 = vrot.slane %v3314, 1
        %v3316 = vmax.f32 %v3314, %v3315
        %v3317 = vpack.i.bf16 %v3316, %v3316
        %v3319 = vsel %vm3147, %v3128, 4286644096
        %v3321 = vunpack.i.l.bf16 %v3319
        %v3322 = vunpack.i.h.bf16 %v3319
        %v3323 = vmax.f32 %v3321, %v3322
        %v3324 = vrot.slane %v3323, 4
        %v3325 = vmax.f32 %v3323, %v3324
        %v3326 = vrot.slane %v3325, 2
        %v3327 = vmax.f32 %v3325, %v3326
        %v3328 = vrot.slane %v3327, 1
        %v3329 = vmax.f32 %v3327, %v3328
        %v3330 = vpack.i.bf16 %v3329, %v3329
        %v3332 = vsel %vm3147, %v3129, 4286644096
        %v3334 = vunpack.i.l.bf16 %v3332
        %v3335 = vunpack.i.h.bf16 %v3332
        %v3336 = vmax.f32 %v3334, %v3335
        %v3337 = vrot.slane %v3336, 4
        %v3338 = vmax.f32 %v3336, %v3337
        %v3339 = vrot.slane %v3338, 2
        %v3340 = vmax.f32 %v3338, %v3339
        %v3341 = vrot.slane %v3340, 1
        %v3342 = vmax.f32 %v3340, %v3341
        %v3343 = vpack.i.bf16 %v3342, %v3342
        %v3345 = vsel %vm3147, %v3130, 4286644096
        %v3347 = vunpack.i.l.bf16 %v3345
        %v3348 = vunpack.i.h.bf16 %v3345
        %v3349 = vmax.f32 %v3347, %v3348
        %v3350 = vrot.slane %v3349, 4
        %v3351 = vmax.f32 %v3349, %v3350
        %v3352 = vrot.slane %v3351, 2
        %v3353 = vmax.f32 %v3351, %v3352
        %v3354 = vrot.slane %v3353, 1
        %v3355 = vmax.f32 %v3353, %v3354
        %v3356 = vpack.i.bf16 %v3355, %v3355
        %v3358 = vsel %vm3147, %v3131, 4286644096
        %v3360 = vunpack.i.l.bf16 %v3358
        %v3361 = vunpack.i.h.bf16 %v3358
        %v3362 = vmax.f32 %v3360, %v3361
        %v3363 = vrot.slane %v3362, 4
        %v3364 = vmax.f32 %v3362, %v3363
        %v3365 = vrot.slane %v3364, 2
        %v3366 = vmax.f32 %v3364, %v3365
        %v3367 = vrot.slane %v3366, 1
        %v3368 = vmax.f32 %v3366, %v3367
        %v3369 = vpack.i.bf16 %v3368, %v3368
        %v3371 = vsel %vm3147, %v3132, 4286644096
        %v3373 = vunpack.i.l.bf16 %v3371
        %v3374 = vunpack.i.h.bf16 %v3371
        %v3375 = vmax.f32 %v3373, %v3374
        %v3376 = vrot.slane %v3375, 4
        %v3377 = vmax.f32 %v3375, %v3376
        %v3378 = vrot.slane %v3377, 2
        %v3379 = vmax.f32 %v3377, %v3378
        %v3380 = vrot.slane %v3379, 1
        %v3381 = vmax.f32 %v3379, %v3380
        %v3382 = vpack.i.bf16 %v3381, %v3381
        %v3384 = vsel %vm3147, %v3133, 4286644096
        %v3386 = vunpack.i.l.bf16 %v3384
        %v3387 = vunpack.i.h.bf16 %v3384
        %v3388 = vmax.f32 %v3386, %v3387
        %v3389 = vrot.slane %v3388, 4
        %v3390 = vmax.f32 %v3388, %v3389
        %v3391 = vrot.slane %v3390, 2
        %v3392 = vmax.f32 %v3390, %v3391
        %v3393 = vrot.slane %v3392, 1
        %v3394 = vmax.f32 %v3392, %v3393
        %v3395 = vpack.i.bf16 %v3394, %v3394
        %v3397 = vsel %vm3147, %v3134, 4286644096
        %v3399 = vunpack.i.l.bf16 %v3397
        %v3400 = vunpack.i.h.bf16 %v3397
        %v3401 = vmax.f32 %v3399, %v3400
        %v3402 = vrot.slane %v3401, 4
        %v3403 = vmax.f32 %v3401, %v3402
        %v3404 = vrot.slane %v3403, 2
        %v3405 = vmax.f32 %v3403, %v3404
        %v3406 = vrot.slane %v3405, 1
        %v3407 = vmax.f32 %v3405, %v3406
        %v3408 = vpack.i.bf16 %v3407, %v3407
        %v3410 = vsel %vm3147, %v3135, 4286644096
        %v3412 = vunpack.i.l.bf16 %v3410
        %v3413 = vunpack.i.h.bf16 %v3410
        %v3414 = vmax.f32 %v3412, %v3413
        %v3415 = vrot.slane %v3414, 4
        %v3416 = vmax.f32 %v3414, %v3415
        %v3417 = vrot.slane %v3416, 2
        %v3418 = vmax.f32 %v3416, %v3417
        %v3419 = vrot.slane %v3418, 1
        %v3420 = vmax.f32 %v3418, %v3419
        %v3421 = vpack.i.bf16 %v3420, %v3420
        %v3423 = vsel %vm3147, %v3136, 4286644096
        %v3425 = vunpack.i.l.bf16 %v3423
        %v3426 = vunpack.i.h.bf16 %v3423
        %v3427 = vmax.f32 %v3425, %v3426
        %v3428 = vrot.slane %v3427, 4
        %v3429 = vmax.f32 %v3427, %v3428
        %v3430 = vrot.slane %v3429, 2
        %v3431 = vmax.f32 %v3429, %v3430
        %v3432 = vrot.slane %v3431, 1
        %v3433 = vmax.f32 %v3431, %v3432
        %v3434 = vpack.i.bf16 %v3433, %v3433
        %v3436 = vsel %vm3147, %v3137, 4286644096
        %v3438 = vunpack.i.l.bf16 %v3436
        %v3439 = vunpack.i.h.bf16 %v3436
        %v3440 = vmax.f32 %v3438, %v3439
        %v3441 = vrot.slane %v3440, 4
        %v3442 = vmax.f32 %v3440, %v3441
        %v3443 = vrot.slane %v3442, 2
        %v3444 = vmax.f32 %v3442, %v3443
        %v3445 = vrot.slane %v3444, 1
        %v3446 = vmax.f32 %v3444, %v3445
        %v3447 = vpack.i.bf16 %v3446, %v3446
        %v3449 = vsel %vm3147, %v3138, 4286644096
        %v3451 = vunpack.i.l.bf16 %v3449
        %v3452 = vunpack.i.h.bf16 %v3449
        %v3453 = vmax.f32 %v3451, %v3452
        %v3454 = vrot.slane %v3453, 4
        %v3455 = vmax.f32 %v3453, %v3454
        %v3456 = vrot.slane %v3455, 2
        %v3457 = vmax.f32 %v3455, %v3456
        %v3458 = vrot.slane %v3457, 1
        %v3459 = vmax.f32 %v3457, %v3458
        %v3460 = vpack.i.bf16 %v3459, %v3459
        %v3462 = vsel %vm3147, %v3139, 4286644096
        %v3464 = vunpack.i.l.bf16 %v3462
        %v3465 = vunpack.i.h.bf16 %v3462
        %v3466 = vmax.f32 %v3464, %v3465
        %v3467 = vrot.slane %v3466, 4
        %v3468 = vmax.f32 %v3466, %v3467
        %v3469 = vrot.slane %v3468, 2
        %v3470 = vmax.f32 %v3468, %v3469
        %v3471 = vrot.slane %v3470, 1
        %v3472 = vmax.f32 %v3470, %v3471
        %v3473 = vpack.i.bf16 %v3472, %v3472
        %v3475 = vsel %vm3147, %v3140, 4286644096
        %v3477 = vunpack.i.l.bf16 %v3475
        %v3478 = vunpack.i.h.bf16 %v3475
        %v3479 = vmax.f32 %v3477, %v3478
        %v3480 = vrot.slane %v3479, 4
        %v3481 = vmax.f32 %v3479, %v3480
        %v3482 = vrot.slane %v3481, 2
        %v3483 = vmax.f32 %v3481, %v3482
        %v3484 = vrot.slane %v3483, 1
        %v3485 = vmax.f32 %v3483, %v3484
        %v3486 = vpack.i.bf16 %v3485, %v3485
        %v3488 = vsel %vm3147, %v3141, 4286644096
        %v3490 = vunpack.i.l.bf16 %v3488
        %v3491 = vunpack.i.h.bf16 %v3488
        %v3492 = vmax.f32 %v3490, %v3491
        %v3493 = vrot.slane %v3492, 4
        %v3494 = vmax.f32 %v3492, %v3493
        %v3495 = vrot.slane %v3494, 2
        %v3496 = vmax.f32 %v3494, %v3495
        %v3497 = vrot.slane %v3496, 1
        %v3498 = vmax.f32 %v3496, %v3497
        %v3499 = vpack.i.bf16 %v3498, %v3498
        %v3501 = vsel %vm3147, %v3142, 4286644096
        %v3503 = vunpack.i.l.bf16 %v3501
        %v3504 = vunpack.i.h.bf16 %v3501
        %v3505 = vmax.f32 %v3503, %v3504
        %v3506 = vrot.slane %v3505, 4
        %v3507 = vmax.f32 %v3505, %v3506
        %v3508 = vrot.slane %v3507, 2
        %v3509 = vmax.f32 %v3507, %v3508
        %v3510 = vrot.slane %v3509, 1
        %v3511 = vmax.f32 %v3509, %v3510
        %v3512 = vpack.i.bf16 %v3511, %v3511
        %v3514 = vsel %vm3147, %v3143, 4286644096
        %v3516 = vunpack.i.l.bf16 %v3514
        %v3517 = vunpack.i.h.bf16 %v3514
        %v3518 = vmax.f32 %v3516, %v3517
        %v3519 = vrot.slane %v3518, 4
        %v3520 = vmax.f32 %v3518, %v3519
        %v3521 = vrot.slane %v3520, 2
        %v3522 = vmax.f32 %v3520, %v3521
        %v3523 = vrot.slane %v3522, 1
        %v3524 = vmax.f32 %v3522, %v3523
        %v3525 = vpack.i.bf16 %v3524, %v3524
        %v3527 = vsel %vm3147, %v3144, 4286644096
        %v3529 = vunpack.i.l.bf16 %v3527
        %v3530 = vunpack.i.h.bf16 %v3527
        %v3531 = vmax.f32 %v3529, %v3530
        %v3532 = vrot.slane %v3531, 4
        %v3533 = vmax.f32 %v3531, %v3532
        %v3534 = vrot.slane %v3533, 2
        %v3535 = vmax.f32 %v3533, %v3534
        %v3536 = vrot.slane %v3535, 1
        %v3537 = vmax.f32 %v3535, %v3536
        %v3538 = vpack.i.bf16 %v3537, %v3537
        %v3540 = vsel %vm3147, %v3145, 4286644096
        %v3542 = vunpack.i.l.bf16 %v3540
        %v3543 = vunpack.i.h.bf16 %v3540
        %v3544 = vmax.f32 %v3542, %v3543
        %v3545 = vrot.slane %v3544, 4
        %v3546 = vmax.f32 %v3544, %v3545
        %v3547 = vrot.slane %v3546, 2
        %v3548 = vmax.f32 %v3546, %v3547
        %v3549 = vrot.slane %v3548, 1
        %v3550 = vmax.f32 %v3548, %v3549
        %v3551 = vpack.i.bf16 %v3550, %v3550
        %v3553 = vsel %vm3147, %v3146, 4286644096
        %v3555 = vunpack.i.l.bf16 %v3553
        %v3556 = vunpack.i.h.bf16 %v3553
        %v3557 = vmax.f32 %v3555, %v3556
        %v3558 = vrot.slane %v3557, 4
        %v3559 = vmax.f32 %v3557, %v3558
        %v3560 = vrot.slane %v3559, 2
        %v3561 = vmax.f32 %v3559, %v3560
        %v3562 = vrot.slane %v3561, 1
        %v3563 = vmax.f32 %v3561, %v3562
        %v3564 = vpack.i.bf16 %v3563, %v3563
        %v3597 = vunpack.c.l.b16 %v3161
        %v3598 = vunpack.c.l.b16 %v3174
        %v3599 = vunpack.c.l.b16 %v3187
        %v3600 = vunpack.c.l.b16 %v3200
        %v3601 = vunpack.c.l.b16 %v3213
        %v3602 = vunpack.c.l.b16 %v3226
        %v3603 = vunpack.c.l.b16 %v3239
        %v3604 = vunpack.c.l.b16 %v3252
        %v3605 = vunpack.c.l.b16 %v3265
        %v3606 = vunpack.c.l.b16 %v3278
        %v3607 = vunpack.c.l.b16 %v3291
        %v3608 = vunpack.c.l.b16 %v3304
        %v3609 = vunpack.c.l.b16 %v3317
        %v3610 = vunpack.c.l.b16 %v3330
        %v3611 = vunpack.c.l.b16 %v3343
        %v3612 = vunpack.c.l.b16 %v3356
        %v3613 = vunpack.c.l.b16 %v3369
        %v3614 = vunpack.c.l.b16 %v3382
        %v3615 = vunpack.c.l.b16 %v3395
        %v3616 = vunpack.c.l.b16 %v3408
        %v3617 = vunpack.c.l.b16 %v3421
        %v3618 = vunpack.c.l.b16 %v3434
        %v3619 = vunpack.c.l.b16 %v3447
        %v3620 = vunpack.c.l.b16 %v3460
        %v3621 = vunpack.c.l.b16 %v3473
        %v3622 = vunpack.c.l.b16 %v3486
        %v3623 = vunpack.c.l.b16 %v3499
        %v3624 = vunpack.c.l.b16 %v3512
        %v3625 = vunpack.c.l.b16 %v3525
        %v3626 = vunpack.c.l.b16 %v3538
        %v3627 = vunpack.c.l.b16 %v3551
        %v3628 = vunpack.c.l.b16 %v3564
        %v3629 = vsel %vm1744, %v3598, %v3597
        %v3630 = vsel %vm1746, %v3599, %v3629
        %v3631 = vsel %vm1748, %v3600, %v3630
        %v3632 = vsel %vm1750, %v3601, %v3631
        %v3633 = vsel %vm1752, %v3602, %v3632
        %v3634 = vsel %vm1754, %v3603, %v3633
        %v3635 = vsel %vm1756, %v3604, %v3634
        %v3636 = vsel %vm1744, %v3606, %v3605
        %v3637 = vsel %vm1746, %v3607, %v3636
        %v3638 = vsel %vm1748, %v3608, %v3637
        %v3639 = vsel %vm1750, %v3609, %v3638
        %v3640 = vsel %vm1752, %v3610, %v3639
        %v3641 = vsel %vm1754, %v3611, %v3640
        %v3642 = vsel %vm1756, %v3612, %v3641
        %v3643 = vsel %vm1744, %v3614, %v3613
        %v3644 = vsel %vm1746, %v3615, %v3643
        %v3645 = vsel %vm1748, %v3616, %v3644
        %v3646 = vsel %vm1750, %v3617, %v3645
        %v3647 = vsel %vm1752, %v3618, %v3646
        %v3648 = vsel %vm1754, %v3619, %v3647
        %v3649 = vsel %vm1756, %v3620, %v3648
        %v3650 = vsel %vm1744, %v3622, %v3621
        %v3651 = vsel %vm1746, %v3623, %v3650
        %v3652 = vsel %vm1748, %v3624, %v3651
        %v3653 = vsel %vm1750, %v3625, %v3652
        %v3654 = vsel %vm1752, %v3626, %v3653
        %v3655 = vsel %vm1754, %v3627, %v3654
        %v3656 = vsel %vm1756, %v3628, %v3655
        %v3657 = vpack.c.b16 %v3642, %v3635
        %v3658 = vpack.c.b16 %v3656, %v3649
        %3661 = vxpose.xlu0.c.b16.start [1/8] %v3657, 128
        %3662 = vxpose.xlu0.c.b16.cont [2/8] %v3658, 128
        %3663 = vxpose.xlu0.c.b16.cont [3/8] 0, 128
        %3664 = vxpose.xlu0.c.b16.cont [4/8] 0, 128
        %3665 = vxpose.xlu0.c.b16.cont [5/8] 0, 128
        %3666 = vxpose.xlu0.c.b16.cont [6/8] 0, 128
        %3667 = vxpose.xlu0.c.b16.cont [7/8] 0, 128
        %3668 = vxpose.xlu0.c.b16.end [8/8] 0, 128
        %v3669 = vpop.trf.xlu0
        %v3670 = vpop.trf.xlu0
        %v3671 = vpop.trf.xlu0
        %v3672 = vpop.trf.xlu0
        %v3673 = vpop.trf.xlu0
        %v3674 = vpop.trf.xlu0
        %v3675 = vpop.trf.xlu0
        %v3676 = vpop.trf.xlu0
        %v3678 = vunpack.c.l.b16 %v3669
        %v3679 = vunpack.c.h.b16 %v3669
        %v3680 = vpack.c.b16 %v3678, %v3678
        %v3681 = vpack.c.b16 %v3679, %v3679
        %3684 = vst.msk [vmem:[%s378] sm:$0xf] %vm3147, %v3680
        %3685 = vst.msk [vmem:[%s378 + $0x4] sm:$0xf] %vm3147, %v3681
        %3686 = vrot.lane.b32.xlu0 %v3680, 112
        %v3687 = vpop.permute.xlu0 %3686
        %3688 = vrot.lane.b32.xlu0 %v3681, 112
        %v3689 = vpop.permute.xlu0 %3688
        %s3692 = scalar_lea.vmem %s378, 8 [#allocation5]
        %3693 = vst.msk [vmem:[%s3692] sm:$0xf] %vm3147, %v3687
        %3694 = vst.msk [vmem:[%s3692 + $0x4] sm:$0xf] %vm3147, %v3689
        %s3695 = sand.u32 %s250, 1
        %s3696 = scalar_lea.sflag [#allocation4], %s3695
        %s3697 = sand.u32 %s250, 1
        %s3698 = smul.addr %s3697, 16
        %s3699 = scalar_lea.vmem [#allocation5], %s3698
        // Predicated region
        $region65: #{tpu_custom_call.1} parent=59 // pred_check
          %p3700 = pneg %p260
        $region66: #{tpu_custom_call.1} parent=59 // pred_check_branch
          %3702 = sbr.rel (%p3700) target = $region68
        $region67: #{tpu_custom_call.1} parent=59 // pred_region
          %s3703 = smul.u32 2, %s27
          %s3705 = ssub.s32 256, 256
          %3706 = vsyncadd %s3696, %s3705
          %s3707 = smul.addr %s3703, 2
          %s3708 = smul.addr %s3707, 64
          %s3709 = scalar_lea.hbm %s10, %s3708
          %s3710 = sshll.u32 %s3699, 4
          %s3711 = int_to_ptr.vmem [resolvable:$true] %s3710
          %3716 = dma.vmem_to_hbm [thread:$0]  %s3711, 256, %s3709, %s3696, 64, 64, 4
        $region68: #{tpu_custom_call.1} parent=59 // pred_fallthru
          _
      $region60: #{tpu_custom_call.1} parent=5 // pred_fallthru
        _
      %p3717 = scmp.le.s32.totalorder 2, %s22
      // Predicated region
      $region69: #{tpu_custom_call.1} parent=5 // pred_check
        %p3718 = pneg %p3717
      $region70: #{tpu_custom_call.1} parent=5 // pred_check_branch
        %3720 = sbr.rel (%p3718) target = $region72
      $region71: #{tpu_custom_call.1} parent=5 // pred_region
        %s3721 = ssub.s32 %s22, 2
        // Predicated region
        $region73: #{tpu_custom_call.1} parent=71 // pred_check
          %p3722 = pneg %p266
        $region74: #{tpu_custom_call.1} parent=71 // pred_check_branch
          %3724 = sbr.rel (%p3722) target = $region76
        $region75: #{tpu_custom_call.1} parent=71 // pred_region
          %s3725 = sand.u32 %s251, 1
          %s3726 = scalar_lea.sflag [#allocation4], %s3725
          %s3727 = sand.u32 %s251, 1
          %s3728 = smul.addr %s3727, 16
          %s3729 = scalar_lea.vmem [#allocation5], %s3728
          %3730 = dma.done %s3726, 256
        $region76: #{tpu_custom_call.1} parent=71 // pred_fallthru
          _
      $region72: #{tpu_custom_call.1} parent=5 // pred_fallthru
        _
    $region6: #{tpu_custom_call.1} parent=1 // loop_footer
      %s26 = sadd.s32 1, %s22
    $region7: #{tpu_custom_call.1} parent=1 // loop_footer_branch
      %21 = sbr.rel target = $region3
    $region8: #{tpu_custom_call.1} parent=1 // loop_exit
      _
    %3731 = vsyncpa [#allocation3], 1
    %s3732 = scalar_lea.sflag [#allocation3], 1
    %3733 = vsyncpa %s3732, 1
    %3734 = vsyncpa [#allocation4], 1
    %s3735 = scalar_lea.sflag [#allocation4], 1
    %3736 = vsyncpa %s3735, 1

</llo_original>
